<compile_context>
chip_gen: v6e
topology: v6e:2x2x1
jax: 0.10.0
libtpu: 0.0.40
codegen_flags: <defaults>
</compile_context>

<pallas_src>
import functools

import jax
import jax.numpy as jnp
from jax.experimental import pallas as pl
from jax.experimental.pallas import tpu as pltpu

OUT_CH = 256
BN_EPS = 1e-5
MAX_DIL = 18     # largest dilation -> one shared spatial padding
TH = 6           # output rows per grid step (must divide gcd(6,12,18,MAX_DIL))
N_WIN = 7        # row windows per step: row offsets {-18,...,+18} step 6


def _round_up(x, m):
    return ((x + m - 1) // m) * m


def _win_map(k):
    # Window k covers padded rows [(i + k) * TH, (i + k) * TH + TH).
    return lambda b, i: (b, i + k, 0, 0)


# ----------------------------------------------------------------------------
# Fused ASPP kernel: 1x1 branch + three dilated 3x3 branches + concat conv
# ----------------------------------------------------------------------------
def _aspp_fused_kernel(x0, x1, x2, x3, x4, x5, x6,
                       w2_ref, wd_ref, w6_ref, b2_ref, bd_ref, bias_ref,
                       o_ref, acc_ref, *, out_w, c):
    pad = MAX_DIL
    m = TH * out_w
    # Load the 7 shared row windows once per step; window k holds padded rows
    # at offset (k - 3) * TH relative to the current output row tile.
    rows = [r[0] for r in (x0, x1, x2, x3, x4, x5, x6)]      # (TH, wp, c) bf16

    # ---- branch 2: 1x1 conv + BN + ReLU, projected through its w6 chunk ----
    xc = rows[3][:, pad:pad + out_w, :].reshape(m, c)
    y2 = jnp.maximum(
        jnp.dot(xc, w2_ref[...], preferred_element_type=jnp.float32)
        + b2_ref[...], 0.0)
    acc_ref[...] = jnp.dot(y2.astype(jnp.bfloat16), w6_ref[0],
                           preferred_element_type=jnp.float32)

    # ---- branches 3-5: dilated 3x3 conv + BN + ReLU, taps concat'd along K --
    # NOTE: tap column offsets (pad + (dx-1)*d) cannot all be sublane-aligned
    # for d in {6,12,18}; the relayout is amortized to one build per (branch,dy).
    for bi, d in enumerate((6, 12, 18)):
        conv = None
        for dy in range(3):
            row = rows[3 + (dy - 1) * (d // TH)]             # (TH, wp, c)
            taps = jnp.concatenate(
                [row[:, pad + (dx - 1) * d:pad + (dx - 1) * d + out_w, :]
                 for dx in range(3)], axis=-1)               # (TH, out_w, 3c)
            p = jnp.dot(taps.reshape(m, 3 * c), wd_ref[bi, dy],
                        preferred_element_type=jnp.float32)
            conv = p if conv is None else conv + p
        yb = jnp.maximum(conv + bd_ref[bi], 0.0).astype(jnp.bfloat16)
        acc_ref[...] += jnp.dot(yb, w6_ref[1 + bi],
                                preferred_element_type=jnp.float32)

    # ---- fused concat-conv epilogue: pooled-branch bias + BN shift + ReLU ---
    out = jnp.maximum(acc_ref[...] + bias_ref[0], 0.0)
    o_ref[0] = out.reshape(TH, out_w, OUT_CH).astype(o_ref.dtype)


def aspp_fused(xp, w2, wd, w6c, b2, bd, bias, h_pad, out_w):
    """xp: (N, h_pad + 2*MAX_DIL, W + 2*MAX_DIL, C) bf16 shared padded input.
    w2: (C, 256) bf16; wd: (3, 3, 3C, 256) bf16 (branch, dy, dx*c, cout);
    w6c: (4, 256, 256) bf16 (concat-conv chunks for y2..y5);
    b2: (1, 256) f32; bd: (3, 1, 256) f32; bias: (N, 1, 256) f32.
    Returns (N, h_pad, W, 256) f32."""
    n, hp, wp, c = xp.shape
    assert hp == h_pad + 2 * MAX_DIL and h_pad % TH == 0
    grid = (n, h_pad // TH)
    kern = functools.partial(_aspp_fused_kernel, out_w=out_w, c=c)

    x_specs = [pl.BlockSpec((1, TH, wp, c), _win_map(k)) for k in range(N_WIN)]
    m_total = n * h_pad * out_w
    flops = 2 * m_total * OUT_CH * (28 * c + 4 * OUT_CH)
    bytes_accessed = (N_WIN * n * h_pad * wp * c * 2
                      + (28 * c + 4 * OUT_CH) * OUT_CH * 2
                      + m_total * OUT_CH * 4)
    # TODO(synk): for large backbone C_in (e.g. 2048), chunk the input-channel
    # dim (extra "arbitrary" grid axis accumulating into acc_ref) and/or raise
    # vmem_limit_bytes so the resident (3,3,3C,256) weight block fits scoped
    # VMEM (v5e 16 MiB default; v7x 32 MiB scoped of 64 MiB physical).
    return pl.pallas_call(
        kern,
        out_shape=jax.ShapeDtypeStruct((n, h_pad, out_w, OUT_CH), jnp.float32),
        grid=grid,
        in_specs=x_specs + [
            pl.BlockSpec((c, OUT_CH), lambda b, i: (0, 0)),
            pl.BlockSpec((3, 3, 3 * c, OUT_CH), lambda b, i: (0, 0, 0, 0)),
            pl.BlockSpec((4, OUT_CH, OUT_CH), lambda b, i: (0, 0, 0)),
            pl.BlockSpec((1, OUT_CH), lambda b, i: (0, 0)),
            pl.BlockSpec((3, 1, OUT_CH), lambda b, i: (0, 0, 0)),
            pl.BlockSpec((1, 1, OUT_CH), lambda b, i: (b, 0, 0)),
        ],
        out_specs=pl.BlockSpec((1, TH, out_w, OUT_CH), lambda b, i: (b, i, 0, 0)),
        scratch_shapes=[pltpu.VMEM((TH * out_w, OUT_CH), jnp.float32)],
        compiler_params=pltpu.CompilerParams(
            dimension_semantics=("parallel", "parallel")),
        cost_estimate=pl.CostEstimate(flops=flops, transcendentals=0,
                                      bytes_accessed=bytes_accessed),
    )(xp, xp, xp, xp, xp, xp, xp, w2, wd, w6c, b2, bd, bias)


# ----------------------------------------------------------------------------
# Parameters (BN scale folded into weights; weights stored in bf16)
# ----------------------------------------------------------------------------
def _bn_fold(key, c_out):
    kg, kb = jax.random.split(key)
    gamma = jax.random.uniform(kg, (1, c_out), jnp.float32, 0.8, 1.2)
    beta = 0.1 * jax.random.normal(kb, (1, c_out), jnp.float32)
    running_mean = jnp.zeros((1, c_out), jnp.float32)
    running_var = jnp.ones((1, c_out), jnp.float32)
    scale = gamma / jnp.sqrt(running_var + BN_EPS)
    shift = beta - running_mean * scale
    return scale, shift


def init_aspp_params(key, in_channels):
    keys = jax.random.split(key, 12)

    def conv_w(k, kh, kw, cin, cout):
        fan_in = kh * kw * cin
        w = jax.random.normal(k, (kh, kw, cin, cout), jnp.float32)
        return w * (1.0 / jnp.sqrt(fan_in))

    scales, shifts = [], []
    for i in range(6):
        s, b = _bn_fold(keys[6 + i], OUT_CH)
        scales.append(s)
        shifts.append(b)

    params = {}
    w1 = conv_w(keys[0], 1, 1, in_channels, OUT_CH).reshape(in_channels, OUT_CH)
    w2 = conv_w(keys[1], 1, 1, in_channels, OUT_CH).reshape(in_channels, OUT_CH)
    params['w1'] = (w1 * scales[0]).astype(jnp.bfloat16)
    params['w2'] = (w2 * scales[1]).astype(jnp.bfloat16)
    # Dilated 3x3 convs, per-dy taps flattened along K: (branch, dy, 3*C, 256)
    wd = []
    for i in range(3):
        w = conv_w(keys[2 + i], 3, 3, in_channels, OUT_CH) * scales[2 + i]
        wd.append(w.reshape(3, 3 * in_channels, OUT_CH))
    params['wd'] = jnp.stack(wd, axis=0).astype(jnp.bfloat16)
    # Concat 1x1 conv split into 5 chunks (chunk 0 multiplies the pooled y1).
    w6 = conv_w(keys[5], 1, 1, 5 * OUT_CH, OUT_CH).reshape(5 * OUT_CH, OUT_CH)
    params['w6'] = (w6 * scales[5]).reshape(5, OUT_CH, OUT_CH).astype(jnp.bfloat16)
    params['b1'] = shifts[0]
    params['b2'] = shifts[1]
    params['bd'] = jnp.stack([shifts[2], shifts[3], shifts[4]], axis=0)
    params['b6'] = shifts[5]
    return params


# ----------------------------------------------------------------------------
# Forward
# ----------------------------------------------------------------------------
def aspp_forward(x_nchw, params):
    n, c, h, w = x_nchw.shape
    h_pad = _round_up(h, TH)
    pad = MAX_DIL

    # NCHW -> NHWC bf16 for the MXU.
    # TODO(synk): keep NHWC end-to-end in a real pipeline to avoid this
    # full-tensor transpose round trip (and the one at the exit).
    x = jnp.transpose(x_nchw, (0, 2, 3, 1)).astype(jnp.bfloat16)

    # Branch 1: AdaptiveAvgPool2d(1) -> 1x1 conv -> BN -> ReLU.  The bilinear
    # upsample of a 1x1 map (align_corners=False) is a pure broadcast, so the
    # whole branch collapses to a per-batch bias of the final concat conv.
    # Sizes are (N,C)/(N,256): plain XLA, no Pallas kernel needed.
    pooled = jnp.mean(x_nchw, axis=(2, 3)).astype(jnp.bfloat16)        # (N, C)
    y1 = jnp.maximum(
        jnp.dot(pooled, params['w1'], preferred_element_type=jnp.float32)
        + params['b1'], 0.0)
    bias = (jnp.dot(y1.astype(jnp.bfloat16), params['w6'][0],
                    preferred_element_type=jnp.float32)
            + params['b6']).reshape(n, 1, OUT_CH)

    # One shared zero-padded tensor feeds the 1x1 branch and all three dilated
    # branches (pad = MAX_DIL; extra bottom rows cover the h -> h_pad tiling).
    xp = jnp.pad(x, ((0, 0), (pad, pad + h_pad - h), (pad, pad), (0, 0)))

    out = aspp_fused(xp, params['w2'], params['wd'], params['w6'][1:],
                     params['b2'], params['bd'], bias, h_pad, w)
    out = out[:, :h]                                  # drop padded output rows
    return jnp.transpose(out, (0, 3, 1, 2))           # NCHW f32


if __name__ == "__main__":
    key = jax.random.PRNGKey(0)
    k_x, k_p = jax.random.split(key)

    N, C_IN, H, W = 2, 4, 16, 16
    x = jax.random.normal(k_x, (N, C_IN, H, W), jnp.float32)
    params = init_aspp_params(k_p, C_IN)

    out = jax.jit(aspp_forward)(x, params)
    out = jax.block_until_ready(out)

    assert out.shape == (N, OUT_CH, H, W), out.shape
    assert out.dtype == jnp.float32
    assert bool(jnp.all(jnp.isfinite(out)))
    print("KERNEL_OK")
</pallas_src>

<mosaic_0001>
module attributes {stable_mosaic.version = 11 : i64} {
  func.func @_aspp_fused_kernel(%arg0: i32, %arg1: i32, %arg2: memref<1x6x52x4xbf16, #tpu.memory_space<vmem>>, %arg3: memref<1x6x52x4xbf16, #tpu.memory_space<vmem>>, %arg4: memref<1x6x52x4xbf16, #tpu.memory_space<vmem>>, %arg5: memref<1x6x52x4xbf16, #tpu.memory_space<vmem>>, %arg6: memref<1x6x52x4xbf16, #tpu.memory_space<vmem>>, %arg7: memref<1x6x52x4xbf16, #tpu.memory_space<vmem>>, %arg8: memref<1x6x52x4xbf16, #tpu.memory_space<vmem>>, %arg9: memref<4x256xbf16, #tpu.memory_space<vmem>>, %arg10: memref<3x3x12x256xbf16, #tpu.memory_space<vmem>>, %arg11: memref<4x256x256xbf16, #tpu.memory_space<vmem>>, %arg12: memref<1x256xf32, #tpu.memory_space<vmem>>, %arg13: memref<3x1x256xf32, #tpu.memory_space<vmem>>, %arg14: memref<1x1x256xf32, #tpu.memory_space<vmem>>, %arg15: memref<1x6x16x256xf32, #tpu.memory_space<vmem>>, %arg16: memref<96x256xf32, #tpu.memory_space<vmem>>) attributes {dimension_semantics = [#tpu.dimension_semantics<parallel>, #tpu.dimension_semantics<parallel>], iteration_bounds = array<i64: 2, 3>, scalar_prefetch = 0 : i64, scratch_operands = 1 : i64, tpu.core_type = #tpu.core_type<tc>, window_params = [{transform_indices = @transform_0, window_bounds = array<i64: 1, 6, 52, 4>}, {transform_indices = @transform_1, window_bounds = array<i64: 1, 6, 52, 4>}, {transform_indices = @transform_2, window_bounds = array<i64: 1, 6, 52, 4>}, {transform_indices = @transform_3, window_bounds = array<i64: 1, 6, 52, 4>}, {transform_indices = @transform_4, window_bounds = array<i64: 1, 6, 52, 4>}, {transform_indices = @transform_5, window_bounds = array<i64: 1, 6, 52, 4>}, {transform_indices = @transform_6, window_bounds = array<i64: 1, 6, 52, 4>}, {pipeline_mode = #tpu.pipeline_mode<synchronous>, transform_indices = @transform_7, window_bounds = array<i64: 4, 256>}, {pipeline_mode = #tpu.pipeline_mode<synchronous>, transform_indices = @transform_8, window_bounds = array<i64: 3, 3, 12, 256>}, {pipeline_mode = #tpu.pipeline_mode<synchronous>, transform_indices = @transform_9, window_bounds = array<i64: 4, 256, 256>}, {pipeline_mode = #tpu.pipeline_mode<synchronous>, transform_indices = @transform_10, window_bounds = array<i64: 1, 256>}, {pipeline_mode = #tpu.pipeline_mode<synchronous>, transform_indices = @transform_11, window_bounds = array<i64: 3, 1, 256>}, {transform_indices = @transform_12, window_bounds = array<i64: 1, 1, 256>}, {transform_indices = @transform_13, window_bounds = array<i64: 1, 6, 16, 256>}]} {
    %c0 = arith.constant 0 : index
    %c0_0 = arith.constant 0 : index
    %c0_1 = arith.constant 0 : index
    %c0_2 = arith.constant 0 : index
    %0 = vector.load %arg2[%c0, %c0_0, %c0_1, %c0_2] : memref<1x6x52x4xbf16, #tpu.memory_space<vmem>>, vector<1x6x52x4xbf16>
    %1 = vector.shape_cast %0 : vector<1x6x52x4xbf16> to vector<6x52x4xbf16>
    %c0_3 = arith.constant 0 : index
    %c0_4 = arith.constant 0 : index
    %c0_5 = arith.constant 0 : index
    %c0_6 = arith.constant 0 : index
    %2 = vector.load %arg3[%c0_3, %c0_4, %c0_5, %c0_6] : memref<1x6x52x4xbf16, #tpu.memory_space<vmem>>, vector<1x6x52x4xbf16>
    %3 = vector.shape_cast %2 : vector<1x6x52x4xbf16> to vector<6x52x4xbf16>
    %c0_7 = arith.constant 0 : index
    %c0_8 = arith.constant 0 : index
    %c0_9 = arith.constant 0 : index
    %c0_10 = arith.constant 0 : index
    %4 = vector.load %arg4[%c0_7, %c0_8, %c0_9, %c0_10] : memref<1x6x52x4xbf16, #tpu.memory_space<vmem>>, vector<1x6x52x4xbf16>
    %5 = vector.shape_cast %4 : vector<1x6x52x4xbf16> to vector<6x52x4xbf16>
    %c0_11 = arith.constant 0 : index
    %c0_12 = arith.constant 0 : index
    %c0_13 = arith.constant 0 : index
    %c0_14 = arith.constant 0 : index
    %6 = vector.load %arg5[%c0_11, %c0_12, %c0_13, %c0_14] : memref<1x6x52x4xbf16, #tpu.memory_space<vmem>>, vector<1x6x52x4xbf16>
    %7 = vector.shape_cast %6 : vector<1x6x52x4xbf16> to vector<6x52x4xbf16>
    %c0_15 = arith.constant 0 : index
    %c0_16 = arith.constant 0 : index
    %c0_17 = arith.constant 0 : index
    %c0_18 = arith.constant 0 : index
    %8 = vector.load %arg6[%c0_15, %c0_16, %c0_17, %c0_18] : memref<1x6x52x4xbf16, #tpu.memory_space<vmem>>, vector<1x6x52x4xbf16>
    %9 = vector.shape_cast %8 : vector<1x6x52x4xbf16> to vector<6x52x4xbf16>
    %c0_19 = arith.constant 0 : index
    %c0_20 = arith.constant 0 : index
    %c0_21 = arith.constant 0 : index
    %c0_22 = arith.constant 0 : index
    %10 = vector.load %arg7[%c0_19, %c0_20, %c0_21, %c0_22] : memref<1x6x52x4xbf16, #tpu.memory_space<vmem>>, vector<1x6x52x4xbf16>
    %11 = vector.shape_cast %10 : vector<1x6x52x4xbf16> to vector<6x52x4xbf16>
    %c0_23 = arith.constant 0 : index
    %c0_24 = arith.constant 0 : index
    %c0_25 = arith.constant 0 : index
    %c0_26 = arith.constant 0 : index
    %12 = vector.load %arg8[%c0_23, %c0_24, %c0_25, %c0_26] : memref<1x6x52x4xbf16, #tpu.memory_space<vmem>>, vector<1x6x52x4xbf16>
    %13 = vector.shape_cast %12 : vector<1x6x52x4xbf16> to vector<6x52x4xbf16>
    %14 = vector.extract_strided_slice %7 {offsets = [0, 18, 0], sizes = [6, 16, 4], strides = [1, 1, 1]} : vector<6x52x4xbf16> to vector<6x16x4xbf16>
    %15 = vector.shape_cast %14 : vector<6x16x4xbf16> to vector<96x4xbf16>
    %c0_27 = arith.constant 0 : index
    %c0_28 = arith.constant 0 : index
    %16 = vector.load %arg9[%c0_27, %c0_28] : memref<4x256xbf16, #tpu.memory_space<vmem>>, vector<4x256xbf16>
    %cst = arith.constant dense<0.000000e+00> : vector<96x256xf32>
    %17 = tpu.matmul %15, %16, %cst {dimension_numbers = #tpu.dot_dimension_numbers<[1], [0], [0], [1], [0, 0, 1, 1], [], []>} : vector<96x4xbf16>, vector<4x256xbf16>, vector<96x256xf32> -> vector<96x256xf32>
    %c0_29 = arith.constant 0 : index
    %c0_30 = arith.constant 0 : index
    %18 = vector.load %arg12[%c0_29, %c0_30] : memref<1x256xf32, #tpu.memory_space<vmem>>, vector<1x256xf32>
    %19 = vector.broadcast %18 : vector<1x256xf32> to vector<96x256xf32>
    %20 = arith.addf %17, %19 : vector<96x256xf32>
    %cst_31 = arith.constant 0.000000e+00 : f32
    %21 = vector.broadcast %cst_31 : f32 to vector<96x256xf32>
    %22 = arith.maximumf %20, %21 : vector<96x256xf32>
    %23 = arith.truncf %22 : vector<96x256xf32> to vector<96x256xbf16>
    %c0_32 = arith.constant 0 : index
    %c0_33 = arith.constant 0 : index
    %c0_34 = arith.constant 0 : index
    %24 = vector.load %arg11[%c0_32, %c0_33, %c0_34] : memref<4x256x256xbf16, #tpu.memory_space<vmem>>, vector<1x256x256xbf16>
    %25 = vector.shape_cast %24 : vector<1x256x256xbf16> to vector<256x256xbf16>
    %cst_35 = arith.constant dense<0.000000e+00> : vector<96x256xf32>
    %26 = tpu.matmul %23, %25, %cst_35 {dimension_numbers = #tpu.dot_dimension_numbers<[1], [0], [0], [1], [0, 0, 1, 1], [], []>} : vector<96x256xbf16>, vector<256x256xbf16>, vector<96x256xf32> -> vector<96x256xf32>
    %c0_36 = arith.constant 0 : index
    %c0_37 = arith.constant 0 : index
    %27 = vector.load %arg16[%c0_36, %c0_37] : memref<96x256xf32, #tpu.memory_space<vmem>>, vector<96x256xf32>
    tpu.vector_store %arg16[%c0_36, %c0_37], %26 {strides = array<i32>} : memref<96x256xf32, #tpu.memory_space<vmem>>, vector<96x256xf32>,
    %28 = vector.extract_strided_slice %5 {offsets = [0, 12, 0], sizes = [6, 16, 4], strides = [1, 1, 1]} : vector<6x52x4xbf16> to vector<6x16x4xbf16>
    %29 = vector.extract_strided_slice %5 {offsets = [0, 18, 0], sizes = [6, 16, 4], strides = [1, 1, 1]} : vector<6x52x4xbf16> to vector<6x16x4xbf16>
    %30 = vector.extract_strided_slice %5 {offsets = [0, 24, 0], sizes = [6, 16, 4], strides = [1, 1, 1]} : vector<6x52x4xbf16> to vector<6x16x4xbf16>
    %31 = tpu.concatenate %28, %29, %30 in 2 : vector<6x16x4xbf16>, vector<6x16x4xbf16>, vector<6x16x4xbf16> -> vector<6x16x12xbf16>
    %32 = vector.shape_cast %31 : vector<6x16x12xbf16> to vector<96x12xbf16>
    %c0_38 = arith.constant 0 : index
    %c0_39 = arith.constant 0 : index
    %c0_40 = arith.constant 0 : index
    %c0_41 = arith.constant 0 : index
    %33 = vector.load %arg10[%c0_38, %c0_39, %c0_40, %c0_41] : memref<3x3x12x256xbf16, #tpu.memory_space<vmem>>, vector<1x1x12x256xbf16>
    %34 = vector.shape_cast %33 : vector<1x1x12x256xbf16> to vector<12x256xbf16>
    %cst_42 = arith.constant dense<0.000000e+00> : vector<96x256xf32>
    %35 = tpu.matmul %32, %34, %cst_42 {dimension_numbers = #tpu.dot_dimension_numbers<[1], [0], [0], [1], [0, 0, 1, 1], [], []>} : vector<96x12xbf16>, vector<12x256xbf16>, vector<96x256xf32> -> vector<96x256xf32>
    %36 = vector.extract_strided_slice %7 {offsets = [0, 12, 0], sizes = [6, 16, 4], strides = [1, 1, 1]} : vector<6x52x4xbf16> to vector<6x16x4xbf16>
    %37 = vector.extract_strided_slice %7 {offsets = [0, 18, 0], sizes = [6, 16, 4], strides = [1, 1, 1]} : vector<6x52x4xbf16> to vector<6x16x4xbf16>
    %38 = vector.extract_strided_slice %7 {offsets = [0, 24, 0], sizes = [6, 16, 4], strides = [1, 1, 1]} : vector<6x52x4xbf16> to vector<6x16x4xbf16>
    %39 = tpu.concatenate %36, %37, %38 in 2 : vector<6x16x4xbf16>, vector<6x16x4xbf16>, vector<6x16x4xbf16> -> vector<6x16x12xbf16>
    %40 = vector.shape_cast %39 : vector<6x16x12xbf16> to vector<96x12xbf16>
    %c0_43 = arith.constant 0 : index
    %c1 = arith.constant 1 : index
    %c0_44 = arith.constant 0 : index
    %c0_45 = arith.constant 0 : index
    %41 = vector.load %arg10[%c0_43, %c1, %c0_44, %c0_45] : memref<3x3x12x256xbf16, #tpu.memory_space<vmem>>, vector<1x1x12x256xbf16>
    %42 = vector.shape_cast %41 : vector<1x1x12x256xbf16> to vector<12x256xbf16>
    %cst_46 = arith.constant dense<0.000000e+00> : vector<96x256xf32>
    %43 = tpu.matmul %40, %42, %cst_46 {dimension_numbers = #tpu.dot_dimension_numbers<[1], [0], [0], [1], [0, 0, 1, 1], [], []>} : vector<96x12xbf16>, vector<12x256xbf16>, vector<96x256xf32> -> vector<96x256xf32>
    %44 = arith.addf %35, %43 : vector<96x256xf32>
    %45 = vector.extract_strided_slice %9 {offsets = [0, 12, 0], sizes = [6, 16, 4], strides = [1, 1, 1]} : vector<6x52x4xbf16> to vector<6x16x4xbf16>
    %46 = vector.extract_strided_slice %9 {offsets = [0, 18, 0], sizes = [6, 16, 4], strides = [1, 1, 1]} : vector<6x52x4xbf16> to vector<6x16x4xbf16>
    %47 = vector.extract_strided_slice %9 {offsets = [0, 24, 0], sizes = [6, 16, 4], strides = [1, 1, 1]} : vector<6x52x4xbf16> to vector<6x16x4xbf16>
    %48 = tpu.concatenate %45, %46, %47 in 2 : vector<6x16x4xbf16>, vector<6x16x4xbf16>, vector<6x16x4xbf16> -> vector<6x16x12xbf16>
    %49 = vector.shape_cast %48 : vector<6x16x12xbf16> to vector<96x12xbf16>
    %c0_47 = arith.constant 0 : index
    %c2 = arith.constant 2 : index
    %c0_48 = arith.constant 0 : index
    %c0_49 = arith.constant 0 : index
    %50 = vector.load %arg10[%c0_47, %c2, %c0_48, %c0_49] : memref<3x3x12x256xbf16, #tpu.memory_space<vmem>>, vector<1x1x12x256xbf16>
    %51 = vector.shape_cast %50 : vector<1x1x12x256xbf16> to vector<12x256xbf16>
    %cst_50 = arith.constant dense<0.000000e+00> : vector<96x256xf32>
    %52 = tpu.matmul %49, %51, %cst_50 {dimension_numbers = #tpu.dot_dimension_numbers<[1], [0], [0], [1], [0, 0, 1, 1], [], []>} : vector<96x12xbf16>, vector<12x256xbf16>, vector<96x256xf32> -> vector<96x256xf32>
    %53 = arith.addf %44, %52 : vector<96x256xf32>
    %c0_51 = arith.constant 0 : index
    %c0_52 = arith.constant 0 : index
    %c0_53 = arith.constant 0 : index
    %54 = vector.load %arg13[%c0_51, %c0_52, %c0_53] : memref<3x1x256xf32, #tpu.memory_space<vmem>>, vector<1x1x256xf32>
    %55 = vector.shape_cast %54 : vector<1x1x256xf32> to vector<1x256xf32>
    %56 = vector.broadcast %55 : vector<1x256xf32> to vector<96x256xf32>
    %57 = arith.addf %53, %56 : vector<96x256xf32>
    %cst_54 = arith.constant 0.000000e+00 : f32
    %58 = vector.broadcast %cst_54 : f32 to vector<96x256xf32>
    %59 = arith.maximumf %57, %58 : vector<96x256xf32>
    %60 = arith.truncf %59 : vector<96x256xf32> to vector<96x256xbf16>
    %c0_55 = arith.constant 0 : index
    %c0_56 = arith.constant 0 : index
    %61 = vector.load %arg16[%c0_55, %c0_56] : memref<96x256xf32, #tpu.memory_space<vmem>>, vector<96x256xf32>
    %c1_57 = arith.constant 1 : index
    %c0_58 = arith.constant 0 : index
    %c0_59 = arith.constant 0 : index
    %62 = vector.load %arg11[%c1_57, %c0_58, %c0_59] : memref<4x256x256xbf16, #tpu.memory_space<vmem>>, vector<1x256x256xbf16>
    %63 = vector.shape_cast %62 : vector<1x256x256xbf16> to vector<256x256xbf16>
    %cst_60 = arith.constant dense<0.000000e+00> : vector<96x256xf32>
    %64 = tpu.matmul %60, %63, %cst_60 {dimension_numbers = #tpu.dot_dimension_numbers<[1], [0], [0], [1], [0, 0, 1, 1], [], []>} : vector<96x256xbf16>, vector<256x256xbf16>, vector<96x256xf32> -> vector<96x256xf32>
    %65 = arith.addf %61, %64 : vector<96x256xf32>
    %c0_61 = arith.constant 0 : index
    %c0_62 = arith.constant 0 : index
    %66 = vector.load %arg16[%c0_61, %c0_62] : memref<96x256xf32, #tpu.memory_space<vmem>>, vector<96x256xf32>
    tpu.vector_store %arg16[%c0_61, %c0_62], %65 {strides = array<i32>} : memref<96x256xf32, #tpu.memory_space<vmem>>, vector<96x256xf32>,
    %67 = vector.extract_strided_slice %3 {offsets = [0, 6, 0], sizes = [6, 16, 4], strides = [1, 1, 1]} : vector<6x52x4xbf16> to vector<6x16x4xbf16>
    %68 = vector.extract_strided_slice %3 {offsets = [0, 18, 0], sizes = [6, 16, 4], strides = [1, 1, 1]} : vector<6x52x4xbf16> to vector<6x16x4xbf16>
    %69 = vector.extract_strided_slice %3 {offsets = [0, 30, 0], sizes = [6, 16, 4], strides = [1, 1, 1]} : vector<6x52x4xbf16> to vector<6x16x4xbf16>
    %70 = tpu.concatenate %67, %68, %69 in 2 : vector<6x16x4xbf16>, vector<6x16x4xbf16>, vector<6x16x4xbf16> -> vector<6x16x12xbf16>
    %71 = vector.shape_cast %70 : vector<6x16x12xbf16> to vector<96x12xbf16>
    %c1_63 = arith.constant 1 : index
    %c0_64 = arith.constant 0 : index
    %c0_65 = arith.constant 0 : index
    %c0_66 = arith.constant 0 : index
    %72 = vector.load %arg10[%c1_63, %c0_64, %c0_65, %c0_66] : memref<3x3x12x256xbf16, #tpu.memory_space<vmem>>, vector<1x1x12x256xbf16>
    %73 = vector.shape_cast %72 : vector<1x1x12x256xbf16> to vector<12x256xbf16>
    %cst_67 = arith.constant dense<0.000000e+00> : vector<96x256xf32>
    %74 = tpu.matmul %71, %73, %cst_67 {dimension_numbers = #tpu.dot_dimension_numbers<[1], [0], [0], [1], [0, 0, 1, 1], [], []>} : vector<96x12xbf16>, vector<12x256xbf16>, vector<96x256xf32> -> vector<96x256xf32>
    %75 = vector.extract_strided_slice %7 {offsets = [0, 6, 0], sizes = [6, 16, 4], strides = [1, 1, 1]} : vector<6x52x4xbf16> to vector<6x16x4xbf16>
    %76 = vector.extract_strided_slice %7 {offsets = [0, 18, 0], sizes = [6, 16, 4], strides = [1, 1, 1]} : vector<6x52x4xbf16> to vector<6x16x4xbf16>
    %77 = vector.extract_strided_slice %7 {offsets = [0, 30, 0], sizes = [6, 16, 4], strides = [1, 1, 1]} : vector<6x52x4xbf16> to vector<6x16x4xbf16>
    %78 = tpu.concatenate %75, %76, %77 in 2 : vector<6x16x4xbf16>, vector<6x16x4xbf16>, vector<6x16x4xbf16> -> vector<6x16x12xbf16>
    %79 = vector.shape_cast %78 : vector<6x16x12xbf16> to vector<96x12xbf16>
    %c1_68 = arith.constant 1 : index
    %c1_69 = arith.constant 1 : index
    %c0_70 = arith.constant 0 : index
    %c0_71 = arith.constant 0 : index
    %80 = vector.load %arg10[%c1_68, %c1_69, %c0_70, %c0_71] : memref<3x3x12x256xbf16, #tpu.memory_space<vmem>>, vector<1x1x12x256xbf16>
    %81 = vector.shape_cast %80 : vector<1x1x12x256xbf16> to vector<12x256xbf16>
    %cst_72 = arith.constant dense<0.000000e+00> : vector<96x256xf32>
    %82 = tpu.matmul %79, %81, %cst_72 {dimension_numbers = #tpu.dot_dimension_numbers<[1], [0], [0], [1], [0, 0, 1, 1], [], []>} : vector<96x12xbf16>, vector<12x256xbf16>, vector<96x256xf32> -> vector<96x256xf32>
    %83 = arith.addf %74, %82 : vector<96x256xf32>
    %84 = vector.extract_strided_slice %11 {offsets = [0, 6, 0], sizes = [6, 16, 4], strides = [1, 1, 1]} : vector<6x52x4xbf16> to vector<6x16x4xbf16>
    %85 = vector.extract_strided_slice %11 {offsets = [0, 18, 0], sizes = [6, 16, 4], strides = [1, 1, 1]} : vector<6x52x4xbf16> to vector<6x16x4xbf16>
    %86 = vector.extract_strided_slice %11 {offsets = [0, 30, 0], sizes = [6, 16, 4], strides = [1, 1, 1]} : vector<6x52x4xbf16> to vector<6x16x4xbf16>
    %87 = tpu.concatenate %84, %85, %86 in 2 : vector<6x16x4xbf16>, vector<6x16x4xbf16>, vector<6x16x4xbf16> -> vector<6x16x12xbf16>
    %88 = vector.shape_cast %87 : vector<6x16x12xbf16> to vector<96x12xbf16>
    %c1_73 = arith.constant 1 : index
    %c2_74 = arith.constant 2 : index
    %c0_75 = arith.constant 0 : index
    %c0_76 = arith.constant 0 : index
    %89 = vector.load %arg10[%c1_73, %c2_74, %c0_75, %c0_76] : memref<3x3x12x256xbf16, #tpu.memory_space<vmem>>, vector<1x1x12x256xbf16>
    %90 = vector.shape_cast %89 : vector<1x1x12x256xbf16> to vector<12x256xbf16>
    %cst_77 = arith.constant dense<0.000000e+00> : vector<96x256xf32>
    %91 = tpu.matmul %88, %90, %cst_77 {dimension_numbers = #tpu.dot_dimension_numbers<[1], [0], [0], [1], [0, 0, 1, 1], [], []>} : vector<96x12xbf16>, vector<12x256xbf16>, vector<96x256xf32> -> vector<96x256xf32>
    %92 = arith.addf %83, %91 : vector<96x256xf32>
    %c1_78 = arith.constant 1 : index
    %c0_79 = arith.constant 0 : index
    %c0_80 = arith.constant 0 : index
    %93 = vector.load %arg13[%c1_78, %c0_79, %c0_80] : memref<3x1x256xf32, #tpu.memory_space<vmem>>, vector<1x1x256xf32>
    %94 = vector.shape_cast %93 : vector<1x1x256xf32> to vector<1x256xf32>
    %95 = vector.broadcast %94 : vector<1x256xf32> to vector<96x256xf32>
    %96 = arith.addf %92, %95 : vector<96x256xf32>
    %cst_81 = arith.constant 0.000000e+00 : f32
    %97 = vector.broadcast %cst_81 : f32 to vector<96x256xf32>
    %98 = arith.maximumf %96, %97 : vector<96x256xf32>
    %99 = arith.truncf %98 : vector<96x256xf32> to vector<96x256xbf16>
    %c0_82 = arith.constant 0 : index
    %c0_83 = arith.constant 0 : index
    %100 = vector.load %arg16[%c0_82, %c0_83] : memref<96x256xf32, #tpu.memory_space<vmem>>, vector<96x256xf32>
    %c2_84 = arith.constant 2 : index
    %c0_85 = arith.constant 0 : index
    %c0_86 = arith.constant 0 : index
    %101 = vector.load %arg11[%c2_84, %c0_85, %c0_86] : memref<4x256x256xbf16, #tpu.memory_space<vmem>>, vector<1x256x256xbf16>
    %102 = vector.shape_cast %101 : vector<1x256x256xbf16> to vector<256x256xbf16>
    %cst_87 = arith.constant dense<0.000000e+00> : vector<96x256xf32>
    %103 = tpu.matmul %99, %102, %cst_87 {dimension_numbers = #tpu.dot_dimension_numbers<[1], [0], [0], [1], [0, 0, 1, 1], [], []>} : vector<96x256xbf16>, vector<256x256xbf16>, vector<96x256xf32> -> vector<96x256xf32>
    %104 = arith.addf %100, %103 : vector<96x256xf32>
    %c0_88 = arith.constant 0 : index
    %c0_89 = arith.constant 0 : index
    %105 = vector.load %arg16[%c0_88, %c0_89] : memref<96x256xf32, #tpu.memory_space<vmem>>, vector<96x256xf32>
    tpu.vector_store %arg16[%c0_88, %c0_89], %104 {strides = array<i32>} : memref<96x256xf32, #tpu.memory_space<vmem>>, vector<96x256xf32>,
    %106 = vector.extract_strided_slice %1 {offsets = [0, 0, 0], sizes = [6, 16, 4], strides = [1, 1, 1]} : vector<6x52x4xbf16> to vector<6x16x4xbf16>
    %107 = vector.extract_strided_slice %1 {offsets = [0, 18, 0], sizes = [6, 16, 4], strides = [1, 1, 1]} : vector<6x52x4xbf16> to vector<6x16x4xbf16>
    %108 = vector.extract_strided_slice %1 {offsets = [0, 36, 0], sizes = [6, 16, 4], strides = [1, 1, 1]} : vector<6x52x4xbf16> to vector<6x16x4xbf16>
    %109 = tpu.concatenate %106, %107, %108 in 2 : vector<6x16x4xbf16>, vector<6x16x4xbf16>, vector<6x16x4xbf16> -> vector<6x16x12xbf16>
    %110 = vector.shape_cast %109 : vector<6x16x12xbf16> to vector<96x12xbf16>
    %c2_90 = arith.constant 2 : index
    %c0_91 = arith.constant 0 : index
    %c0_92 = arith.constant 0 : index
    %c0_93 = arith.constant 0 : index
    %111 = vector.load %arg10[%c2_90, %c0_91, %c0_92, %c0_93] : memref<3x3x12x256xbf16, #tpu.memory_space<vmem>>, vector<1x1x12x256xbf16>
    %112 = vector.shape_cast %111 : vector<1x1x12x256xbf16> to vector<12x256xbf16>
    %cst_94 = arith.constant dense<0.000000e+00> : vector<96x256xf32>
    %113 = tpu.matmul %110, %112, %cst_94 {dimension_numbers = #tpu.dot_dimension_numbers<[1], [0], [0], [1], [0, 0, 1, 1], [], []>} : vector<96x12xbf16>, vector<12x256xbf16>, vector<96x256xf32> -> vector<96x256xf32>
    %114 = vector.extract_strided_slice %7 {offsets = [0, 0, 0], sizes = [6, 16, 4], strides = [1, 1, 1]} : vector<6x52x4xbf16> to vector<6x16x4xbf16>
    %115 = vector.extract_strided_slice %7 {offsets = [0, 18, 0], sizes = [6, 16, 4], strides = [1, 1, 1]} : vector<6x52x4xbf16> to vector<6x16x4xbf16>
    %116 = vector.extract_strided_slice %7 {offsets = [0, 36, 0], sizes = [6, 16, 4], strides = [1, 1, 1]} : vector<6x52x4xbf16> to vector<6x16x4xbf16>
    %117 = tpu.concatenate %114, %115, %116 in 2 : vector<6x16x4xbf16>, vector<6x16x4xbf16>, vector<6x16x4xbf16> -> vector<6x16x12xbf16>
    %118 = vector.shape_cast %117 : vector<6x16x12xbf16> to vector<96x12xbf16>
    %c2_95 = arith.constant 2 : index
    %c1_96 = arith.constant 1 : index
    %c0_97 = arith.constant 0 : index
    %c0_98 = arith.constant 0 : index
    %119 = vector.load %arg10[%c2_95, %c1_96, %c0_97, %c0_98] : memref<3x3x12x256xbf16, #tpu.memory_space<vmem>>, vector<1x1x12x256xbf16>
    %120 = vector.shape_cast %119 : vector<1x1x12x256xbf16> to vector<12x256xbf16>
    %cst_99 = arith.constant dense<0.000000e+00> : vector<96x256xf32>
    %121 = tpu.matmul %118, %120, %cst_99 {dimension_numbers = #tpu.dot_dimension_numbers<[1], [0], [0], [1], [0, 0, 1, 1], [], []>} : vector<96x12xbf16>, vector<12x256xbf16>, vector<96x256xf32> -> vector<96x256xf32>
    %122 = arith.addf %113, %121 : vector<96x256xf32>
    %123 = vector.extract_strided_slice %13 {offsets = [0, 0, 0], sizes = [6, 16, 4], strides = [1, 1, 1]} : vector<6x52x4xbf16> to vector<6x16x4xbf16>
    %124 = vector.extract_strided_slice %13 {offsets = [0, 18, 0], sizes = [6, 16, 4], strides = [1, 1, 1]} : vector<6x52x4xbf16> to vector<6x16x4xbf16>
    %125 = vector.extract_strided_slice %13 {offsets = [0, 36, 0], sizes = [6, 16, 4], strides = [1, 1, 1]} : vector<6x52x4xbf16> to vector<6x16x4xbf16>
    %126 = tpu.concatenate %123, %124, %125 in 2 : vector<6x16x4xbf16>, vector<6x16x4xbf16>, vector<6x16x4xbf16> -> vector<6x16x12xbf16>
    %127 = vector.shape_cast %126 : vector<6x16x12xbf16> to vector<96x12xbf16>
    %c2_100 = arith.constant 2 : index
    %c2_101 = arith.constant 2 : index
    %c0_102 = arith.constant 0 : index
    %c0_103 = arith.constant 0 : index
    %128 = vector.load %arg10[%c2_100, %c2_101, %c0_102, %c0_103] : memref<3x3x12x256xbf16, #tpu.memory_space<vmem>>, vector<1x1x12x256xbf16>
    %129 = vector.shape_cast %128 : vector<1x1x12x256xbf16> to vector<12x256xbf16>
    %cst_104 = arith.constant dense<0.000000e+00> : vector<96x256xf32>
    %130 = tpu.matmul %127, %129, %cst_104 {dimension_numbers = #tpu.dot_dimension_numbers<[1], [0], [0], [1], [0, 0, 1, 1], [], []>} : vector<96x12xbf16>, vector<12x256xbf16>, vector<96x256xf32> -> vector<96x256xf32>
    %131 = arith.addf %122, %130 : vector<96x256xf32>
    %c2_105 = arith.constant 2 : index
    %c0_106 = arith.constant 0 : index
    %c0_107 = arith.constant 0 : index
    %132 = vector.load %arg13[%c2_105, %c0_106, %c0_107] : memref<3x1x256xf32, #tpu.memory_space<vmem>>, vector<1x1x256xf32>
    %133 = vector.shape_cast %132 : vector<1x1x256xf32> to vector<1x256xf32>
    %134 = vector.broadcast %133 : vector<1x256xf32> to vector<96x256xf32>
    %135 = arith.addf %131, %134 : vector<96x256xf32>
    %cst_108 = arith.constant 0.000000e+00 : f32
    %136 = vector.broadcast %cst_108 : f32 to vector<96x256xf32>
    %137 = arith.maximumf %135, %136 : vector<96x256xf32>
    %138 = arith.truncf %137 : vector<96x256xf32> to vector<96x256xbf16>
    %c0_109 = arith.constant 0 : index
    %c0_110 = arith.constant 0 : index
    %139 = vector.load %arg16[%c0_109, %c0_110] : memref<96x256xf32, #tpu.memory_space<vmem>>, vector<96x256xf32>
    %c3 = arith.constant 3 : index
    %c0_111 = arith.constant 0 : index
    %c0_112 = arith.constant 0 : index
    %140 = vector.load %arg11[%c3, %c0_111, %c0_112] : memref<4x256x256xbf16, #tpu.memory_space<vmem>>, vector<1x256x256xbf16>
    %141 = vector.shape_cast %140 : vector<1x256x256xbf16> to vector<256x256xbf16>
    %cst_113 = arith.constant dense<0.000000e+00> : vector<96x256xf32>
    %142 = tpu.matmul %138, %141, %cst_113 {dimension_numbers = #tpu.dot_dimension_numbers<[1], [0], [0], [1], [0, 0, 1, 1], [], []>} : vector<96x256xbf16>, vector<256x256xbf16>, vector<96x256xf32> -> vector<96x256xf32>
    %143 = arith.addf %139, %142 : vector<96x256xf32>
    %c0_114 = arith.constant 0 : index
    %c0_115 = arith.constant 0 : index
    %144 = vector.load %arg16[%c0_114, %c0_115] : memref<96x256xf32, #tpu.memory_space<vmem>>, vector<96x256xf32>
    tpu.vector_store %arg16[%c0_114, %c0_115], %143 {strides = array<i32>} : memref<96x256xf32, #tpu.memory_space<vmem>>, vector<96x256xf32>,
    %c0_116 = arith.constant 0 : index
    %c0_117 = arith.constant 0 : index
    %145 = vector.load %arg16[%c0_116, %c0_117] : memref<96x256xf32, #tpu.memory_space<vmem>>, vector<96x256xf32>
    %c0_118 = arith.constant 0 : index
    %c0_119 = arith.constant 0 : index
    %c0_120 = arith.constant 0 : index
    %146 = vector.load %arg14[%c0_118, %c0_119, %c0_120] : memref<1x1x256xf32, #tpu.memory_space<vmem>>, vector<1x1x256xf32>
    %147 = vector.shape_cast %146 : vector<1x1x256xf32> to vector<1x256xf32>
    %148 = vector.broadcast %147 : vector<1x256xf32> to vector<96x256xf32>
    %149 = arith.addf %145, %148 : vector<96x256xf32>
    %cst_121 = arith.constant 0.000000e+00 : f32
    %150 = vector.broadcast %cst_121 : f32 to vector<96x256xf32>
    %151 = arith.maximumf %149, %150 : vector<96x256xf32>
    %152 = vector.shape_cast %151 : vector<96x256xf32> to vector<6x16x256xf32>
    %c0_122 = arith.constant 0 : index
    %c0_123 = arith.constant 0 : index
    %c0_124 = arith.constant 0 : index
    %c0_125 = arith.constant 0 : index
    %153 = vector.load %arg15[%c0_122, %c0_123, %c0_124, %c0_125] : memref<1x6x16x256xf32, #tpu.memory_space<vmem>>, vector<1x6x16x256xf32>
    %154 = vector.shape_cast %153 : vector<1x6x16x256xf32> to vector<6x16x256xf32>
    %155 = vector.shape_cast %152 : vector<6x16x256xf32> to vector<1x6x16x256xf32>
    tpu.vector_store %arg15[%c0_122, %c0_123, %c0_124, %c0_125], %155 {strides = array<i32>} : memref<1x6x16x256xf32, #tpu.memory_space<vmem>>, vector<1x6x16x256xf32>,
    return
  }
  func.func @transform_0(%arg0: i32, %arg1: i32) -> (i32, i32, i32, i32) {
    %c0_i32 = arith.constant 0 : i32
    %0 = arith.addi %arg1, %c0_i32 : i32
    %c0_i32_0 = arith.constant 0 : i32
    %c0_i32_1 = arith.constant 0 : i32
    %c0_i32_2 = arith.constant 0 : i32
    return %arg0, %0, %c0_i32_0, %c0_i32_1 : i32, i32, i32, i32
  }
  func.func @transform_1(%arg0: i32, %arg1: i32) -> (i32, i32, i32, i32) {
    %c1_i32 = arith.constant 1 : i32
    %0 = arith.addi %arg1, %c1_i32 : i32
    %c0_i32 = arith.constant 0 : i32
    %c0_i32_0 = arith.constant 0 : i32
    %c0_i32_1 = arith.constant 0 : i32
    return %arg0, %0, %c0_i32, %c0_i32_0 : i32, i32, i32, i32
  }
  func.func @transform_2(%arg0: i32, %arg1: i32) -> (i32, i32, i32, i32) {
    %c2_i32 = arith.constant 2 : i32
    %0 = arith.addi %arg1, %c2_i32 : i32
    %c0_i32 = arith.constant 0 : i32
    %c0_i32_0 = arith.constant 0 : i32
    %c0_i32_1 = arith.constant 0 : i32
    return %arg0, %0, %c0_i32, %c0_i32_0 : i32, i32, i32, i32
  }
  func.func @transform_3(%arg0: i32, %arg1: i32) -> (i32, i32, i32, i32) {
    %c3_i32 = arith.constant 3 : i32
    %0 = arith.addi %arg1, %c3_i32 : i32
    %c0_i32 = arith.constant 0 : i32
    %c0_i32_0 = arith.constant 0 : i32
    %c0_i32_1 = arith.constant 0 : i32
    return %arg0, %0, %c0_i32, %c0_i32_0 : i32, i32, i32, i32
  }
  func.func @transform_4(%arg0: i32, %arg1: i32) -> (i32, i32, i32, i32) {
    %c4_i32 = arith.constant 4 : i32
    %0 = arith.addi %arg1, %c4_i32 : i32
    %c0_i32 = arith.constant 0 : i32
    %c0_i32_0 = arith.constant 0 : i32
    %c0_i32_1 = arith.constant 0 : i32
    return %arg0, %0, %c0_i32, %c0_i32_0 : i32, i32, i32, i32
  }
  func.func @transform_5(%arg0: i32, %arg1: i32) -> (i32, i32, i32, i32) {
    %c5_i32 = arith.constant 5 : i32
    %0 = arith.addi %arg1, %c5_i32 : i32
    %c0_i32 = arith.constant 0 : i32
    %c0_i32_0 = arith.constant 0 : i32
    %c0_i32_1 = arith.constant 0 : i32
    return %arg0, %0, %c0_i32, %c0_i32_0 : i32, i32, i32, i32
  }
  func.func @transform_6(%arg0: i32, %arg1: i32) -> (i32, i32, i32, i32) {
    %c6_i32 = arith.constant 6 : i32
    %0 = arith.addi %arg1, %c6_i32 : i32
    %c0_i32 = arith.constant 0 : i32
    %c0_i32_0 = arith.constant 0 : i32
    %c0_i32_1 = arith.constant 0 : i32
    return %arg0, %0, %c0_i32, %c0_i32_0 : i32, i32, i32, i32
  }
  func.func @transform_7(%arg0: i32, %arg1: i32) -> (i32, i32) {
    %c0_i32 = arith.constant 0 : i32
    %c0_i32_0 = arith.constant 0 : i32
    %c0_i32_1 = arith.constant 0 : i32
    return %c0_i32, %c0_i32_0 : i32, i32
  }
  func.func @transform_8(%arg0: i32, %arg1: i32) -> (i32, i32, i32, i32) {
    %c0_i32 = arith.constant 0 : i32
    %c0_i32_0 = arith.constant 0 : i32
    %c0_i32_1 = arith.constant 0 : i32
    %c0_i32_2 = arith.constant 0 : i32
    %c0_i32_3 = arith.constant 0 : i32
    return %c0_i32, %c0_i32_0, %c0_i32_1, %c0_i32_2 : i32, i32, i32, i32
  }
  func.func @transform_9(%arg0: i32, %arg1: i32) -> (i32, i32, i32) {
    %c0_i32 = arith.constant 0 : i32
    %c0_i32_0 = arith.constant 0 : i32
    %c0_i32_1 = arith.constant 0 : i32
    %c0_i32_2 = arith.constant 0 : i32
    return %c0_i32, %c0_i32_0, %c0_i32_1 : i32, i32, i32
  }
  func.func @transform_10(%arg0: i32, %arg1: i32) -> (i32, i32) {
    %c0_i32 = arith.constant 0 : i32
    %c0_i32_0 = arith.constant 0 : i32
    %c0_i32_1 = arith.constant 0 : i32
    return %c0_i32, %c0_i32_0 : i32, i32
  }
  func.func @transform_11(%arg0: i32, %arg1: i32) -> (i32, i32, i32) {
    %c0_i32 = arith.constant 0 : i32
    %c0_i32_0 = arith.constant 0 : i32
    %c0_i32_1 = arith.constant 0 : i32
    %c0_i32_2 = arith.constant 0 : i32
    return %c0_i32, %c0_i32_0, %c0_i32_1 : i32, i32, i32
  }
  func.func @transform_12(%arg0: i32, %arg1: i32) -> (i32, i32, i32) {
    %c0_i32 = arith.constant 0 : i32
    %c0_i32_0 = arith.constant 0 : i32
    %c0_i32_1 = arith.constant 0 : i32
    return %arg0, %c0_i32, %c0_i32_0 : i32, i32, i32
  }
  func.func @transform_13(%arg0: i32, %arg1: i32) -> (i32, i32, i32, i32) {
    %c0_i32 = arith.constant 0 : i32
    %c0_i32_0 = arith.constant 0 : i32
    %c0_i32_1 = arith.constant 0 : i32
    return %arg0, %arg1, %c0_i32, %c0_i32_0 : i32, i32, i32, i32
  }
}

</mosaic_0001>

<llo_original>
// kernel: aspp_forward.1
$region0: #{aspp_forward.1}
  #allocation0 [shape = 'u32[]', space=smem, size = 0x4, offset = 0x4, fixed_abs, tag = 'smem constant byte address 0x4 - core index']
  #allocation1 [shape = 'u32[144,128]{1,0:T(1,128)}', space=vmem, size = 0x12000, scoped, tag = 'internal scratch']
  #allocation2 [shape = 'f32[96,256]{1,0:T(8,128)}', space=vmem, size = 0x18000, scoped, tag = 'scratch operand']
  %s0 = inlined_call_operand.vmem [shape: bf16[2,54,52,4], index: 0, kind: input, shape index: {}, may-alias: {0,1,2,3,4,5,6}]
  %s1 = inlined_call_operand.vmem [shape: bf16[2,54,52,4], index: 1, kind: input, shape index: {}, may-alias: {0,1,2,3,4,5,6}]
  %s2 = inlined_call_operand.vmem [shape: bf16[2,54,52,4], index: 2, kind: input, shape index: {}, may-alias: {0,1,2,3,4,5,6}]
  %s3 = inlined_call_operand.vmem [shape: bf16[2,54,52,4], index: 3, kind: input, shape index: {}, may-alias: {0,1,2,3,4,5,6}]
  %s4 = inlined_call_operand.vmem [shape: bf16[2,54,52,4], index: 4, kind: input, shape index: {}, may-alias: {0,1,2,3,4,5,6}]
  %s5 = inlined_call_operand.vmem [shape: bf16[2,54,52,4], index: 5, kind: input, shape index: {}, may-alias: {0,1,2,3,4,5,6}]
  %s6 = inlined_call_operand.vmem [shape: bf16[2,54,52,4], index: 6, kind: input, shape index: {}, may-alias: {0,1,2,3,4,5,6}]
  %s7 = inlined_call_operand.vmem [shape: bf16[4,256], index: 7, kind: input, shape index: {}]
  %s8 = inlined_call_operand.vmem [shape: bf16[3,3,12,256], index: 8, kind: input, shape index: {}]
  %s9 = inlined_call_operand.vmem [shape: bf16[4,256,256], index: 9, kind: input, shape index: {}]
  %s10 = inlined_call_operand.vmem [shape: f32[1,256], index: 10, kind: input, shape index: {}]
  %s11 = inlined_call_operand.vmem [shape: f32[3,1,256], index: 11, kind: input, shape index: {}]
  %s12 = inlined_call_operand.vmem [shape: f32[2,1,256], index: 12, kind: input, shape index: {}]
  %s13 = inlined_call_operand.vmem [shape: f32[2,18,16,256], index: 13, kind: output, shape index: {}]
  %s14 = sld [smem:[#allocation0]]
  $region85: #{aspp_forward.1} parent=0
    _
  %s16 = ssub.s32 1, %s14
  %s17 = scalar_select 0, %s16, %s14
  loop: start=0, step=1, limit=8
  $region2: #{aspp_forward.1} parent=0 // loop_pre_header
    _
  $region3: #{aspp_forward.1} parent=0 // loop_header
    %s19 = sphi 0, %s23
    %p20 = scmp.ge.s32.totalorder %s19, 8
    %s26 = sphi 0, %s38
    %s27 = sphi 0, %s34
    %s28 = sphi 0, %s26
    %s29 = sphi 0, %s27
    %s30 = sphi 0, %s28
    %s31 = sphi 0, %s29
    %s43 = sphi 0, %s45
    %s46 = sphi 0, %s43
    %s47 = sphi 0, %s46
    %s63 = sphi 0, %s47
    %s73 = sphi 0, %s75
    %s76 = sphi 0, %s73
    %s77 = sphi 0, %s76
    %s93 = sphi 0, %s77
    %s103 = sphi 0, %s105
    %s106 = sphi 0, %s103
    %s107 = sphi 0, %s106
    %s123 = sphi 0, %s107
    %s133 = sphi 0, %s135
    %s136 = sphi 0, %s133
    %s137 = sphi 0, %s136
    %s153 = sphi 0, %s137
    %s163 = sphi 0, %s165
    %s166 = sphi 0, %s163
    %s167 = sphi 0, %s166
    %s183 = sphi 0, %s167
    %s193 = sphi 0, %s195
    %s196 = sphi 0, %s193
    %s197 = sphi 0, %s196
    %s213 = sphi 0, %s197
    %s223 = sphi 0, %s225
    %s226 = sphi 0, %s223
    %s227 = sphi 0, %s226
    %s243 = sphi 0, %s227
    %s247 = sphi 0, %s247
    %s249 = sphi 0, %s247
    %s250 = sphi 0, %s249
    %s264 = sphi 0, %s250
    %s268 = sphi 0, %s268
    %s270 = sphi 0, %s268
    %s271 = sphi 0, %s270
    %s285 = sphi 0, %s271
    %s289 = sphi 0, %s289
    %s291 = sphi 0, %s289
    %s292 = sphi 0, %s291
    %s306 = sphi 0, %s292
    %s310 = sphi 0, %s310
    %s312 = sphi 0, %s310
    %s313 = sphi 0, %s312
    %s327 = sphi 0, %s313
    %s331 = sphi 0, %s331
    %s333 = sphi 0, %s331
    %s334 = sphi 0, %s333
    %s348 = sphi 0, %s334
    %s354 = sphi 0, %s356
    %s357 = sphi 0, %s354
    %s358 = sphi 0, %s357
    %s374 = sphi 0, %s358
    %s382 = sphi 0, %s384
    %s385 = sphi 0, %s382
    %s386 = sphi 0, %s385
    %s402 = sphi 0, %s386
  $region4: #{aspp_forward.1} parent=0 // loop_header_branch
    %22 = sbr.rel (%p20) target = $region8
  $region5: #{aspp_forward.1} parent=0 // loop_body
    %s24 = ssub.s32 %s19, 1
    %s25 = ssub.s32 %s19, 2
    %s32 = sadd.s32 1, %s27
    %p33 = scmp.ge.s32.totalorder %s32, 3
    %s34 = scalar_select %p33, 0, %s32
    %s35 = sadd.s32 1, %s26
    %s36 = scalar_select %p33, %s35, %s26
    %p37 = scmp.ge.s32.totalorder %s36, 2
    %s38 = scalar_select %p37, 0, %s36
    %s39 = ssub.s32 %s26, %s38
    %s40 = ssub.s32 %s27, %s34
    %s41 = sor.u32 %s39, %s40
    %p42 = scmp.eq.s32.totalorder %s41, 0
    %s44 = sadd.s32 %s43, 1
    %s45 = scalar_select %p42, %s43, %s44
    %p48 = pneg %p42
    %p49 = scmp.eq.s32.totalorder %s19, 5
    %p50 = por %p48, %p49
    %p51 = scmp.ne.s32.totalorder %s43, %s46
    %p52 = scmp.eq.s32.totalorder %s19, 0
    %p53 = por %p51, %p52
    %p54 = scmp.ne.s32.totalorder %s43, %s46
    %p55 = scmp.eq.s32.totalorder %s24, 5
    %p56 = por %p54, %p55
    %p57 = scmp.ne.s32.totalorder %s46, %s47
    %p58 = scmp.eq.s32.totalorder %s24, 0
    %p59 = por %p57, %p58
    %p60 = scmp.ne.s32.totalorder %s46, %s47
    %p61 = scmp.eq.s32.totalorder %s25, 5
    %p62 = por %p60, %p61
    %p64 = scmp.ne.s32.totalorder %s47, %s63
    %p65 = scmp.eq.s32.totalorder %s25, 0
    %p66 = por %p64, %p65
    %s67 = sadd.s32 %s27, 1
    %s68 = sadd.s32 %s34, 1
    %s69 = ssub.s32 %s26, %s38
    %s70 = ssub.s32 %s67, %s68
    %s71 = sor.u32 %s69, %s70
    %p72 = scmp.eq.s32.totalorder %s71, 0
    %s74 = sadd.s32 %s73, 1
    %s75 = scalar_select %p72, %s73, %s74
    %p78 = pneg %p72
    %p79 = scmp.eq.s32.totalorder %s19, 5
    %p80 = por %p78, %p79
    %p81 = scmp.ne.s32.totalorder %s73, %s76
    %p82 = scmp.eq.s32.totalorder %s19, 0
    %p83 = por %p81, %p82
    %p84 = scmp.ne.s32.totalorder %s73, %s76
    %p85 = scmp.eq.s32.totalorder %s24, 5
    %p86 = por %p84, %p85
    %p87 = scmp.ne.s32.totalorder %s76, %s77
    %p88 = scmp.eq.s32.totalorder %s24, 0
    %p89 = por %p87, %p88
    %p90 = scmp.ne.s32.totalorder %s76, %s77
    %p91 = scmp.eq.s32.totalorder %s25, 5
    %p92 = por %p90, %p91
    %p94 = scmp.ne.s32.totalorder %s77, %s93
    %p95 = scmp.eq.s32.totalorder %s25, 0
    %p96 = por %p94, %p95
    %s97 = sadd.s32 %s27, 2
    %s98 = sadd.s32 %s34, 2
    %s99 = ssub.s32 %s26, %s38
    %s100 = ssub.s32 %s97, %s98
    %s101 = sor.u32 %s99, %s100
    %p102 = scmp.eq.s32.totalorder %s101, 0
    %s104 = sadd.s32 %s103, 1
    %s105 = scalar_select %p102, %s103, %s104
    %p108 = pneg %p102
    %p109 = scmp.eq.s32.totalorder %s19, 5
    %p110 = por %p108, %p109
    %p111 = scmp.ne.s32.totalorder %s103, %s106
    %p112 = scmp.eq.s32.totalorder %s19, 0
    %p113 = por %p111, %p112
    %p114 = scmp.ne.s32.totalorder %s103, %s106
    %p115 = scmp.eq.s32.totalorder %s24, 5
    %p116 = por %p114, %p115
    %p117 = scmp.ne.s32.totalorder %s106, %s107
    %p118 = scmp.eq.s32.totalorder %s24, 0
    %p119 = por %p117, %p118
    %p120 = scmp.ne.s32.totalorder %s106, %s107
    %p121 = scmp.eq.s32.totalorder %s25, 5
    %p122 = por %p120, %p121
    %p124 = scmp.ne.s32.totalorder %s107, %s123
    %p125 = scmp.eq.s32.totalorder %s25, 0
    %p126 = por %p124, %p125
    %s127 = sadd.s32 %s27, 3
    %s128 = sadd.s32 %s34, 3
    %s129 = ssub.s32 %s26, %s38
    %s130 = ssub.s32 %s127, %s128
    %s131 = sor.u32 %s129, %s130
    %p132 = scmp.eq.s32.totalorder %s131, 0
    %s134 = sadd.s32 %s133, 1
    %s135 = scalar_select %p132, %s133, %s134
    %p138 = pneg %p132
    %p139 = scmp.eq.s32.totalorder %s19, 5
    %p140 = por %p138, %p139
    %p141 = scmp.ne.s32.totalorder %s133, %s136
    %p142 = scmp.eq.s32.totalorder %s19, 0
    %p143 = por %p141, %p142
    %p144 = scmp.ne.s32.totalorder %s133, %s136
    %p145 = scmp.eq.s32.totalorder %s24, 5
    %p146 = por %p144, %p145
    %p147 = scmp.ne.s32.totalorder %s136, %s137
    %p148 = scmp.eq.s32.totalorder %s24, 0
    %p149 = por %p147, %p148
    %p150 = scmp.ne.s32.totalorder %s136, %s137
    %p151 = scmp.eq.s32.totalorder %s25, 5
    %p152 = por %p150, %p151
    %p154 = scmp.ne.s32.totalorder %s137, %s153
    %p155 = scmp.eq.s32.totalorder %s25, 0
    %p156 = por %p154, %p155
    %s157 = sadd.s32 %s27, 4
    %s158 = sadd.s32 %s34, 4
    %s159 = ssub.s32 %s26, %s38
    %s160 = ssub.s32 %s157, %s158
    %s161 = sor.u32 %s159, %s160
    %p162 = scmp.eq.s32.totalorder %s161, 0
    %s164 = sadd.s32 %s163, 1
    %s165 = scalar_select %p162, %s163, %s164
    %p168 = pneg %p162
    %p169 = scmp.eq.s32.totalorder %s19, 5
    %p170 = por %p168, %p169
    %p171 = scmp.ne.s32.totalorder %s163, %s166
    %p172 = scmp.eq.s32.totalorder %s19, 0
    %p173 = por %p171, %p172
    %p174 = scmp.ne.s32.totalorder %s163, %s166
    %p175 = scmp.eq.s32.totalorder %s24, 5
    %p176 = por %p174, %p175
    %p177 = scmp.ne.s32.totalorder %s166, %s167
    %p178 = scmp.eq.s32.totalorder %s24, 0
    %p179 = por %p177, %p178
    %p180 = scmp.ne.s32.totalorder %s166, %s167
    %p181 = scmp.eq.s32.totalorder %s25, 5
    %p182 = por %p180, %p181
    %p184 = scmp.ne.s32.totalorder %s167, %s183
    %p185 = scmp.eq.s32.totalorder %s25, 0
    %p186 = por %p184, %p185
    %s187 = sadd.s32 %s27, 5
    %s188 = sadd.s32 %s34, 5
    %s189 = ssub.s32 %s26, %s38
    %s190 = ssub.s32 %s187, %s188
    %s191 = sor.u32 %s189, %s190
    %p192 = scmp.eq.s32.totalorder %s191, 0
    %s194 = sadd.s32 %s193, 1
    %s195 = scalar_select %p192, %s193, %s194
    %p198 = pneg %p192
    %p199 = scmp.eq.s32.totalorder %s19, 5
    %p200 = por %p198, %p199
    %p201 = scmp.ne.s32.totalorder %s193, %s196
    %p202 = scmp.eq.s32.totalorder %s19, 0
    %p203 = por %p201, %p202
    %p204 = scmp.ne.s32.totalorder %s193, %s196
    %p205 = scmp.eq.s32.totalorder %s24, 5
    %p206 = por %p204, %p205
    %p207 = scmp.ne.s32.totalorder %s196, %s197
    %p208 = scmp.eq.s32.totalorder %s24, 0
    %p209 = por %p207, %p208
    %p210 = scmp.ne.s32.totalorder %s196, %s197
    %p211 = scmp.eq.s32.totalorder %s25, 5
    %p212 = por %p210, %p211
    %p214 = scmp.ne.s32.totalorder %s197, %s213
    %p215 = scmp.eq.s32.totalorder %s25, 0
    %p216 = por %p214, %p215
    %s217 = sadd.s32 %s27, 6
    %s218 = sadd.s32 %s34, 6
    %s219 = ssub.s32 %s26, %s38
    %s220 = ssub.s32 %s217, %s218
    %s221 = sor.u32 %s219, %s220
    %p222 = scmp.eq.s32.totalorder %s221, 0
    %s224 = sadd.s32 %s223, 1
    %s225 = scalar_select %p222, %s223, %s224
    %p228 = pneg %p222
    %p229 = scmp.eq.s32.totalorder %s19, 5
    %p230 = por %p228, %p229
    %p231 = scmp.ne.s32.totalorder %s223, %s226
    %p232 = scmp.eq.s32.totalorder %s19, 0
    %p233 = por %p231, %p232
    %p234 = scmp.ne.s32.totalorder %s223, %s226
    %p235 = scmp.eq.s32.totalorder %s24, 5
    %p236 = por %p234, %p235
    %p237 = scmp.ne.s32.totalorder %s226, %s227
    %p238 = scmp.eq.s32.totalorder %s24, 0
    %p239 = por %p237, %p238
    %p240 = scmp.ne.s32.totalorder %s226, %s227
    %p241 = scmp.eq.s32.totalorder %s25, 5
    %p242 = por %p240, %p241
    %p244 = scmp.ne.s32.totalorder %s227, %s243
    %p245 = scmp.eq.s32.totalorder %s25, 0
    %p246 = por %p244, %p245
    %s248 = sadd.s32 %s247, 1
    %p251 = scmp.eq.s32.totalorder %s19, 5
    %p252 = scmp.ne.s32.totalorder %s247, %s249
    %p253 = scmp.eq.s32.totalorder %s19, 0
    %p254 = por %p252, %p253
    %p255 = scmp.ne.s32.totalorder %s247, %s249
    %p256 = scmp.eq.s32.totalorder %s24, 5
    %p257 = por %p255, %p256
    %p258 = scmp.ne.s32.totalorder %s249, %s250
    %p259 = scmp.eq.s32.totalorder %s24, 0
    %p260 = por %p258, %p259
    %p261 = scmp.ne.s32.totalorder %s249, %s250
    %p262 = scmp.eq.s32.totalorder %s25, 5
    %p263 = por %p261, %p262
    %p265 = scmp.ne.s32.totalorder %s250, %s264
    %p266 = scmp.eq.s32.totalorder %s25, 0
    %p267 = por %p265, %p266
    %s269 = sadd.s32 %s268, 1
    %p272 = scmp.eq.s32.totalorder %s19, 5
    %p273 = scmp.ne.s32.totalorder %s268, %s270
    %p274 = scmp.eq.s32.totalorder %s19, 0
    %p275 = por %p273, %p274
    %p276 = scmp.ne.s32.totalorder %s268, %s270
    %p277 = scmp.eq.s32.totalorder %s24, 5
    %p278 = por %p276, %p277
    %p279 = scmp.ne.s32.totalorder %s270, %s271
    %p280 = scmp.eq.s32.totalorder %s24, 0
    %p281 = por %p279, %p280
    %p282 = scmp.ne.s32.totalorder %s270, %s271
    %p283 = scmp.eq.s32.totalorder %s25, 5
    %p284 = por %p282, %p283
    %p286 = scmp.ne.s32.totalorder %s271, %s285
    %p287 = scmp.eq.s32.totalorder %s25, 0
    %p288 = por %p286, %p287
    %s290 = sadd.s32 %s289, 1
    %p293 = scmp.eq.s32.totalorder %s19, 5
    %p294 = scmp.ne.s32.totalorder %s289, %s291
    %p295 = scmp.eq.s32.totalorder %s19, 0
    %p296 = por %p294, %p295
    %p297 = scmp.ne.s32.totalorder %s289, %s291
    %p298 = scmp.eq.s32.totalorder %s24, 5
    %p299 = por %p297, %p298
    %p300 = scmp.ne.s32.totalorder %s291, %s292
    %p301 = scmp.eq.s32.totalorder %s24, 0
    %p302 = por %p300, %p301
    %p303 = scmp.ne.s32.totalorder %s291, %s292
    %p304 = scmp.eq.s32.totalorder %s25, 5
    %p305 = por %p303, %p304
    %p307 = scmp.ne.s32.totalorder %s292, %s306
    %p308 = scmp.eq.s32.totalorder %s25, 0
    %p309 = por %p307, %p308
    %s311 = sadd.s32 %s310, 1
    %p314 = scmp.eq.s32.totalorder %s19, 5
    %p315 = scmp.ne.s32.totalorder %s310, %s312
    %p316 = scmp.eq.s32.totalorder %s19, 0
    %p317 = por %p315, %p316
    %p318 = scmp.ne.s32.totalorder %s310, %s312
    %p319 = scmp.eq.s32.totalorder %s24, 5
    %p320 = por %p318, %p319
    %p321 = scmp.ne.s32.totalorder %s312, %s313
    %p322 = scmp.eq.s32.totalorder %s24, 0
    %p323 = por %p321, %p322
    %p324 = scmp.ne.s32.totalorder %s312, %s313
    %p325 = scmp.eq.s32.totalorder %s25, 5
    %p326 = por %p324, %p325
    %p328 = scmp.ne.s32.totalorder %s313, %s327
    %p329 = scmp.eq.s32.totalorder %s25, 0
    %p330 = por %p328, %p329
    %s332 = sadd.s32 %s331, 1
    %p335 = scmp.eq.s32.totalorder %s19, 5
    %p336 = scmp.ne.s32.totalorder %s331, %s333
    %p337 = scmp.eq.s32.totalorder %s19, 0
    %p338 = por %p336, %p337
    %p339 = scmp.ne.s32.totalorder %s331, %s333
    %p340 = scmp.eq.s32.totalorder %s24, 5
    %p341 = por %p339, %p340
    %p342 = scmp.ne.s32.totalorder %s333, %s334
    %p343 = scmp.eq.s32.totalorder %s24, 0
    %p344 = por %p342, %p343
    %p345 = scmp.ne.s32.totalorder %s333, %s334
    %p346 = scmp.eq.s32.totalorder %s25, 5
    %p347 = por %p345, %p346
    %p349 = scmp.ne.s32.totalorder %s334, %s348
    %p350 = scmp.eq.s32.totalorder %s25, 0
    %p351 = por %p349, %p350
    %s352 = ssub.s32 %s26, %s38
    %p353 = scmp.eq.s32.totalorder %s352, 0
    %s355 = sadd.s32 %s354, 1
    %s356 = scalar_select %p353, %s354, %s355
    %p359 = pneg %p353
    %p360 = scmp.eq.s32.totalorder %s19, 5
    %p361 = por %p359, %p360
    %p362 = scmp.ne.s32.totalorder %s354, %s357
    %p363 = scmp.eq.s32.totalorder %s19, 0
    %p364 = por %p362, %p363
    %p365 = scmp.ne.s32.totalorder %s354, %s357
    %p366 = scmp.eq.s32.totalorder %s24, 5
    %p367 = por %p365, %p366
    %p368 = scmp.ne.s32.totalorder %s357, %s358
    %p369 = scmp.eq.s32.totalorder %s24, 0
    %p370 = por %p368, %p369
    %p371 = scmp.ne.s32.totalorder %s357, %s358
    %p372 = scmp.eq.s32.totalorder %s25, 5
    %p373 = por %p371, %p372
    %p375 = scmp.ne.s32.totalorder %s358, %s374
    %p376 = scmp.eq.s32.totalorder %s25, 0
    %p377 = por %p375, %p376
    %s378 = ssub.s32 %s26, %s38
    %s379 = ssub.s32 %s27, %s34
    %s380 = sor.u32 %s378, %s379
    %p381 = scmp.eq.s32.totalorder %s380, 0
    %s383 = sadd.s32 %s382, 1
    %s384 = scalar_select %p381, %s382, %s383
    %p387 = pneg %p381
    %p388 = scmp.eq.s32.totalorder %s19, 5
    %p389 = por %p387, %p388
    %p390 = scmp.ne.s32.totalorder %s382, %s385
    %p391 = scmp.eq.s32.totalorder %s19, 0
    %p392 = por %p390, %p391
    %p393 = scmp.ne.s32.totalorder %s382, %s385
    %p394 = scmp.eq.s32.totalorder %s24, 5
    %p395 = por %p393, %p394
    %p396 = scmp.ne.s32.totalorder %s385, %s386
    %p397 = scmp.eq.s32.totalorder %s24, 0
    %p398 = por %p396, %p397
    %p399 = scmp.ne.s32.totalorder %s385, %s386
    %p400 = scmp.eq.s32.totalorder %s25, 5
    %p401 = por %p399, %p400
    %p403 = scmp.ne.s32.totalorder %s386, %s402
    %p404 = scmp.eq.s32.totalorder %s25, 0
    %p405 = por %p403, %p404
    %p406 = scmp.le.s32.totalorder 1, %s19
    %p407 = scmp.lt.s32.totalorder %s19, 7
    %p408 = pnand %p406, %p407
    %p409 = pneg %p408
    // Predicated region
    $region9: #{aspp_forward.1} parent=5 // pred_check
      _
    $region10: #{aspp_forward.1} parent=5 // pred_check_branch
      %411 = sbr.rel (%p408) target = $region12
    $region11: #{aspp_forward.1} parent=5 // pred_region
      %s412 = ssub.s32 %s19, 1
      // Predicated region
      $region13: #{aspp_forward.1} parent=11 // pred_check
        %p413 = pneg %p260
      $region14: #{aspp_forward.1} parent=11 // pred_check_branch
        %415 = sbr.rel (%p413) target = $region16
      $region15: #{aspp_forward.1} parent=11 // pred_region
        _
      $region16: #{aspp_forward.1} parent=11 // pred_fallthru
        _
      // Predicated region
      $region17: #{aspp_forward.1} parent=11 // pred_check
        %p416 = pneg %p281
      $region18: #{aspp_forward.1} parent=11 // pred_check_branch
        %418 = sbr.rel (%p416) target = $region20
      $region19: #{aspp_forward.1} parent=11 // pred_region
        _
      $region20: #{aspp_forward.1} parent=11 // pred_fallthru
        _
      // Predicated region
      $region21: #{aspp_forward.1} parent=11 // pred_check
        %p419 = pneg %p302
      $region22: #{aspp_forward.1} parent=11 // pred_check_branch
        %421 = sbr.rel (%p419) target = $region24
      $region23: #{aspp_forward.1} parent=11 // pred_region
        _
      $region24: #{aspp_forward.1} parent=11 // pred_fallthru
        _
      // Predicated region
      $region25: #{aspp_forward.1} parent=11 // pred_check
        %p422 = pneg %p323
      $region26: #{aspp_forward.1} parent=11 // pred_check_branch
        %424 = sbr.rel (%p422) target = $region28
      $region27: #{aspp_forward.1} parent=11 // pred_region
        _
      $region28: #{aspp_forward.1} parent=11 // pred_fallthru
        _
      // Predicated region
      $region29: #{aspp_forward.1} parent=11 // pred_check
        %p425 = pneg %p344
      $region30: #{aspp_forward.1} parent=11 // pred_check_branch
        %427 = sbr.rel (%p425) target = $region32
      $region31: #{aspp_forward.1} parent=11 // pred_region
        _
      $region32: #{aspp_forward.1} parent=11 // pred_fallthru
        _
    $region12: #{aspp_forward.1} parent=5 // pred_fallthru
      _
    %p428 = scmp.lt.s32.totalorder %s19, 6
    // Predicated region
    $region33: #{aspp_forward.1} parent=5 // pred_check
      %p429 = pneg %p428
    $region34: #{aspp_forward.1} parent=5 // pred_check_branch
      %431 = sbr.rel (%p429) target = $region36
    $region35: #{aspp_forward.1} parent=5 // pred_region
      // Predicated region
      $region37: #{aspp_forward.1} parent=35 // pred_check
        %p432 = pneg %p53
      $region38: #{aspp_forward.1} parent=35 // pred_check_branch
        %434 = sbr.rel (%p432) target = $region40
      $region39: #{aspp_forward.1} parent=35 // pred_region
        %s435 = smul.u32 6, %s27
        %p436 = scmp.lt.s32.totalorder %s26, 1
        %s437 = scalar_select %p436, %s26, 1
        %p438 = scmp.lt.s32.totalorder %s435, 53
        %s439 = scalar_select %p438, %s435, 53
        %s440 = smul.addr %s439, 7
        %s441 = smul.addr %s437, 378
        %s442 = sadd.s32 %s440, %s441
        %s443 = smul.addr %s442, 4
        %s444 = scalar_lea.vmem %s0, %s443
        %s445 = smul.u32 6, %s27
      $region40: #{aspp_forward.1} parent=35 // pred_fallthru
        _
      // Predicated region
      $region41: #{aspp_forward.1} parent=35 // pred_check
        %p446 = pneg %p83
      $region42: #{aspp_forward.1} parent=35 // pred_check_branch
        %448 = sbr.rel (%p446) target = $region44
      $region43: #{aspp_forward.1} parent=35 // pred_region
        %s449 = sadd.s32 %s27, 1
        %s450 = smul.u32 6, %s449
        %p451 = scmp.lt.s32.totalorder %s26, 1
        %s452 = scalar_select %p451, %s26, 1
        %p453 = scmp.lt.s32.totalorder %s450, 53
        %s454 = scalar_select %p453, %s450, 53
        %s455 = smul.addr %s454, 7
        %s456 = smul.addr %s452, 378
        %s457 = sadd.s32 %s455, %s456
        %s458 = smul.addr %s457, 4
        %s459 = scalar_lea.vmem %s1, %s458
        %s460 = sadd.s32 %s27, 1
        %s461 = smul.u32 6, %s460
      $region44: #{aspp_forward.1} parent=35 // pred_fallthru
        _
      // Predicated region
      $region45: #{aspp_forward.1} parent=35 // pred_check
        %p462 = pneg %p113
      $region46: #{aspp_forward.1} parent=35 // pred_check_branch
        %464 = sbr.rel (%p462) target = $region48
      $region47: #{aspp_forward.1} parent=35 // pred_region
        %s465 = sadd.s32 %s27, 2
        %s466 = smul.u32 6, %s465
        %p467 = scmp.lt.s32.totalorder %s26, 1
        %s468 = scalar_select %p467, %s26, 1
        %p469 = scmp.lt.s32.totalorder %s466, 53
        %s470 = scalar_select %p469, %s466, 53
        %s471 = smul.addr %s470, 7
        %s472 = smul.addr %s468, 378
        %s473 = sadd.s32 %s471, %s472
        %s474 = smul.addr %s473, 4
        %s475 = scalar_lea.vmem %s2, %s474
        %s476 = sadd.s32 %s27, 2
        %s477 = smul.u32 6, %s476
      $region48: #{aspp_forward.1} parent=35 // pred_fallthru
        _
      // Predicated region
      $region49: #{aspp_forward.1} parent=35 // pred_check
        %p478 = pneg %p143
      $region50: #{aspp_forward.1} parent=35 // pred_check_branch
        %480 = sbr.rel (%p478) target = $region52
      $region51: #{aspp_forward.1} parent=35 // pred_region
        %s481 = sadd.s32 %s27, 3
        %s482 = smul.u32 6, %s481
        %p483 = scmp.lt.s32.totalorder %s26, 1
        %s484 = scalar_select %p483, %s26, 1
        %p485 = scmp.lt.s32.totalorder %s482, 53
        %s486 = scalar_select %p485, %s482, 53
        %s487 = smul.addr %s486, 7
        %s488 = smul.addr %s484, 378
        %s489 = sadd.s32 %s487, %s488
        %s490 = smul.addr %s489, 4
        %s491 = scalar_lea.vmem %s3, %s490
        %s492 = sadd.s32 %s27, 3
        %s493 = smul.u32 6, %s492
      $region52: #{aspp_forward.1} parent=35 // pred_fallthru
        _
      // Predicated region
      $region53: #{aspp_forward.1} parent=35 // pred_check
        %p494 = pneg %p173
      $region54: #{aspp_forward.1} parent=35 // pred_check_branch
        %496 = sbr.rel (%p494) target = $region56
      $region55: #{aspp_forward.1} parent=35 // pred_region
        %s497 = sadd.s32 %s27, 4
        %s498 = smul.u32 6, %s497
        %p499 = scmp.lt.s32.totalorder %s26, 1
        %s500 = scalar_select %p499, %s26, 1
        %p501 = scmp.lt.s32.totalorder %s498, 53
        %s502 = scalar_select %p501, %s498, 53
        %s503 = smul.addr %s502, 7
        %s504 = smul.addr %s500, 378
        %s505 = sadd.s32 %s503, %s504
        %s506 = smul.addr %s505, 4
        %s507 = scalar_lea.vmem %s4, %s506
        %s508 = sadd.s32 %s27, 4
        %s509 = smul.u32 6, %s508
      $region56: #{aspp_forward.1} parent=35 // pred_fallthru
        _
      // Predicated region
      $region57: #{aspp_forward.1} parent=35 // pred_check
        %p510 = pneg %p203
      $region58: #{aspp_forward.1} parent=35 // pred_check_branch
        %512 = sbr.rel (%p510) target = $region60
      $region59: #{aspp_forward.1} parent=35 // pred_region
        %s513 = sadd.s32 %s27, 5
        %s514 = smul.u32 6, %s513
        %p515 = scmp.lt.s32.totalorder %s26, 1
        %s516 = scalar_select %p515, %s26, 1
        %p517 = scmp.lt.s32.totalorder %s514, 53
        %s518 = scalar_select %p517, %s514, 53
        %s519 = smul.addr %s518, 7
        %s520 = smul.addr %s516, 378
        %s521 = sadd.s32 %s519, %s520
        %s522 = smul.addr %s521, 4
        %s523 = scalar_lea.vmem %s5, %s522
        %s524 = sadd.s32 %s27, 5
        %s525 = smul.u32 6, %s524
      $region60: #{aspp_forward.1} parent=35 // pred_fallthru
        _
      // Predicated region
      $region61: #{aspp_forward.1} parent=35 // pred_check
        %p526 = pneg %p233
      $region62: #{aspp_forward.1} parent=35 // pred_check_branch
        %528 = sbr.rel (%p526) target = $region64
      $region63: #{aspp_forward.1} parent=35 // pred_region
        %s529 = sadd.s32 %s27, 6
        %s530 = smul.u32 6, %s529
        %p531 = scmp.lt.s32.totalorder %s26, 1
        %s532 = scalar_select %p531, %s26, 1
        %p533 = scmp.lt.s32.totalorder %s530, 53
        %s534 = scalar_select %p533, %s530, 53
        %s535 = smul.addr %s534, 7
        %s536 = smul.addr %s532, 378
        %s537 = sadd.s32 %s535, %s536
        %s538 = smul.addr %s537, 4
        %s539 = scalar_lea.vmem %s6, %s538
        %s540 = sadd.s32 %s27, 6
        %s541 = smul.u32 6, %s540
      $region64: #{aspp_forward.1} parent=35 // pred_fallthru
        _
      // Predicated region
      $region65: #{aspp_forward.1} parent=35 // pred_check
        %p542 = pneg %p364
      $region66: #{aspp_forward.1} parent=35 // pred_check_branch
        %544 = sbr.rel (%p542) target = $region68
      $region67: #{aspp_forward.1} parent=35 // pred_region
        %p545 = scmp.lt.s32.totalorder %s26, 1
        %s546 = scalar_select %p545, %s26, 1
        %s547 = smul.addr %s546, 2
        %s548 = scalar_lea.vmem %s12, %s547
      $region68: #{aspp_forward.1} parent=35 // pred_fallthru
        _
    $region36: #{aspp_forward.1} parent=5 // pred_fallthru
      _
    %p549 = scmp.le.s32.totalorder 1, %s19
    %p550 = scmp.lt.s32.totalorder %s19, 7
    %p551 = pnand %p549, %p550
    %p552 = pneg %p551
    // Predicated region
    $region69: #{aspp_forward.1} parent=5 // pred_check
      _
    $region70: #{aspp_forward.1} parent=5 // pred_check_branch
      %554 = sbr.rel (%p551) target = $region72
    $region71: #{aspp_forward.1} parent=5 // pred_region
      %s555 = ssub.s32 %s19, 1
      %s556 = smul.u32 6, %s29
      %p557 = scmp.lt.s32.totalorder %s28, 1
      %s558 = scalar_select %p557, %s28, 1
      %p559 = scmp.lt.s32.totalorder %s556, 53
      %s560 = scalar_select %p559, %s556, 53
      %s561 = smul.addr %s560, 7
      %s562 = smul.addr %s558, 378
      %s563 = sadd.s32 %s561, %s562
      %s564 = smul.addr %s563, 4
      %s565 = scalar_lea.vmem %s0, %s564
      %p566 = pneg %p59
      %p567 = pneg %p56
      %s568 = sadd.s32 %s29, 1
      %s569 = smul.u32 6, %s568
      %p570 = scmp.lt.s32.totalorder %s28, 1
      %s571 = scalar_select %p570, %s28, 1
      %p572 = scmp.lt.s32.totalorder %s569, 53
      %s573 = scalar_select %p572, %s569, 53
      %s574 = smul.addr %s573, 7
      %s575 = smul.addr %s571, 378
      %s576 = sadd.s32 %s574, %s575
      %s577 = smul.addr %s576, 4
      %s578 = scalar_lea.vmem %s1, %s577
      %p579 = pneg %p89
      %p580 = pneg %p86
      %s581 = sadd.s32 %s29, 2
      %s582 = smul.u32 6, %s581
      %p583 = scmp.lt.s32.totalorder %s28, 1
      %s584 = scalar_select %p583, %s28, 1
      %p585 = scmp.lt.s32.totalorder %s582, 53
      %s586 = scalar_select %p585, %s582, 53
      %s587 = smul.addr %s586, 7
      %s588 = smul.addr %s584, 378
      %s589 = sadd.s32 %s587, %s588
      %s590 = smul.addr %s589, 4
      %s591 = scalar_lea.vmem %s2, %s590
      %p592 = pneg %p119
      %p593 = pneg %p116
      %s594 = sadd.s32 %s29, 3
      %s595 = smul.u32 6, %s594
      %p596 = scmp.lt.s32.totalorder %s28, 1
      %s597 = scalar_select %p596, %s28, 1
      %p598 = scmp.lt.s32.totalorder %s595, 53
      %s599 = scalar_select %p598, %s595, 53
      %s600 = smul.addr %s599, 7
      %s601 = smul.addr %s597, 378
      %s602 = sadd.s32 %s600, %s601
      %s603 = smul.addr %s602, 4
      %s604 = scalar_lea.vmem %s3, %s603
      %p605 = pneg %p149
      %p606 = pneg %p146
      %s607 = sadd.s32 %s29, 4
      %s608 = smul.u32 6, %s607
      %p609 = scmp.lt.s32.totalorder %s28, 1
      %s610 = scalar_select %p609, %s28, 1
      %p611 = scmp.lt.s32.totalorder %s608, 53
      %s612 = scalar_select %p611, %s608, 53
      %s613 = smul.addr %s612, 7
      %s614 = smul.addr %s610, 378
      %s615 = sadd.s32 %s613, %s614
      %s616 = smul.addr %s615, 4
      %s617 = scalar_lea.vmem %s4, %s616
      %p618 = pneg %p179
      %p619 = pneg %p176
      %s620 = sadd.s32 %s29, 5
      %s621 = smul.u32 6, %s620
      %p622 = scmp.lt.s32.totalorder %s28, 1
      %s623 = scalar_select %p622, %s28, 1
      %p624 = scmp.lt.s32.totalorder %s621, 53
      %s625 = scalar_select %p624, %s621, 53
      %s626 = smul.addr %s625, 7
      %s627 = smul.addr %s623, 378
      %s628 = sadd.s32 %s626, %s627
      %s629 = smul.addr %s628, 4
      %s630 = scalar_lea.vmem %s5, %s629
      %p631 = pneg %p209
      %p632 = pneg %p206
      %s633 = sadd.s32 %s29, 6
      %s634 = smul.u32 6, %s633
      %p635 = scmp.lt.s32.totalorder %s28, 1
      %s636 = scalar_select %p635, %s28, 1
      %p637 = scmp.lt.s32.totalorder %s634, 53
      %s638 = scalar_select %p637, %s634, 53
      %s639 = smul.addr %s638, 7
      %s640 = smul.addr %s636, 378
      %s641 = sadd.s32 %s639, %s640
      %s642 = smul.addr %s641, 4
      %s643 = scalar_lea.vmem %s6, %s642
      %p644 = pneg %p239
      %p645 = pneg %p236
      %p646 = pneg %p260
      %p647 = pneg %p257
      %p648 = pneg %p281
      %p649 = pneg %p278
      %p650 = pneg %p302
      %p651 = pneg %p299
      %p652 = pneg %p323
      %p653 = pneg %p320
      %p654 = pneg %p344
      %p655 = pneg %p341
      %p656 = scmp.lt.s32.totalorder %s28, 1
      %s657 = scalar_select %p656, %s28, 1
      %s658 = smul.addr %s657, 2
      %s659 = scalar_lea.vmem %s12, %s658
      %p660 = pneg %p370
      %p661 = pneg %p367
      %p662 = pneg %p398
      %p663 = pneg %p395
      %s664 = smul.u32 6, %s29
      %p665 = scmp.lt.s32.totalorder %s28, 1
      %s666 = scalar_select %p665, %s28, 1
      %p667 = scmp.lt.s32.totalorder %s664, 17
      %s668 = scalar_select %p667, %s664, 17
      %s669 = smul.addr %s668, 4
      %s670 = smul.addr %s666, 72
      %s671 = sadd.s32 %s669, %s670
      %s672 = smul.addr %s671, 8
      %s673 = scalar_lea.vmem %s13, %s672
      %s674 = smul.u32 6, %s29
      %p675 = scmp.lt.s32.totalorder %s28, 1
      %s676 = scalar_select %p675, %s28, 1
      %p677 = scmp.lt.s32.totalorder %s674, 53
      %s678 = scalar_select %p677, %s674, 53
      %s679 = smul.addr %s678, 7
      %s680 = smul.addr %s676, 378
      %s681 = sadd.s32 %s679, %s680
      %s682 = smul.addr %s681, 4
      %s683 = scalar_lea.vmem %s0, %s682
      %s684 = smul.u32 6, %s29
      %s685 = sadd.s32 %s29, 1
      %s686 = smul.u32 6, %s685
      %p687 = scmp.lt.s32.totalorder %s28, 1
      %s688 = scalar_select %p687, %s28, 1
      %p689 = scmp.lt.s32.totalorder %s686, 53
      %s690 = scalar_select %p689, %s686, 53
      %s691 = smul.addr %s690, 7
      %s692 = smul.addr %s688, 378
      %s693 = sadd.s32 %s691, %s692
      %s694 = smul.addr %s693, 4
      %s695 = scalar_lea.vmem %s1, %s694
      %s696 = sadd.s32 %s29, 1
      %s697 = smul.u32 6, %s696
      %s698 = sadd.s32 %s29, 2
      %s699 = smul.u32 6, %s698
      %p700 = scmp.lt.s32.totalorder %s28, 1
      %s701 = scalar_select %p700, %s28, 1
      %p702 = scmp.lt.s32.totalorder %s699, 53
      %s703 = scalar_select %p702, %s699, 53
      %s704 = smul.addr %s703, 7
      %s705 = smul.addr %s701, 378
      %s706 = sadd.s32 %s704, %s705
      %s707 = smul.addr %s706, 4
      %s708 = scalar_lea.vmem %s2, %s707
      %s709 = sadd.s32 %s29, 2
      %s710 = smul.u32 6, %s709
      %s711 = sadd.s32 %s29, 3
      %s712 = smul.u32 6, %s711
      %p713 = scmp.lt.s32.totalorder %s28, 1
      %s714 = scalar_select %p713, %s28, 1
      %p715 = scmp.lt.s32.totalorder %s712, 53
      %s716 = scalar_select %p715, %s712, 53
      %s717 = smul.addr %s716, 7
      %s718 = smul.addr %s714, 378
      %s719 = sadd.s32 %s717, %s718
      %s720 = smul.addr %s719, 4
      %s721 = scalar_lea.vmem %s3, %s720
      %s722 = sadd.s32 %s29, 3
      %s723 = smul.u32 6, %s722
      %s724 = sadd.s32 %s29, 4
      %s725 = smul.u32 6, %s724
      %p726 = scmp.lt.s32.totalorder %s28, 1
      %s727 = scalar_select %p726, %s28, 1
      %p728 = scmp.lt.s32.totalorder %s725, 53
      %s729 = scalar_select %p728, %s725, 53
      %s730 = smul.addr %s729, 7
      %s731 = smul.addr %s727, 378
      %s732 = sadd.s32 %s730, %s731
      %s733 = smul.addr %s732, 4
      %s734 = scalar_lea.vmem %s4, %s733
      %s735 = sadd.s32 %s29, 4
      %s736 = smul.u32 6, %s735
      %s737 = sadd.s32 %s29, 5
      %s738 = smul.u32 6, %s737
      %p739 = scmp.lt.s32.totalorder %s28, 1
      %s740 = scalar_select %p739, %s28, 1
      %p741 = scmp.lt.s32.totalorder %s738, 53
      %s742 = scalar_select %p741, %s738, 53
      %s743 = smul.addr %s742, 7
      %s744 = smul.addr %s740, 378
      %s745 = sadd.s32 %s743, %s744
      %s746 = smul.addr %s745, 4
      %s747 = scalar_lea.vmem %s5, %s746
      %s748 = sadd.s32 %s29, 5
      %s749 = smul.u32 6, %s748
      %s750 = sadd.s32 %s29, 6
      %s751 = smul.u32 6, %s750
      %p752 = scmp.lt.s32.totalorder %s28, 1
      %s753 = scalar_select %p752, %s28, 1
      %p754 = scmp.lt.s32.totalorder %s751, 53
      %s755 = scalar_select %p754, %s751, 53
      %s756 = smul.addr %s755, 7
      %s757 = smul.addr %s753, 378
      %s758 = sadd.s32 %s756, %s757
      %s759 = smul.addr %s758, 4
      %s760 = scalar_lea.vmem %s6, %s759
      %s761 = sadd.s32 %s29, 6
      %s762 = smul.u32 6, %s761
      %p763 = scmp.lt.s32.totalorder %s28, 1
      %s764 = scalar_select %p763, %s28, 1
      %s765 = smul.addr %s764, 2
      %s766 = scalar_lea.vmem %s12, %s765
      %s767 = smul.u32 6, %s29
      %p768 = scmp.lt.s32.totalorder %s28, 1
      %s769 = scalar_select %p768, %s28, 1
      %p770 = scmp.lt.s32.totalorder %s767, 17
      %s771 = scalar_select %p770, %s767, 17
      %s772 = smul.addr %s771, 4
      %s773 = smul.addr %s769, 72
      %s774 = sadd.s32 %s772, %s773
      %s775 = smul.addr %s774, 8
      %s776 = scalar_lea.vmem %s13, %s775
      %s777 = smul.u32 6, %s29
      %v779 = vld [vmem:[%s683] sm:$0xf]
      %v780 = vld [vmem:[%s683 + $0x4] sm:$0xf]
      %v781 = vld [vmem:[%s683 + $0x8] sm:$0xf]
      %v782 = vld [vmem:[%s683 + $0xc] sm:$0xf]
      %v783 = vld [vmem:[%s683 + $0x10] sm:$0xf]
      %v784 = vld [vmem:[%s683 + $0x14] sm:$0xf]
      %v785 = vld [vmem:[%s683 + $0x18] sm:$0x3]
      %v786 = vld [vmem:[%s683 + $0x1c] sm:$0xf]
      %v787 = vld [vmem:[%s683 + $0x20] sm:$0xf]
      %v788 = vld [vmem:[%s683 + $0x24] sm:$0xf]
      %v789 = vld [vmem:[%s683 + $0x28] sm:$0xf]
      %v790 = vld [vmem:[%s683 + $0x2c] sm:$0xf]
      %v791 = vld [vmem:[%s683 + $0x30] sm:$0xf]
      %v792 = vld [vmem:[%s683 + $0x34] sm:$0x3]
      %v793 = vld [vmem:[%s683 + $0x38] sm:$0xf]
      %v794 = vld [vmem:[%s683 + $0x3c] sm:$0xf]
      %v795 = vld [vmem:[%s683 + $0x40] sm:$0xf]
      %v796 = vld [vmem:[%s683 + $0x44] sm:$0xf]
      %v797 = vld [vmem:[%s683 + $0x48] sm:$0xf]
      %v798 = vld [vmem:[%s683 + $0x4c] sm:$0xf]
      %v799 = vld [vmem:[%s683 + $0x50] sm:$0x3]
      %v800 = vld [vmem:[%s683 + $0x54] sm:$0xf]
      %v801 = vld [vmem:[%s683 + $0x58] sm:$0xf]
      %v802 = vld [vmem:[%s683 + $0x5c] sm:$0xf]
      %v803 = vld [vmem:[%s683 + $0x60] sm:$0xf]
      %v804 = vld [vmem:[%s683 + $0x64] sm:$0xf]
      %v805 = vld [vmem:[%s683 + $0x68] sm:$0xf]
      %v806 = vld [vmem:[%s683 + $0x6c] sm:$0x3]
      %v807 = vld [vmem:[%s683 + $0x70] sm:$0xf]
      %v808 = vld [vmem:[%s683 + $0x74] sm:$0xf]
      %v809 = vld [vmem:[%s683 + $0x78] sm:$0xf]
      %v810 = vld [vmem:[%s683 + $0x7c] sm:$0xf]
      %v811 = vld [vmem:[%s683 + $0x80] sm:$0xf]
      %v812 = vld [vmem:[%s683 + $0x84] sm:$0xf]
      %v813 = vld [vmem:[%s683 + $0x88] sm:$0x3]
      %v814 = vld [vmem:[%s683 + $0x8c] sm:$0xf]
      %v815 = vld [vmem:[%s683 + $0x90] sm:$0xf]
      %v816 = vld [vmem:[%s683 + $0x94] sm:$0xf]
      %v817 = vld [vmem:[%s683 + $0x98] sm:$0xf]
      %v818 = vld [vmem:[%s683 + $0x9c] sm:$0xf]
      %v819 = vld [vmem:[%s683 + $0xa0] sm:$0xf]
      %v820 = vld [vmem:[%s683 + $0xa4] sm:$0x3]
      %v821 = vld [vmem:[%s695] sm:$0xf]
      %v822 = vld [vmem:[%s695 + $0x4] sm:$0xf]
      %v823 = vld [vmem:[%s695 + $0x8] sm:$0xf]
      %v824 = vld [vmem:[%s695 + $0xc] sm:$0xf]
      %v825 = vld [vmem:[%s695 + $0x10] sm:$0xf]
      %v826 = vld [vmem:[%s695 + $0x14] sm:$0xf]
      %v827 = vld [vmem:[%s695 + $0x1c] sm:$0xf]
      %v828 = vld [vmem:[%s695 + $0x20] sm:$0xf]
      %v829 = vld [vmem:[%s695 + $0x24] sm:$0xf]
      %v830 = vld [vmem:[%s695 + $0x28] sm:$0xf]
      %v831 = vld [vmem:[%s695 + $0x2c] sm:$0xf]
      %v832 = vld [vmem:[%s695 + $0x30] sm:$0xf]
      %v833 = vld [vmem:[%s695 + $0x38] sm:$0xf]
      %v834 = vld [vmem:[%s695 + $0x3c] sm:$0xf]
      %v835 = vld [vmem:[%s695 + $0x40] sm:$0xf]
      %v836 = vld [vmem:[%s695 + $0x44] sm:$0xf]
      %v837 = vld [vmem:[%s695 + $0x48] sm:$0xf]
      %v838 = vld [vmem:[%s695 + $0x4c] sm:$0xf]
      %v839 = vld [vmem:[%s695 + $0x54] sm:$0xf]
      %v840 = vld [vmem:[%s695 + $0x58] sm:$0xf]
      %v841 = vld [vmem:[%s695 + $0x5c] sm:$0xf]
      %v842 = vld [vmem:[%s695 + $0x60] sm:$0xf]
      %v843 = vld [vmem:[%s695 + $0x64] sm:$0xf]
      %v844 = vld [vmem:[%s695 + $0x68] sm:$0xf]
      %v845 = vld [vmem:[%s695 + $0x70] sm:$0xf]
      %v846 = vld [vmem:[%s695 + $0x74] sm:$0xf]
      %v847 = vld [vmem:[%s695 + $0x78] sm:$0xf]
      %v848 = vld [vmem:[%s695 + $0x7c] sm:$0xf]
      %v849 = vld [vmem:[%s695 + $0x80] sm:$0xf]
      %v850 = vld [vmem:[%s695 + $0x84] sm:$0xf]
      %v851 = vld [vmem:[%s695 + $0x8c] sm:$0xf]
      %v852 = vld [vmem:[%s695 + $0x90] sm:$0xf]
      %v853 = vld [vmem:[%s695 + $0x94] sm:$0xf]
      %v854 = vld [vmem:[%s695 + $0x98] sm:$0xf]
      %v855 = vld [vmem:[%s695 + $0x9c] sm:$0xf]
      %v856 = vld [vmem:[%s695 + $0xa0] sm:$0xf]
      %v857 = vld [vmem:[%s708 + $0x4] sm:$0xf]
      %v858 = vld [vmem:[%s708 + $0x8] sm:$0xf]
      %v859 = vld [vmem:[%s708 + $0xc] sm:$0xf]
      %v860 = vld [vmem:[%s708 + $0x10] sm:$0xf]
      %v861 = vld [vmem:[%s708 + $0x20] sm:$0xf]
      %v862 = vld [vmem:[%s708 + $0x24] sm:$0xf]
      %v863 = vld [vmem:[%s708 + $0x28] sm:$0xf]
      %v864 = vld [vmem:[%s708 + $0x2c] sm:$0xf]
      %v865 = vld [vmem:[%s708 + $0x3c] sm:$0xf]
      %v866 = vld [vmem:[%s708 + $0x40] sm:$0xf]
      %v867 = vld [vmem:[%s708 + $0x44] sm:$0xf]
      %v868 = vld [vmem:[%s708 + $0x48] sm:$0xf]
      %v869 = vld [vmem:[%s708 + $0x58] sm:$0xf]
      %v870 = vld [vmem:[%s708 + $0x5c] sm:$0xf]
      %v871 = vld [vmem:[%s708 + $0x60] sm:$0xf]
      %v872 = vld [vmem:[%s708 + $0x64] sm:$0xf]
      %v873 = vld [vmem:[%s708 + $0x74] sm:$0xf]
      %v874 = vld [vmem:[%s708 + $0x78] sm:$0xf]
      %v875 = vld [vmem:[%s708 + $0x7c] sm:$0xf]
      %v876 = vld [vmem:[%s708 + $0x80] sm:$0xf]
      %v877 = vld [vmem:[%s708 + $0x90] sm:$0xf]
      %v878 = vld [vmem:[%s708 + $0x94] sm:$0xf]
      %v879 = vld [vmem:[%s708 + $0x98] sm:$0xf]
      %v880 = vld [vmem:[%s708 + $0x9c] sm:$0xf]
      %v881 = vld [vmem:[%s721] sm:$0xf]
      %v882 = vld [vmem:[%s721 + $0x4] sm:$0xf]
      %v883 = vld [vmem:[%s721 + $0x8] sm:$0xf]
      %v884 = vld [vmem:[%s721 + $0xc] sm:$0xf]
      %v885 = vld [vmem:[%s721 + $0x10] sm:$0xf]
      %v886 = vld [vmem:[%s721 + $0x14] sm:$0xf]
      %v887 = vld [vmem:[%s721 + $0x18] sm:$0x3]
      %v888 = vld [vmem:[%s721 + $0x1c] sm:$0xf]
      %v889 = vld [vmem:[%s721 + $0x20] sm:$0xf]
      %v890 = vld [vmem:[%s721 + $0x24] sm:$0xf]
      %v891 = vld [vmem:[%s721 + $0x28] sm:$0xf]
      %v892 = vld [vmem:[%s721 + $0x2c] sm:$0xf]
      %v893 = vld [vmem:[%s721 + $0x30] sm:$0xf]
      %v894 = vld [vmem:[%s721 + $0x34] sm:$0x3]
      %v895 = vld [vmem:[%s721 + $0x38] sm:$0xf]
      %v896 = vld [vmem:[%s721 + $0x3c] sm:$0xf]
      %v897 = vld [vmem:[%s721 + $0x40] sm:$0xf]
      %v898 = vld [vmem:[%s721 + $0x44] sm:$0xf]
      %v899 = vld [vmem:[%s721 + $0x48] sm:$0xf]
      %v900 = vld [vmem:[%s721 + $0x4c] sm:$0xf]
      %v901 = vld [vmem:[%s721 + $0x50] sm:$0x3]
      %v902 = vld [vmem:[%s721 + $0x54] sm:$0xf]
      %v903 = vld [vmem:[%s721 + $0x58] sm:$0xf]
      %v904 = vld [vmem:[%s721 + $0x5c] sm:$0xf]
      %v905 = vld [vmem:[%s721 + $0x60] sm:$0xf]
      %v906 = vld [vmem:[%s721 + $0x64] sm:$0xf]
      %v907 = vld [vmem:[%s721 + $0x68] sm:$0xf]
      %v908 = vld [vmem:[%s721 + $0x6c] sm:$0x3]
      %v909 = vld [vmem:[%s721 + $0x70] sm:$0xf]
      %v910 = vld [vmem:[%s721 + $0x74] sm:$0xf]
      %v911 = vld [vmem:[%s721 + $0x78] sm:$0xf]
      %v912 = vld [vmem:[%s721 + $0x7c] sm:$0xf]
      %v913 = vld [vmem:[%s721 + $0x80] sm:$0xf]
      %v914 = vld [vmem:[%s721 + $0x84] sm:$0xf]
      %v915 = vld [vmem:[%s721 + $0x88] sm:$0x3]
      %v916 = vld [vmem:[%s721 + $0x8c] sm:$0xf]
      %v917 = vld [vmem:[%s721 + $0x90] sm:$0xf]
      %v918 = vld [vmem:[%s721 + $0x94] sm:$0xf]
      %v919 = vld [vmem:[%s721 + $0x98] sm:$0xf]
      %v920 = vld [vmem:[%s721 + $0x9c] sm:$0xf]
      %v921 = vld [vmem:[%s721 + $0xa0] sm:$0xf]
      %v922 = vld [vmem:[%s721 + $0xa4] sm:$0x3]
      %v923 = vld [vmem:[%s734 + $0x4] sm:$0xf]
      %v924 = vld [vmem:[%s734 + $0x8] sm:$0xf]
      %v925 = vld [vmem:[%s734 + $0xc] sm:$0xf]
      %v926 = vld [vmem:[%s734 + $0x10] sm:$0xf]
      %v927 = vld [vmem:[%s734 + $0x20] sm:$0xf]
      %v928 = vld [vmem:[%s734 + $0x24] sm:$0xf]
      %v929 = vld [vmem:[%s734 + $0x28] sm:$0xf]
      %v930 = vld [vmem:[%s734 + $0x2c] sm:$0xf]
      %v931 = vld [vmem:[%s734 + $0x3c] sm:$0xf]
      %v932 = vld [vmem:[%s734 + $0x40] sm:$0xf]
      %v933 = vld [vmem:[%s734 + $0x44] sm:$0xf]
      %v934 = vld [vmem:[%s734 + $0x48] sm:$0xf]
      %v935 = vld [vmem:[%s734 + $0x58] sm:$0xf]
      %v936 = vld [vmem:[%s734 + $0x5c] sm:$0xf]
      %v937 = vld [vmem:[%s734 + $0x60] sm:$0xf]
      %v938 = vld [vmem:[%s734 + $0x64] sm:$0xf]
      %v939 = vld [vmem:[%s734 + $0x74] sm:$0xf]
      %v940 = vld [vmem:[%s734 + $0x78] sm:$0xf]
      %v941 = vld [vmem:[%s734 + $0x7c] sm:$0xf]
      %v942 = vld [vmem:[%s734 + $0x80] sm:$0xf]
      %v943 = vld [vmem:[%s734 + $0x90] sm:$0xf]
      %v944 = vld [vmem:[%s734 + $0x94] sm:$0xf]
      %v945 = vld [vmem:[%s734 + $0x98] sm:$0xf]
      %v946 = vld [vmem:[%s734 + $0x9c] sm:$0xf]
      %v947 = vld [vmem:[%s747] sm:$0xf]
      %v948 = vld [vmem:[%s747 + $0x4] sm:$0xf]
      %v949 = vld [vmem:[%s747 + $0x8] sm:$0xf]
      %v950 = vld [vmem:[%s747 + $0xc] sm:$0xf]
      %v951 = vld [vmem:[%s747 + $0x10] sm:$0xf]
      %v952 = vld [vmem:[%s747 + $0x14] sm:$0xf]
      %v953 = vld [vmem:[%s747 + $0x1c] sm:$0xf]
      %v954 = vld [vmem:[%s747 + $0x20] sm:$0xf]
      %v955 = vld [vmem:[%s747 + $0x24] sm:$0xf]
      %v956 = vld [vmem:[%s747 + $0x28] sm:$0xf]
      %v957 = vld [vmem:[%s747 + $0x2c] sm:$0xf]
      %v958 = vld [vmem:[%s747 + $0x30] sm:$0xf]
      %v959 = vld [vmem:[%s747 + $0x38] sm:$0xf]
      %v960 = vld [vmem:[%s747 + $0x3c] sm:$0xf]
      %v961 = vld [vmem:[%s747 + $0x40] sm:$0xf]
      %v962 = vld [vmem:[%s747 + $0x44] sm:$0xf]
      %v963 = vld [vmem:[%s747 + $0x48] sm:$0xf]
      %v964 = vld [vmem:[%s747 + $0x4c] sm:$0xf]
      %v965 = vld [vmem:[%s747 + $0x54] sm:$0xf]
      %v966 = vld [vmem:[%s747 + $0x58] sm:$0xf]
      %v967 = vld [vmem:[%s747 + $0x5c] sm:$0xf]
      %v968 = vld [vmem:[%s747 + $0x60] sm:$0xf]
      %v969 = vld [vmem:[%s747 + $0x64] sm:$0xf]
      %v970 = vld [vmem:[%s747 + $0x68] sm:$0xf]
      %v971 = vld [vmem:[%s747 + $0x70] sm:$0xf]
      %v972 = vld [vmem:[%s747 + $0x74] sm:$0xf]
      %v973 = vld [vmem:[%s747 + $0x78] sm:$0xf]
      %v974 = vld [vmem:[%s747 + $0x7c] sm:$0xf]
      %v975 = vld [vmem:[%s747 + $0x80] sm:$0xf]
      %v976 = vld [vmem:[%s747 + $0x84] sm:$0xf]
      %v977 = vld [vmem:[%s747 + $0x8c] sm:$0xf]
      %v978 = vld [vmem:[%s747 + $0x90] sm:$0xf]
      %v979 = vld [vmem:[%s747 + $0x94] sm:$0xf]
      %v980 = vld [vmem:[%s747 + $0x98] sm:$0xf]
      %v981 = vld [vmem:[%s747 + $0x9c] sm:$0xf]
      %v982 = vld [vmem:[%s747 + $0xa0] sm:$0xf]
      %v983 = vld [vmem:[%s760] sm:$0xf]
      %v984 = vld [vmem:[%s760 + $0x4] sm:$0xf]
      %v985 = vld [vmem:[%s760 + $0x8] sm:$0xf]
      %v986 = vld [vmem:[%s760 + $0xc] sm:$0xf]
      %v987 = vld [vmem:[%s760 + $0x10] sm:$0xf]
      %v988 = vld [vmem:[%s760 + $0x14] sm:$0xf]
      %v989 = vld [vmem:[%s760 + $0x18] sm:$0x3]
      %v990 = vld [vmem:[%s760 + $0x1c] sm:$0xf]
      %v991 = vld [vmem:[%s760 + $0x20] sm:$0xf]
      %v992 = vld [vmem:[%s760 + $0x24] sm:$0xf]
      %v993 = vld [vmem:[%s760 + $0x28] sm:$0xf]
      %v994 = vld [vmem:[%s760 + $0x2c] sm:$0xf]
      %v995 = vld [vmem:[%s760 + $0x30] sm:$0xf]
      %v996 = vld [vmem:[%s760 + $0x34] sm:$0x3]
      %v997 = vld [vmem:[%s760 + $0x38] sm:$0xf]
      %v998 = vld [vmem:[%s760 + $0x3c] sm:$0xf]
      %v999 = vld [vmem:[%s760 + $0x40] sm:$0xf]
      %v1000 = vld [vmem:[%s760 + $0x44] sm:$0xf]
      %v1001 = vld [vmem:[%s760 + $0x48] sm:$0xf]
      %v1002 = vld [vmem:[%s760 + $0x4c] sm:$0xf]
      %v1003 = vld [vmem:[%s760 + $0x50] sm:$0x3]
      %v1004 = vld [vmem:[%s760 + $0x54] sm:$0xf]
      %v1005 = vld [vmem:[%s760 + $0x58] sm:$0xf]
      %v1006 = vld [vmem:[%s760 + $0x5c] sm:$0xf]
      %v1007 = vld [vmem:[%s760 + $0x60] sm:$0xf]
      %v1008 = vld [vmem:[%s760 + $0x64] sm:$0xf]
      %v1009 = vld [vmem:[%s760 + $0x68] sm:$0xf]
      %v1010 = vld [vmem:[%s760 + $0x6c] sm:$0x3]
      %v1011 = vld [vmem:[%s760 + $0x70] sm:$0xf]
      %v1012 = vld [vmem:[%s760 + $0x74] sm:$0xf]
      %v1013 = vld [vmem:[%s760 + $0x78] sm:$0xf]
      %v1014 = vld [vmem:[%s760 + $0x7c] sm:$0xf]
      %v1015 = vld [vmem:[%s760 + $0x80] sm:$0xf]
      %v1016 = vld [vmem:[%s760 + $0x84] sm:$0xf]
      %v1017 = vld [vmem:[%s760 + $0x88] sm:$0x3]
      %v1018 = vld [vmem:[%s760 + $0x8c] sm:$0xf]
      %v1019 = vld [vmem:[%s760 + $0x90] sm:$0xf]
      %v1020 = vld [vmem:[%s760 + $0x94] sm:$0xf]
      %v1021 = vld [vmem:[%s760 + $0x98] sm:$0xf]
      %v1022 = vld [vmem:[%s760 + $0x9c] sm:$0xf]
      %v1023 = vld [vmem:[%s760 + $0xa0] sm:$0xf]
      %v1024 = vld [vmem:[%s760 + $0xa4] sm:$0x3]
      %vm1043 = vcmask 1042432
      %vm1044 = vcmask 1046532
      %vm1045 = vmor %vm1043, %vm1044
      %v1046 = vrot.slane %v883, 5
      %v1047 = vrot.slane %v1046, 4
      %v1048 = vrot.slane %v884, 5
      %v1049 = vsel %vm1045, %v1047, %v1048
      %v1050 = vrot.slane %v1048, 4
      %v1051 = vrot.slane %v885, 5
      %v1052 = vsel %vm1045, %v1050, %v1051
      %v1053 = vrot.slane %v890, 5
      %v1054 = vrot.slane %v1053, 4
      %v1055 = vrot.slane %v891, 5
      %v1056 = vsel %vm1045, %v1054, %v1055
      %v1057 = vrot.slane %v1055, 4
      %v1058 = vrot.slane %v892, 5
      %v1059 = vsel %vm1045, %v1057, %v1058
      %v1060 = vrot.slane %v897, 5
      %v1061 = vrot.slane %v1060, 4
      %v1062 = vrot.slane %v898, 5
      %v1063 = vsel %vm1045, %v1061, %v1062
      %v1064 = vrot.slane %v1062, 4
      %v1065 = vrot.slane %v899, 5
      %v1066 = vsel %vm1045, %v1064, %v1065
      %v1067 = vrot.slane %v904, 5
      %v1068 = vrot.slane %v1067, 4
      %v1069 = vrot.slane %v905, 5
      %v1070 = vsel %vm1045, %v1068, %v1069
      %v1071 = vrot.slane %v1069, 4
      %v1072 = vrot.slane %v906, 5
      %v1073 = vsel %vm1045, %v1071, %v1072
      %v1074 = vrot.slane %v911, 5
      %v1075 = vrot.slane %v1074, 4
      %v1076 = vrot.slane %v912, 5
      %v1077 = vsel %vm1045, %v1075, %v1076
      %v1078 = vrot.slane %v1076, 4
      %v1079 = vrot.slane %v913, 5
      %v1080 = vsel %vm1045, %v1078, %v1079
      %v1081 = vrot.slane %v918, 5
      %v1082 = vrot.slane %v1081, 4
      %v1083 = vrot.slane %v919, 5
      %v1084 = vsel %vm1045, %v1082, %v1083
      %v1085 = vrot.slane %v1083, 4
      %v1086 = vrot.slane %v920, 5
      %v1087 = vsel %vm1045, %v1085, %v1086
      %v1088 = vld [vmem:[%s7] sm:$0xf]
      %v1089 = vld [vmem:[%s10] sm:$0x3]
      %v1091 = vlaneseq
      %v1092 = vshrl.u32 %v1091, 7
      %v1093 = vsub.s32 0, %v1092
      %v1094 = vrot.slane %v1089, %v1093
      %v1095 = vlaneseq
      %v1096 = vshrl.u32 %v1095, 7
      %v1097 = vsub.s32 1, %v1096
      %v1098 = vrot.slane %v1089, %v1097
      %v1101 = vunpack.c.l.b16 %v1049
      %v1102 = vunpack.c.l.b16 %v1052
      %v1103 = vunpack.c.l.b16 %v1056
      %v1104 = vunpack.c.l.b16 %v1059
      %v1105 = vunpack.c.l.b16 %v1063
      %v1106 = vunpack.c.l.b16 %v1066
      %v1107 = vunpack.c.l.b16 %v1070
      %v1108 = vunpack.c.l.b16 %v1073
      %v1109 = vunpack.c.l.b16 %v1077
      %v1110 = vunpack.c.l.b16 %v1080
      %v1111 = vunpack.c.l.b16 %v1084
      %v1112 = vunpack.c.l.b16 %v1087
      %v1113 = vpack.c.b16 %v1102, %v1101
      %v1114 = vpack.c.b16 %v1104, %v1103
      %v1115 = vpack.c.b16 %v1106, %v1105
      %v1116 = vpack.c.b16 %v1108, %v1107
      %v1117 = vpack.c.b16 %v1110, %v1109
      %v1118 = vpack.c.b16 %v1112, %v1111
      %v1121 = vunpack.c.l.s4 1983009808
      %v1122 = vunpack.c.0.s8 %v1121
      %v1123 = vlaneseq
      %v1124 = vshrl.u32 %v1123, 7
      %v1125 = vsub.s32 %v1122, %v1124
      %v1126 = vrot.slane %v1088, %v1125
      %v1127 = vcombine.high %v1126, %v1126
      %vm1128 = vcmask 31744
      %v1130 = vsel %vm1128, %v1113, 0
      %v1133 = vsel %vm1128, %v1114, 0
      %v1136 = vsel %vm1128, %v1115, 0
      %v1139 = vsel %vm1128, %v1116, 0
      %v1142 = vsel %vm1128, %v1117, 0
      %v1145 = vsel %vm1128, %v1118, 0
      %vm1147 = vcmask 1041408
      %v1149 = vsel %vm1147, %v1126, 0
      %v1152 = vsel %vm1147, %v1127, 0
      %1154 = vmatprep.subr.bf16.mxu0 0
      %1155 = vmatpush1.bf16.msra.mxu0 0
      %1156 = vmatprep.subr.bf16.mxu0 0
      %1157 = vmatpush1.bf16.msra.mxu0 0
      %1158 = vmatprep.subr.bf16.mxu0 0
      %1159 = vmatpush1.bf16.msra.mxu0 0
      %1160 = vmatprep.subr.bf16.mxu0 0
      %1161 = vmatpush1.bf16.msra.mxu0 0
      %1162 = vmatprep.subr.bf16.mxu0 0
      %1163 = vmatpush1.bf16.msra.mxu0 0
      %1164 = vmatprep.subr.bf16.mxu0 0
      %1165 = vmatpush1.bf16.msra.mxu0 0
      %1166 = vmatprep.subr.bf16.mxu0 0
      %1167 = vmatpush1.bf16.msra.mxu0 0
      %1168 = vmatprep.subr.bf16.mxu0 %v1152
      %1169 = vmatpush1.bf16.msra.mxu0 %v1149
      %1170 = vmatprep.subr.bf16.mxu0 0
      %1171 = vmatpush2.bf16.msra.mxu0 0
      %1172 = vmatprep.subr.bf16.mxu0 0
      %1173 = vmatpush2.bf16.msra.mxu0 0
      %1174 = vmatprep.subr.bf16.mxu0 0
      %1175 = vmatpush2.bf16.msra.mxu0 0
      %1176 = vmatprep.subr.bf16.mxu0 0
      %1177 = vmatpush2.bf16.msra.mxu0 0
      %1178 = vmatprep.subr.bf16.mxu0 0
      %1179 = vmatpush2.bf16.msra.mxu0 0
      %1180 = vmatprep.subr.bf16.mxu0 0
      %1181 = vmatpush2.bf16.msra.mxu0 0
      %1182 = vmatprep.subr.bf16.mxu0 0
      %1183 = vmatpush2.bf16.msra.mxu0 0
      %1184 = vmatprep.subr.bf16.mxu0 0
      %1185 = vmatpush2.bf16.msra.mxu0 0
      %1186 = vmatprep.mubr.bf16.mxu0 0
      %1187 = vmatmul.mubr.bf16.gmra.mxu0 %v1130
      %v1188 = vpop.f32.mrf.mxu0
      %v1189 = vadd.f32 %v1094, %v1188
      %v1190 = vpop.f32.mrf.mxu0
      %v1191 = vadd.f32 %v1098, %v1190
      %v1192 = vpop.f32.mrf.mxu0
      %v1193 = vadd.f32 %v1094, %v1192
      %v1194 = vpop.f32.mrf.mxu0
      %v1195 = vadd.f32 %v1098, %v1194
      %1196 = vmatprep.mubr.bf16.mxu0 0
      %1197 = vmatmul.mubr.bf16.gmra.mxu0 %v1133
      %v1198 = vpop.f32.mrf.mxu0
      %v1199 = vadd.f32 %v1094, %v1198
      %v1200 = vpop.f32.mrf.mxu0
      %v1201 = vadd.f32 %v1098, %v1200
      %v1202 = vpop.f32.mrf.mxu0
      %v1203 = vadd.f32 %v1094, %v1202
      %v1204 = vpop.f32.mrf.mxu0
      %v1205 = vadd.f32 %v1098, %v1204
      %1206 = vmatprep.mubr.bf16.mxu0 0
      %1207 = vmatmul.mubr.bf16.gmra.mxu0 %v1136
      %v1208 = vpop.f32.mrf.mxu0
      %v1209 = vadd.f32 %v1094, %v1208
      %v1210 = vpop.f32.mrf.mxu0
      %v1211 = vadd.f32 %v1098, %v1210
      %v1212 = vpop.f32.mrf.mxu0
      %v1213 = vadd.f32 %v1094, %v1212
      %v1214 = vpop.f32.mrf.mxu0
      %v1215 = vadd.f32 %v1098, %v1214
      %1216 = vmatprep.mubr.bf16.mxu0 0
      %1217 = vmatmul.mubr.bf16.gmra.mxu0 %v1139
      %v1218 = vpop.f32.mrf.mxu0
      %v1219 = vadd.f32 %v1094, %v1218
      %v1220 = vpop.f32.mrf.mxu0
      %v1221 = vadd.f32 %v1098, %v1220
      %v1222 = vpop.f32.mrf.mxu0
      %v1223 = vadd.f32 %v1094, %v1222
      %v1224 = vpop.f32.mrf.mxu0
      %v1225 = vadd.f32 %v1098, %v1224
      %1226 = vmatprep.mubr.bf16.mxu0 0
      %1227 = vmatmul.mubr.bf16.gmra.mxu0 %v1142
      %v1228 = vpop.f32.mrf.mxu0
      %v1229 = vadd.f32 %v1094, %v1228
      %v1230 = vpop.f32.mrf.mxu0
      %v1231 = vadd.f32 %v1098, %v1230
      %v1232 = vpop.f32.mrf.mxu0
      %v1233 = vadd.f32 %v1094, %v1232
      %v1234 = vpop.f32.mrf.mxu0
      %v1235 = vadd.f32 %v1098, %v1234
      %1236 = vmatprep.mubr.bf16.mxu0 0
      %1237 = vmatmul.mubr.bf16.gmra.mxu0 %v1145
      %v1238 = vpop.f32.mrf.mxu0
      %v1239 = vadd.f32 %v1094, %v1238
      %v1240 = vpop.f32.mrf.mxu0
      %v1241 = vadd.f32 %v1098, %v1240
      %v1242 = vpop.f32.mrf.mxu0
      %v1243 = vadd.f32 %v1094, %v1242
      %v1244 = vpop.f32.mrf.mxu0
      %v1245 = vadd.f32 %v1098, %v1244
      %1246 = vdwg.mxu0
      %v1247 = vmax.f32 %v1189, 0.0
      %v1248 = vmax.f32 %v1191, 0.0
      %v1249 = vmax.f32 %v1193, 0.0
      %v1250 = vmax.f32 %v1195, 0.0
      %v1251 = vmax.f32 %v1199, 0.0
      %v1252 = vmax.f32 %v1201, 0.0
      %v1253 = vmax.f32 %v1203, 0.0
      %v1254 = vmax.f32 %v1205, 0.0
      %v1255 = vmax.f32 %v1209, 0.0
      %v1256 = vmax.f32 %v1211, 0.0
      %v1257 = vmax.f32 %v1213, 0.0
      %v1258 = vmax.f32 %v1215, 0.0
      %v1259 = vmax.f32 %v1219, 0.0
      %v1260 = vmax.f32 %v1221, 0.0
      %v1261 = vmax.f32 %v1223, 0.0
      %v1262 = vmax.f32 %v1225, 0.0
      %v1263 = vmax.f32 %v1229, 0.0
      %v1264 = vmax.f32 %v1231, 0.0
      %v1265 = vmax.f32 %v1233, 0.0
      %v1266 = vmax.f32 %v1235, 0.0
      %v1267 = vmax.f32 %v1239, 0.0
      %v1268 = vmax.f32 %v1241, 0.0
      %v1269 = vmax.f32 %v1243, 0.0
      %v1270 = vmax.f32 %v1245, 0.0
      %v1271 = vpack.c.bf16 %v1249, %v1247
      %v1272 = vpack.c.bf16 %v1250, %v1248
      %v1273 = vpack.c.bf16 %v1253, %v1251
      %v1274 = vpack.c.bf16 %v1254, %v1252
      %v1275 = vpack.c.bf16 %v1257, %v1255
      %v1276 = vpack.c.bf16 %v1258, %v1256
      %v1277 = vpack.c.bf16 %v1261, %v1259
      %v1278 = vpack.c.bf16 %v1262, %v1260
      %v1279 = vpack.c.bf16 %v1265, %v1263
      %v1280 = vpack.c.bf16 %v1266, %v1264
      %v1281 = vpack.c.bf16 %v1269, %v1267
      %v1282 = vpack.c.bf16 %v1270, %v1268
      %v1283 = vld [vmem:[%s9] sm:$0xff]
      %v1284 = vld [vmem:[%s9 + $0x8] sm:$0xff]
      %v1285 = vld [vmem:[%s9 + $0x10] sm:$0xff]
      %v1286 = vld [vmem:[%s9 + $0x18] sm:$0xff]
      %v1287 = vld [vmem:[%s9 + $0x20] sm:$0xff]
      %v1288 = vld [vmem:[%s9 + $0x28] sm:$0xff]
      %v1289 = vld [vmem:[%s9 + $0x30] sm:$0xff]
      %v1290 = vld [vmem:[%s9 + $0x38] sm:$0xff]
      %v1291 = vld [vmem:[%s9 + $0x40] sm:$0xff]
      %v1292 = vld [vmem:[%s9 + $0x48] sm:$0xff]
      %v1293 = vld [vmem:[%s9 + $0x50] sm:$0xff]
      %v1294 = vld [vmem:[%s9 + $0x58] sm:$0xff]
      %v1295 = vld [vmem:[%s9 + $0x60] sm:$0xff]
      %v1296 = vld [vmem:[%s9 + $0x68] sm:$0xff]
      %v1297 = vld [vmem:[%s9 + $0x70] sm:$0xff]
      %v1298 = vld [vmem:[%s9 + $0x78] sm:$0xff]
      %v1299 = vld [vmem:[%s9 + $0x80] sm:$0xff]
      %v1300 = vld [vmem:[%s9 + $0x88] sm:$0xff]
      %v1301 = vld [vmem:[%s9 + $0x90] sm:$0xff]
      %v1302 = vld [vmem:[%s9 + $0x98] sm:$0xff]
      %v1303 = vld [vmem:[%s9 + $0xa0] sm:$0xff]
      %v1304 = vld [vmem:[%s9 + $0xa8] sm:$0xff]
      %v1305 = vld [vmem:[%s9 + $0xb0] sm:$0xff]
      %v1306 = vld [vmem:[%s9 + $0xb8] sm:$0xff]
      %v1307 = vld [vmem:[%s9 + $0xc0] sm:$0xff]
      %v1308 = vld [vmem:[%s9 + $0xc8] sm:$0xff]
      %v1309 = vld [vmem:[%s9 + $0xd0] sm:$0xff]
      %v1310 = vld [vmem:[%s9 + $0xd8] sm:$0xff]
      %v1311 = vld [vmem:[%s9 + $0xe0] sm:$0xff]
      %v1312 = vld [vmem:[%s9 + $0xe8] sm:$0xff]
      %v1313 = vld [vmem:[%s9 + $0xf0] sm:$0xff]
      %v1314 = vld [vmem:[%s9 + $0xf8] sm:$0xff]
      %v1347 = vunpack.c.l.b16 %v1283
      %v1348 = vunpack.c.h.b16 %v1283
      %v1349 = vunpack.c.l.b16 %v1284
      %v1350 = vunpack.c.h.b16 %v1284
      %v1351 = vunpack.c.l.b16 %v1285
      %v1352 = vunpack.c.h.b16 %v1285
      %v1353 = vunpack.c.l.b16 %v1286
      %v1354 = vunpack.c.h.b16 %v1286
      %v1355 = vunpack.c.l.b16 %v1287
      %v1356 = vunpack.c.h.b16 %v1287
      %v1357 = vunpack.c.l.b16 %v1288
      %v1358 = vunpack.c.h.b16 %v1288
      %v1359 = vunpack.c.l.b16 %v1289
      %v1360 = vunpack.c.h.b16 %v1289
      %v1361 = vunpack.c.l.b16 %v1290
      %v1362 = vunpack.c.h.b16 %v1290
      %v1363 = vunpack.c.l.b16 %v1291
      %v1364 = vunpack.c.h.b16 %v1291
      %v1365 = vunpack.c.l.b16 %v1292
      %v1366 = vunpack.c.h.b16 %v1292
      %v1367 = vunpack.c.l.b16 %v1293
      %v1368 = vunpack.c.h.b16 %v1293
      %v1369 = vunpack.c.l.b16 %v1294
      %v1370 = vunpack.c.h.b16 %v1294
      %v1371 = vunpack.c.l.b16 %v1295
      %v1372 = vunpack.c.h.b16 %v1295
      %v1373 = vunpack.c.l.b16 %v1296
      %v1374 = vunpack.c.h.b16 %v1296
      %v1375 = vunpack.c.l.b16 %v1297
      %v1376 = vunpack.c.h.b16 %v1297
      %v1377 = vunpack.c.l.b16 %v1298
      %v1378 = vunpack.c.h.b16 %v1298
      %v1379 = vunpack.c.l.b16 %v1299
      %v1380 = vunpack.c.h.b16 %v1299
      %v1381 = vunpack.c.l.b16 %v1300
      %v1382 = vunpack.c.h.b16 %v1300
      %v1383 = vunpack.c.l.b16 %v1301
      %v1384 = vunpack.c.h.b16 %v1301
      %v1385 = vunpack.c.l.b16 %v1302
      %v1386 = vunpack.c.h.b16 %v1302
      %v1387 = vunpack.c.l.b16 %v1303
      %v1388 = vunpack.c.h.b16 %v1303
      %v1389 = vunpack.c.l.b16 %v1304
      %v1390 = vunpack.c.h.b16 %v1304
      %v1391 = vunpack.c.l.b16 %v1305
      %v1392 = vunpack.c.h.b16 %v1305
      %v1393 = vunpack.c.l.b16 %v1306
      %v1394 = vunpack.c.h.b16 %v1306
      %v1395 = vunpack.c.l.b16 %v1307
      %v1396 = vunpack.c.h.b16 %v1307
      %v1397 = vunpack.c.l.b16 %v1308
      %v1398 = vunpack.c.h.b16 %v1308
      %v1399 = vunpack.c.l.b16 %v1309
      %v1400 = vunpack.c.h.b16 %v1309
      %v1401 = vunpack.c.l.b16 %v1310
      %v1402 = vunpack.c.h.b16 %v1310
      %v1403 = vunpack.c.l.b16 %v1311
      %v1404 = vunpack.c.h.b16 %v1311
      %v1405 = vunpack.c.l.b16 %v1312
      %v1406 = vunpack.c.h.b16 %v1312
      %v1407 = vunpack.c.l.b16 %v1313
      %v1408 = vunpack.c.h.b16 %v1313
      %v1409 = vunpack.c.l.b16 %v1314
      %v1410 = vunpack.c.h.b16 %v1314
      %v1411 = vpack.c.b16 %v1349, %v1347
      %v1412 = vpack.c.b16 %v1350, %v1348
      %v1413 = vpack.c.b16 %v1353, %v1351
      %v1414 = vpack.c.b16 %v1354, %v1352
      %v1415 = vpack.c.b16 %v1357, %v1355
      %v1416 = vpack.c.b16 %v1358, %v1356
      %v1417 = vpack.c.b16 %v1361, %v1359
      %v1418 = vpack.c.b16 %v1362, %v1360
      %v1419 = vpack.c.b16 %v1365, %v1363
      %v1420 = vpack.c.b16 %v1366, %v1364
      %v1421 = vpack.c.b16 %v1369, %v1367
      %v1422 = vpack.c.b16 %v1370, %v1368
      %v1423 = vpack.c.b16 %v1373, %v1371
      %v1424 = vpack.c.b16 %v1374, %v1372
      %v1425 = vpack.c.b16 %v1377, %v1375
      %v1426 = vpack.c.b16 %v1378, %v1376
      %v1427 = vpack.c.b16 %v1381, %v1379
      %v1428 = vpack.c.b16 %v1382, %v1380
      %v1429 = vpack.c.b16 %v1385, %v1383
      %v1430 = vpack.c.b16 %v1386, %v1384
      %v1431 = vpack.c.b16 %v1389, %v1387
      %v1432 = vpack.c.b16 %v1390, %v1388
      %v1433 = vpack.c.b16 %v1393, %v1391
      %v1434 = vpack.c.b16 %v1394, %v1392
      %v1435 = vpack.c.b16 %v1397, %v1395
      %v1436 = vpack.c.b16 %v1398, %v1396
      %v1437 = vpack.c.b16 %v1401, %v1399
      %v1438 = vpack.c.b16 %v1402, %v1400
      %v1439 = vpack.c.b16 %v1405, %v1403
      %v1440 = vpack.c.b16 %v1406, %v1404
      %v1441 = vpack.c.b16 %v1409, %v1407
      %v1442 = vpack.c.b16 %v1410, %v1408
      %1475 = vmatprep.subr.bf16.mxu0 %v1426
      %1476 = vmatpush1.bf16.msra.mxu0 %v1425
      %1477 = vmatprep.subr.bf16.mxu0 %v1424
      %1478 = vmatpush1.bf16.msra.mxu0 %v1423
      %1479 = vmatprep.subr.bf16.mxu0 %v1422
      %1480 = vmatpush1.bf16.msra.mxu0 %v1421
      %1481 = vmatprep.subr.bf16.mxu0 %v1420
      %1482 = vmatpush1.bf16.msra.mxu0 %v1419
      %1483 = vmatprep.subr.bf16.mxu0 %v1418
      %1484 = vmatpush1.bf16.msra.mxu0 %v1417
      %1485 = vmatprep.subr.bf16.mxu0 %v1416
      %1486 = vmatpush1.bf16.msra.mxu0 %v1415
      %1487 = vmatprep.subr.bf16.mxu0 %v1414
      %1488 = vmatpush1.bf16.msra.mxu0 %v1413
      %1489 = vmatprep.subr.bf16.mxu0 %v1412
      %1490 = vmatpush1.bf16.msra.mxu0 %v1411
      %1491 = vmatprep.subr.bf16.mxu0 %v1442
      %1492 = vmatpush2.bf16.msra.mxu0 %v1441
      %1493 = vmatprep.subr.bf16.mxu0 %v1440
      %1494 = vmatpush2.bf16.msra.mxu0 %v1439
      %1495 = vmatprep.subr.bf16.mxu0 %v1438
      %1496 = vmatpush2.bf16.msra.mxu0 %v1437
      %1497 = vmatprep.subr.bf16.mxu0 %v1436
      %1498 = vmatpush2.bf16.msra.mxu0 %v1435
      %1499 = vmatprep.subr.bf16.mxu0 %v1434
      %1500 = vmatpush2.bf16.msra.mxu0 %v1433
      %1501 = vmatprep.subr.bf16.mxu0 %v1432
      %1502 = vmatpush2.bf16.msra.mxu0 %v1431
      %1503 = vmatprep.subr.bf16.mxu0 %v1430
      %1504 = vmatpush2.bf16.msra.mxu0 %v1429
      %1505 = vmatprep.subr.bf16.mxu0 %v1428
      %1506 = vmatpush2.bf16.msra.mxu0 %v1427
      %1507 = vmatprep.mubr.bf16.mxu0 %v1272
      %1508 = vmatmul.mubr.bf16.gmra.mxu0 %v1271
      %v1509 = vpop.f32.mrf.mxu0
      %v1510 = vadd.f32 0.0, %v1509
      %v1511 = vpop.f32.mrf.mxu0
      %v1512 = vadd.f32 0.0, %v1511
      %v1513 = vpop.f32.mrf.mxu0
      %v1514 = vadd.f32 0.0, %v1513
      %v1515 = vpop.f32.mrf.mxu0
      %v1516 = vadd.f32 0.0, %v1515
      %1517 = vmatprep.mubr.bf16.mxu0 %v1274
      %1518 = vmatmul.mubr.bf16.gmra.mxu0 %v1273
      %v1519 = vpop.f32.mrf.mxu0
      %v1520 = vadd.f32 0.0, %v1519
      %v1521 = vpop.f32.mrf.mxu0
      %v1522 = vadd.f32 0.0, %v1521
      %v1523 = vpop.f32.mrf.mxu0
      %v1524 = vadd.f32 0.0, %v1523
      %v1525 = vpop.f32.mrf.mxu0
      %v1526 = vadd.f32 0.0, %v1525
      %1527 = vmatprep.mubr.bf16.mxu0 %v1276
      %1528 = vmatmul.mubr.bf16.gmra.mxu0 %v1275
      %v1529 = vpop.f32.mrf.mxu0
      %v1530 = vadd.f32 0.0, %v1529
      %v1531 = vpop.f32.mrf.mxu0
      %v1532 = vadd.f32 0.0, %v1531
      %v1533 = vpop.f32.mrf.mxu0
      %v1534 = vadd.f32 0.0, %v1533
      %v1535 = vpop.f32.mrf.mxu0
      %v1536 = vadd.f32 0.0, %v1535
      %1537 = vmatprep.mubr.bf16.mxu0 %v1278
      %1538 = vmatmul.mubr.bf16.gmra.mxu0 %v1277
      %v1539 = vpop.f32.mrf.mxu0
      %v1540 = vadd.f32 0.0, %v1539
      %v1541 = vpop.f32.mrf.mxu0
      %v1542 = vadd.f32 0.0, %v1541
      %v1543 = vpop.f32.mrf.mxu0
      %v1544 = vadd.f32 0.0, %v1543
      %v1545 = vpop.f32.mrf.mxu0
      %v1546 = vadd.f32 0.0, %v1545
      %1547 = vmatprep.mubr.bf16.mxu0 %v1280
      %1548 = vmatmul.mubr.bf16.gmra.mxu0 %v1279
      %v1549 = vpop.f32.mrf.mxu0
      %v1550 = vadd.f32 0.0, %v1549
      %v1551 = vpop.f32.mrf.mxu0
      %v1552 = vadd.f32 0.0, %v1551
      %v1553 = vpop.f32.mrf.mxu0
      %v1554 = vadd.f32 0.0, %v1553
      %v1555 = vpop.f32.mrf.mxu0
      %v1556 = vadd.f32 0.0, %v1555
      %1557 = vmatprep.mubr.bf16.mxu0 %v1282
      %1558 = vmatmul.mubr.bf16.gmra.mxu0 %v1281
      %v1559 = vpop.f32.mrf.mxu0
      %v1560 = vadd.f32 0.0, %v1559
      %v1561 = vpop.f32.mrf.mxu0
      %v1562 = vadd.f32 0.0, %v1561
      %v1563 = vpop.f32.mrf.mxu0
      %v1564 = vadd.f32 0.0, %v1563
      %v1565 = vpop.f32.mrf.mxu0
      %v1566 = vadd.f32 0.0, %v1565
      %1567 = vdwg.mxu0
      %1568 = vst [vmem:[#allocation2] sm:$0xff] %v1510
      %1569 = vst [vmem:[#allocation2 + $0x8] sm:$0xff] %v1512
      %1570 = vst [vmem:[#allocation2 + $0x10] sm:$0xff] %v1514
      %1571 = vst [vmem:[#allocation2 + $0x18] sm:$0xff] %v1516
      %1572 = vst [vmem:[#allocation2 + $0x20] sm:$0xff] %v1520
      %1573 = vst [vmem:[#allocation2 + $0x28] sm:$0xff] %v1522
      %1574 = vst [vmem:[#allocation2 + $0x30] sm:$0xff] %v1524
      %1575 = vst [vmem:[#allocation2 + $0x38] sm:$0xff] %v1526
      %1576 = vst [vmem:[#allocation2 + $0x40] sm:$0xff] %v1530
      %1577 = vst [vmem:[#allocation2 + $0x48] sm:$0xff] %v1532
      %1578 = vst [vmem:[#allocation2 + $0x50] sm:$0xff] %v1534
      %1579 = vst [vmem:[#allocation2 + $0x58] sm:$0xff] %v1536
      %1580 = vst [vmem:[#allocation2 + $0x60] sm:$0xff] %v1540
      %1581 = vst [vmem:[#allocation2 + $0x68] sm:$0xff] %v1542
      %1582 = vst [vmem:[#allocation2 + $0x70] sm:$0xff] %v1544
      %1583 = vst [vmem:[#allocation2 + $0x78] sm:$0xff] %v1546
      %1584 = vst [vmem:[#allocation2 + $0x80] sm:$0xff] %v1550
      %1585 = vst [vmem:[#allocation2 + $0x88] sm:$0xff] %v1552
      %1586 = vst [vmem:[#allocation2 + $0x90] sm:$0xff] %v1554
      %1587 = vst [vmem:[#allocation2 + $0x98] sm:$0xff] %v1556
      %1588 = vst [vmem:[#allocation2 + $0xa0] sm:$0xff] %v1560
      %1589 = vst [vmem:[#allocation2 + $0xa8] sm:$0xff] %v1562
      %1590 = vst [vmem:[#allocation2 + $0xb0] sm:$0xff] %v1564
      %1591 = vst [vmem:[#allocation2 + $0xb8] sm:$0xff] %v1566
      %v1610 = vunpack.c.l.b16 %v857
      %v1611 = vunpack.c.l.b16 %v858
      %v1612 = vunpack.c.l.b16 %v859
      %v1613 = vunpack.c.l.b16 %v861
      %v1614 = vunpack.c.l.b16 %v862
      %v1615 = vunpack.c.l.b16 %v863
      %v1616 = vunpack.c.l.b16 %v865
      %v1617 = vunpack.c.l.b16 %v866
      %v1618 = vunpack.c.l.b16 %v867
      %v1619 = vunpack.c.l.b16 %v869
      %v1620 = vunpack.c.l.b16 %v870
      %v1621 = vunpack.c.l.b16 %v871
      %v1622 = vunpack.c.l.b16 %v873
      %v1623 = vunpack.c.l.b16 %v874
      %v1624 = vunpack.c.l.b16 %v875
      %v1625 = vunpack.c.l.b16 %v877
      %v1626 = vunpack.c.l.b16 %v878
      %v1627 = vunpack.c.l.b16 %v879
      %v1628 = vpack.c.b16 %v1611, %v1610
      %v1629 = vpack.c.b16 %v1612, %v1612
      %v1630 = vpack.c.b16 %v1614, %v1613
      %v1631 = vpack.c.b16 %v1615, %v1615
      %v1632 = vpack.c.b16 %v1617, %v1616
      %v1633 = vpack.c.b16 %v1618, %v1618
      %v1634 = vpack.c.b16 %v1620, %v1619
      %v1635 = vpack.c.b16 %v1621, %v1621
      %v1636 = vpack.c.b16 %v1623, %v1622
      %v1637 = vpack.c.b16 %v1624, %v1624
      %v1638 = vpack.c.b16 %v1626, %v1625
      %v1639 = vpack.c.b16 %v1627, %v1627
      %v1646 = vunpack.c.l.b16 %v860
      %v1647 = vunpack.c.l.b16 %v864
      %v1648 = vunpack.c.l.b16 %v868
      %v1649 = vunpack.c.l.b16 %v872
      %v1650 = vunpack.c.l.b16 %v876
      %v1651 = vunpack.c.l.b16 %v880
      %v1652 = vpack.c.b16 %v1612, %v1611
      %v1653 = vpack.c.b16 %v1646, %v1646
      %v1654 = vpack.c.b16 %v1615, %v1614
      %v1655 = vpack.c.b16 %v1647, %v1647
      %v1656 = vpack.c.b16 %v1618, %v1617
      %v1657 = vpack.c.b16 %v1648, %v1648
      %v1658 = vpack.c.b16 %v1621, %v1620
      %v1659 = vpack.c.b16 %v1649, %v1649
      %v1660 = vpack.c.b16 %v1624, %v1623
      %v1661 = vpack.c.b16 %v1650, %v1650
      %v1662 = vpack.c.b16 %v1627, %v1626
      %v1663 = vpack.c.b16 %v1651, %v1651
      %vm1664 = vcmask 1040384
      %v1665 = vrot.slane %v1652, 7
      %v1666 = vrot.slane %v1653, 7
      %v1667 = vsel %vm1664, %v1665, %v1666
      %v1668 = vrot.slane %v1654, 7
      %v1669 = vrot.slane %v1655, 7
      %v1670 = vsel %vm1664, %v1668, %v1669
      %v1671 = vrot.slane %v1656, 7
      %v1672 = vrot.slane %v1657, 7
      %v1673 = vsel %vm1664, %v1671, %v1672
      %v1674 = vrot.slane %v1658, 7
      %v1675 = vrot.slane %v1659, 7
      %v1676 = vsel %vm1664, %v1674, %v1675
      %v1677 = vrot.slane %v1660, 7
      %v1678 = vrot.slane %v1661, 7
      %v1679 = vsel %vm1664, %v1677, %v1678
      %v1680 = vrot.slane %v1662, 7
      %v1681 = vrot.slane %v1663, 7
      %v1682 = vsel %vm1664, %v1680, %v1681
      %1683 = vrot.lane.b32.xlu0 %v1665, 4
      %v1684 = vpop.permute.xlu0 %1683
      %1685 = vrot.lane.b32.xlu0 %v1667, 4
      %v1686 = vpop.permute.xlu0 %1685
      %1687 = vrot.lane.b32.xlu0 %v1668, 4
      %v1688 = vpop.permute.xlu0 %1687
      %1689 = vrot.lane.b32.xlu0 %v1670, 4
      %v1690 = vpop.permute.xlu0 %1689
      %1691 = vrot.lane.b32.xlu0 %v1671, 4
      %v1692 = vpop.permute.xlu0 %1691
      %1693 = vrot.lane.b32.xlu0 %v1673, 4
      %v1694 = vpop.permute.xlu0 %1693
      %1695 = vrot.lane.b32.xlu0 %v1674, 4
      %v1696 = vpop.permute.xlu0 %1695
      %1697 = vrot.lane.b32.xlu0 %v1676, 4
      %v1698 = vpop.permute.xlu0 %1697
      %1699 = vrot.lane.b32.xlu0 %v1677, 4
      %v1700 = vpop.permute.xlu0 %1699
      %1701 = vrot.lane.b32.xlu0 %v1679, 4
      %v1702 = vpop.permute.xlu0 %1701
      %1703 = vrot.lane.b32.xlu0 %v1680, 4
      %v1704 = vpop.permute.xlu0 %1703
      %1705 = vrot.lane.b32.xlu0 %v1682, 4
      %v1706 = vpop.permute.xlu0 %1705
      %v1707 = vpack.c.b16 %v1646, %v1612
      %v1708 = vpack.c.b16 %v1647, %v1615
      %v1709 = vpack.c.b16 %v1648, %v1618
      %v1710 = vpack.c.b16 %v1649, %v1621
      %v1711 = vpack.c.b16 %v1650, %v1624
      %v1712 = vpack.c.b16 %v1651, %v1627
      %v1713 = vrot.slane %v1707, 6
      %v1714 = vrot.slane %v1708, 6
      %v1715 = vrot.slane %v1709, 6
      %v1716 = vrot.slane %v1710, 6
      %v1717 = vrot.slane %v1711, 6
      %v1718 = vrot.slane %v1712, 6
      %1719 = vrot.lane.b32.xlu0 %v1713, 8
      %v1720 = vpop.permute.xlu0 %1719
      %1721 = vrot.lane.b32.xlu0 %v1714, 8
      %v1722 = vpop.permute.xlu0 %1721
      %1723 = vrot.lane.b32.xlu0 %v1715, 8
      %v1724 = vpop.permute.xlu0 %1723
      %1725 = vrot.lane.b32.xlu0 %v1716, 8
      %v1726 = vpop.permute.xlu0 %1725
      %1727 = vrot.lane.b32.xlu0 %v1717, 8
      %v1728 = vpop.permute.xlu0 %1727
      %1729 = vrot.lane.b32.xlu0 %v1718, 8
      %v1730 = vpop.permute.xlu0 %1729
      %v1733 = vsel %vm1128, %v1628, %v1684
      %v1736 = vsel %vm1128, %v1629, %v1686
      %v1739 = vsel %vm1128, %v1630, %v1688
      %v1742 = vsel %vm1128, %v1631, %v1690
      %v1745 = vsel %vm1128, %v1632, %v1692
      %v1748 = vsel %vm1128, %v1633, %v1694
      %v1751 = vsel %vm1128, %v1634, %v1696
      %v1754 = vsel %vm1128, %v1635, %v1698
      %v1757 = vsel %vm1128, %v1636, %v1700
      %v1760 = vsel %vm1128, %v1637, %v1702
      %v1763 = vsel %vm1128, %v1638, %v1704
      %v1766 = vsel %vm1128, %v1639, %v1706
      %vm1767 = vcmask 64512
      %v1769 = vsel %vm1767, %v1733, %v1720
      %v1770 = vsel %vm1767, %v1736, %v1720
      %v1772 = vsel %vm1767, %v1739, %v1722
      %v1773 = vsel %vm1767, %v1742, %v1722
      %v1775 = vsel %vm1767, %v1745, %v1724
      %v1776 = vsel %vm1767, %v1748, %v1724
      %v1778 = vsel %vm1767, %v1751, %v1726
      %v1779 = vsel %vm1767, %v1754, %v1726
      %v1781 = vsel %vm1767, %v1757, %v1728
      %v1782 = vsel %vm1767, %v1760, %v1728
      %v1784 = vsel %vm1767, %v1763, %v1730
      %v1785 = vsel %vm1767, %v1766, %v1730
      %vm1798 = vcmask 1045504
      %v1799 = vrot.slane %v1769, 2
      %v1800 = vrot.slane %v1770, 2
      %v1801 = vsel %vm1798, %v1799, %v1800
      %v1802 = vrot.slane %v1772, 2
      %v1803 = vrot.slane %v1773, 2
      %v1804 = vsel %vm1798, %v1802, %v1803
      %v1805 = vrot.slane %v1775, 2
      %v1806 = vrot.slane %v1776, 2
      %v1807 = vsel %vm1798, %v1805, %v1806
      %v1808 = vrot.slane %v1778, 2
      %v1809 = vrot.slane %v1779, 2
      %v1810 = vsel %vm1798, %v1808, %v1809
      %v1811 = vrot.slane %v1781, 2
      %v1812 = vrot.slane %v1782, 2
      %v1813 = vsel %vm1798, %v1811, %v1812
      %v1814 = vrot.slane %v1784, 2
      %v1815 = vrot.slane %v1785, 2
      %v1816 = vsel %vm1798, %v1814, %v1815
      %v1817 = vld [vmem:[%s8] sm:$0xff]
      %v1818 = vld [vmem:[%s8 + $0x8] sm:$0x33]
      %v1825 = vunpack.c.l.b16 %v882
      %v1826 = vunpack.c.l.b16 %v883
      %v1827 = vunpack.c.l.b16 %v884
      %v1828 = vunpack.c.l.b16 %v889
      %v1829 = vunpack.c.l.b16 %v890
      %v1830 = vunpack.c.l.b16 %v891
      %v1831 = vunpack.c.l.b16 %v896
      %v1832 = vunpack.c.l.b16 %v897
      %v1833 = vunpack.c.l.b16 %v898
      %v1834 = vunpack.c.l.b16 %v903
      %v1835 = vunpack.c.l.b16 %v904
      %v1836 = vunpack.c.l.b16 %v905
      %v1837 = vunpack.c.l.b16 %v910
      %v1838 = vunpack.c.l.b16 %v911
      %v1839 = vunpack.c.l.b16 %v912
      %v1840 = vunpack.c.l.b16 %v917
      %v1841 = vunpack.c.l.b16 %v918
      %v1842 = vunpack.c.l.b16 %v919
      %v1843 = vpack.c.b16 %v1826, %v1825
      %v1844 = vpack.c.b16 %v1827, %v1827
      %v1845 = vpack.c.b16 %v1829, %v1828
      %v1846 = vpack.c.b16 %v1830, %v1830
      %v1847 = vpack.c.b16 %v1832, %v1831
      %v1848 = vpack.c.b16 %v1833, %v1833
      %v1849 = vpack.c.b16 %v1835, %v1834
      %v1850 = vpack.c.b16 %v1836, %v1836
      %v1851 = vpack.c.b16 %v1838, %v1837
      %v1852 = vpack.c.b16 %v1839, %v1839
      %v1853 = vpack.c.b16 %v1841, %v1840
      %v1854 = vpack.c.b16 %v1842, %v1842
      %v1855 = vunpack.c.l.b16 %v885
      %v1856 = vunpack.c.l.b16 %v892
      %v1857 = vunpack.c.l.b16 %v899
      %v1858 = vunpack.c.l.b16 %v906
      %v1859 = vunpack.c.l.b16 %v913
      %v1860 = vunpack.c.l.b16 %v920
      %v1861 = vpack.c.b16 %v1827, %v1826
      %v1862 = vpack.c.b16 %v1855, %v1855
      %v1863 = vpack.c.b16 %v1830, %v1829
      %v1864 = vpack.c.b16 %v1856, %v1856
      %v1865 = vpack.c.b16 %v1833, %v1832
      %v1866 = vpack.c.b16 %v1857, %v1857
      %v1867 = vpack.c.b16 %v1836, %v1835
      %v1868 = vpack.c.b16 %v1858, %v1858
      %v1869 = vpack.c.b16 %v1839, %v1838
      %v1870 = vpack.c.b16 %v1859, %v1859
      %v1871 = vpack.c.b16 %v1842, %v1841
      %v1872 = vpack.c.b16 %v1860, %v1860
      %v1873 = vrot.slane %v1861, 7
      %v1874 = vrot.slane %v1862, 7
      %v1875 = vsel %vm1664, %v1873, %v1874
      %v1876 = vrot.slane %v1863, 7
      %v1877 = vrot.slane %v1864, 7
      %v1878 = vsel %vm1664, %v1876, %v1877
      %v1879 = vrot.slane %v1865, 7
      %v1880 = vrot.slane %v1866, 7
      %v1881 = vsel %vm1664, %v1879, %v1880
      %v1882 = vrot.slane %v1867, 7
      %v1883 = vrot.slane %v1868, 7
      %v1884 = vsel %vm1664, %v1882, %v1883
      %v1885 = vrot.slane %v1869, 7
      %v1886 = vrot.slane %v1870, 7
      %v1887 = vsel %vm1664, %v1885, %v1886
      %v1888 = vrot.slane %v1871, 7
      %v1889 = vrot.slane %v1872, 7
      %v1890 = vsel %vm1664, %v1888, %v1889
      %1891 = vrot.lane.b32.xlu0 %v1873, 4
      %v1892 = vpop.permute.xlu0 %1891
      %1893 = vrot.lane.b32.xlu0 %v1875, 4
      %v1894 = vpop.permute.xlu0 %1893
      %1895 = vrot.lane.b32.xlu0 %v1876, 4
      %v1896 = vpop.permute.xlu0 %1895
      %1897 = vrot.lane.b32.xlu0 %v1878, 4
      %v1898 = vpop.permute.xlu0 %1897
      %1899 = vrot.lane.b32.xlu0 %v1879, 4
      %v1900 = vpop.permute.xlu0 %1899
      %1901 = vrot.lane.b32.xlu0 %v1881, 4
      %v1902 = vpop.permute.xlu0 %1901
      %1903 = vrot.lane.b32.xlu0 %v1882, 4
      %v1904 = vpop.permute.xlu0 %1903
      %1905 = vrot.lane.b32.xlu0 %v1884, 4
      %v1906 = vpop.permute.xlu0 %1905
      %1907 = vrot.lane.b32.xlu0 %v1885, 4
      %v1908 = vpop.permute.xlu0 %1907
      %1909 = vrot.lane.b32.xlu0 %v1887, 4
      %v1910 = vpop.permute.xlu0 %1909
      %1911 = vrot.lane.b32.xlu0 %v1888, 4
      %v1912 = vpop.permute.xlu0 %1911
      %1913 = vrot.lane.b32.xlu0 %v1890, 4
      %v1914 = vpop.permute.xlu0 %1913
      %v1915 = vpack.c.b16 %v1855, %v1827
      %v1916 = vpack.c.b16 %v1856, %v1830
      %v1917 = vpack.c.b16 %v1857, %v1833
      %v1918 = vpack.c.b16 %v1858, %v1836
      %v1919 = vpack.c.b16 %v1859, %v1839
      %v1920 = vpack.c.b16 %v1860, %v1842
      %v1921 = vrot.slane %v1915, 6
      %v1922 = vrot.slane %v1916, 6
      %v1923 = vrot.slane %v1917, 6
      %v1924 = vrot.slane %v1918, 6
      %v1925 = vrot.slane %v1919, 6
      %v1926 = vrot.slane %v1920, 6
      %1927 = vrot.lane.b32.xlu0 %v1921, 8
      %v1928 = vpop.permute.xlu0 %1927
      %1929 = vrot.lane.b32.xlu0 %v1922, 8
      %v1930 = vpop.permute.xlu0 %1929
      %1931 = vrot.lane.b32.xlu0 %v1923, 8
      %v1932 = vpop.permute.xlu0 %1931
      %1933 = vrot.lane.b32.xlu0 %v1924, 8
      %v1934 = vpop.permute.xlu0 %1933
      %1935 = vrot.lane.b32.xlu0 %v1925, 8
      %v1936 = vpop.permute.xlu0 %1935
      %1937 = vrot.lane.b32.xlu0 %v1926, 8
      %v1938 = vpop.permute.xlu0 %1937
      %v1941 = vsel %vm1128, %v1843, %v1892
      %v1944 = vsel %vm1128, %v1844, %v1894
      %v1947 = vsel %vm1128, %v1845, %v1896
      %v1950 = vsel %vm1128, %v1846, %v1898
      %v1953 = vsel %vm1128, %v1847, %v1900
      %v1956 = vsel %vm1128, %v1848, %v1902
      %v1959 = vsel %vm1128, %v1849, %v1904
      %v1962 = vsel %vm1128, %v1850, %v1906
      %v1965 = vsel %vm1128, %v1851, %v1908
      %v1968 = vsel %vm1128, %v1852, %v1910
      %v1971 = vsel %vm1128, %v1853, %v1912
      %v1974 = vsel %vm1128, %v1854, %v1914
      %v1976 = vsel %vm1767, %v1941, %v1928
      %v1977 = vsel %vm1767, %v1944, %v1928
      %v1979 = vsel %vm1767, %v1947, %v1930
      %v1980 = vsel %vm1767, %v1950, %v1930
      %v1982 = vsel %vm1767, %v1953, %v1932
      %v1983 = vsel %vm1767, %v1956, %v1932
      %v1985 = vsel %vm1767, %v1959, %v1934
      %v1986 = vsel %vm1767, %v1962, %v1934
      %v1988 = vsel %vm1767, %v1965, %v1936
      %v1989 = vsel %vm1767, %v1968, %v1936
      %v1991 = vsel %vm1767, %v1971, %v1938
      %v1992 = vsel %vm1767, %v1974, %v1938
      %v2005 = vrot.slane %v1976, 2
      %v2006 = vrot.slane %v1977, 2
      %v2007 = vsel %vm1798, %v2005, %v2006
      %v2008 = vrot.slane %v1979, 2
      %v2009 = vrot.slane %v1980, 2
      %v2010 = vsel %vm1798, %v2008, %v2009
      %v2011 = vrot.slane %v1982, 2
      %v2012 = vrot.slane %v1983, 2
      %v2013 = vsel %vm1798, %v2011, %v2012
      %v2014 = vrot.slane %v1985, 2
      %v2015 = vrot.slane %v1986, 2
      %v2016 = vsel %vm1798, %v2014, %v2015
      %v2017 = vrot.slane %v1988, 2
      %v2018 = vrot.slane %v1989, 2
      %v2019 = vsel %vm1798, %v2017, %v2018
      %v2020 = vrot.slane %v1991, 2
      %v2021 = vrot.slane %v1992, 2
      %v2022 = vsel %vm1798, %v2020, %v2021
      %s2023 = scalar_lea.vmem %s8, 16
      %v2024 = vld [vmem:[%s2023] sm:$0xff]
      %v2025 = vld [vmem:[%s2023 + $0x8] sm:$0x33]
      %v2028 = vunpack.c.l.b16 %v2024
      %v2029 = vunpack.c.h.b16 %v2024
      %v2030 = vunpack.c.l.b16 %v2025
      %v2031 = vunpack.c.h.b16 %v2025
      %v2032 = vpack.c.b16 %v2030, %v2028
      %v2033 = vpack.c.b16 %v2031, %v2029
      %vm2034 = vcmask 97280
      %v2036 = vsel %vm2034, %v2007, 0
      %v2039 = vsel %vm2034, %v2010, 0
      %v2042 = vsel %vm2034, %v2013, 0
      %v2045 = vsel %vm2034, %v2016, 0
      %v2048 = vsel %vm2034, %v2019, 0
      %v2051 = vsel %vm2034, %v2022, 0
      %vm2053 = vcmask 1045504
      %v2055 = vsel %vm2053, %v2032, 0
      %v2058 = vsel %vm2053, %v2033, 0
      %2060 = vmatprep.subr.bf16.mxu0 0
      %2061 = vmatpush1.bf16.msra.mxu0 0
      %2062 = vmatprep.subr.bf16.mxu0 0
      %2063 = vmatpush1.bf16.msra.mxu0 0
      %2064 = vmatprep.subr.bf16.mxu0 0
      %2065 = vmatpush1.bf16.msra.mxu0 0
      %2066 = vmatprep.subr.bf16.mxu0 0
      %2067 = vmatpush1.bf16.msra.mxu0 0
      %2068 = vmatprep.subr.bf16.mxu0 0
      %2069 = vmatpush1.bf16.msra.mxu0 0
      %2070 = vmatprep.subr.bf16.mxu0 0
      %2071 = vmatpush1.bf16.msra.mxu0 0
      %2072 = vmatprep.subr.bf16.mxu0 0
      %2073 = vmatpush1.bf16.msra.mxu0 0
      %2074 = vmatprep.subr.bf16.mxu0 %v2058
      %2075 = vmatpush1.bf16.msra.mxu0 %v2055
      %2076 = vmatprep.subr.bf16.mxu0 0
      %2077 = vmatpush2.bf16.msra.mxu0 0
      %2078 = vmatprep.subr.bf16.mxu0 0
      %2079 = vmatpush2.bf16.msra.mxu0 0
      %2080 = vmatprep.subr.bf16.mxu0 0
      %2081 = vmatpush2.bf16.msra.mxu0 0
      %2082 = vmatprep.subr.bf16.mxu0 0
      %2083 = vmatpush2.bf16.msra.mxu0 0
      %2084 = vmatprep.subr.bf16.mxu0 0
      %2085 = vmatpush2.bf16.msra.mxu0 0
      %2086 = vmatprep.subr.bf16.mxu0 0
      %2087 = vmatpush2.bf16.msra.mxu0 0
      %2088 = vmatprep.subr.bf16.mxu0 0
      %2089 = vmatpush2.bf16.msra.mxu0 0
      %2090 = vmatprep.subr.bf16.mxu0 0
      %2091 = vmatpush2.bf16.msra.mxu0 0
      %2092 = vmatprep.mubr.bf16.mxu0 0
      %2093 = vmatmul.mubr.bf16.gmra.mxu0 %v2036
      %v2094 = vpop.f32.mrf.mxu0
      %v2095 = vadd.f32 0.0, %v2094
      %v2096 = vpop.f32.mrf.mxu0
      %v2097 = vadd.f32 0.0, %v2096
      %v2098 = vpop.f32.mrf.mxu0
      %v2099 = vadd.f32 0.0, %v2098
      %v2100 = vpop.f32.mrf.mxu0
      %v2101 = vadd.f32 0.0, %v2100
      %2102 = vmatprep.mubr.bf16.mxu0 0
      %2103 = vmatmul.mubr.bf16.gmra.mxu0 %v2039
      %v2104 = vpop.f32.mrf.mxu0
      %v2105 = vadd.f32 0.0, %v2104
      %v2106 = vpop.f32.mrf.mxu0
      %v2107 = vadd.f32 0.0, %v2106
      %v2108 = vpop.f32.mrf.mxu0
      %v2109 = vadd.f32 0.0, %v2108
      %v2110 = vpop.f32.mrf.mxu0
      %v2111 = vadd.f32 0.0, %v2110
      %2112 = vmatprep.mubr.bf16.mxu0 0
      %2113 = vmatmul.mubr.bf16.gmra.mxu0 %v2042
      %v2114 = vpop.f32.mrf.mxu0
      %v2115 = vadd.f32 0.0, %v2114
      %v2116 = vpop.f32.mrf.mxu0
      %v2117 = vadd.f32 0.0, %v2116
      %v2118 = vpop.f32.mrf.mxu0
      %v2119 = vadd.f32 0.0, %v2118
      %v2120 = vpop.f32.mrf.mxu0
      %v2121 = vadd.f32 0.0, %v2120
      %2122 = vmatprep.mubr.bf16.mxu0 0
      %2123 = vmatmul.mubr.bf16.gmra.mxu0 %v2045
      %v2124 = vpop.f32.mrf.mxu0
      %v2125 = vadd.f32 0.0, %v2124
      %v2126 = vpop.f32.mrf.mxu0
      %v2127 = vadd.f32 0.0, %v2126
      %v2128 = vpop.f32.mrf.mxu0
      %v2129 = vadd.f32 0.0, %v2128
      %v2130 = vpop.f32.mrf.mxu0
      %v2131 = vadd.f32 0.0, %v2130
      %2132 = vmatprep.mubr.bf16.mxu0 0
      %2133 = vmatmul.mubr.bf16.gmra.mxu0 %v2048
      %v2134 = vpop.f32.mrf.mxu0
      %v2135 = vadd.f32 0.0, %v2134
      %v2136 = vpop.f32.mrf.mxu0
      %v2137 = vadd.f32 0.0, %v2136
      %v2138 = vpop.f32.mrf.mxu0
      %v2139 = vadd.f32 0.0, %v2138
      %v2140 = vpop.f32.mrf.mxu0
      %v2141 = vadd.f32 0.0, %v2140
      %2142 = vmatprep.mubr.bf16.mxu0 0
      %2143 = vmatmul.mubr.bf16.gmra.mxu0 %v2051
      %v2144 = vpop.f32.mrf.mxu0
      %v2145 = vadd.f32 0.0, %v2144
      %v2146 = vpop.f32.mrf.mxu0
      %v2147 = vadd.f32 0.0, %v2146
      %v2148 = vpop.f32.mrf.mxu0
      %v2149 = vadd.f32 0.0, %v2148
      %v2150 = vpop.f32.mrf.mxu0
      %v2151 = vadd.f32 0.0, %v2150
      %2152 = vdwg.mxu0
      %v2155 = vunpack.c.l.b16 %v1817
      %v2156 = vunpack.c.h.b16 %v1817
      %v2157 = vunpack.c.l.b16 %v1818
      %v2158 = vunpack.c.h.b16 %v1818
      %v2159 = vpack.c.b16 %v2157, %v2155
      %v2160 = vpack.c.b16 %v2158, %v2156
      %v2162 = vsel %vm2034, %v1801, 0
      %v2165 = vsel %vm2034, %v1804, 0
      %v2168 = vsel %vm2034, %v1807, 0
      %v2171 = vsel %vm2034, %v1810, 0
      %v2174 = vsel %vm2034, %v1813, 0
      %v2177 = vsel %vm2034, %v1816, 0
      %v2180 = vsel %vm2053, %v2159, 0
      %v2183 = vsel %vm2053, %v2160, 0
      %2185 = vmatprep.subr.bf16.mxu0 0
      %2186 = vmatpush1.bf16.msra.mxu0 0
      %2187 = vmatprep.subr.bf16.mxu0 0
      %2188 = vmatpush1.bf16.msra.mxu0 0
      %2189 = vmatprep.subr.bf16.mxu0 0
      %2190 = vmatpush1.bf16.msra.mxu0 0
      %2191 = vmatprep.subr.bf16.mxu0 0
      %2192 = vmatpush1.bf16.msra.mxu0 0
      %2193 = vmatprep.subr.bf16.mxu0 0
      %2194 = vmatpush1.bf16.msra.mxu0 0
      %2195 = vmatprep.subr.bf16.mxu0 0
      %2196 = vmatpush1.bf16.msra.mxu0 0
      %2197 = vmatprep.subr.bf16.mxu0 0
      %2198 = vmatpush1.bf16.msra.mxu0 0
      %2199 = vmatprep.subr.bf16.mxu0 %v2183
      %2200 = vmatpush1.bf16.msra.mxu0 %v2180
      %2201 = vmatprep.subr.bf16.mxu0 0
      %2202 = vmatpush2.bf16.msra.mxu0 0
      %2203 = vmatprep.subr.bf16.mxu0 0
      %2204 = vmatpush2.bf16.msra.mxu0 0
      %2205 = vmatprep.subr.bf16.mxu0 0
      %2206 = vmatpush2.bf16.msra.mxu0 0
      %2207 = vmatprep.subr.bf16.mxu0 0
      %2208 = vmatpush2.bf16.msra.mxu0 0
      %2209 = vmatprep.subr.bf16.mxu0 0
      %2210 = vmatpush2.bf16.msra.mxu0 0
      %2211 = vmatprep.subr.bf16.mxu0 0
      %2212 = vmatpush2.bf16.msra.mxu0 0
      %2213 = vmatprep.subr.bf16.mxu0 0
      %2214 = vmatpush2.bf16.msra.mxu0 0
      %2215 = vmatprep.subr.bf16.mxu0 0
      %2216 = vmatpush2.bf16.msra.mxu0 0
      %2217 = vmatprep.mubr.bf16.mxu0 0
      %2218 = vmatmul.mubr.bf16.gmra.mxu0 %v2162
      %v2219 = vpop.f32.mrf.mxu0
      %v2220 = vadd.f32 %v2095, %v2219
      %v2221 = vpop.f32.mrf.mxu0
      %v2222 = vadd.f32 %v2097, %v2221
      %v2223 = vpop.f32.mrf.mxu0
      %v2224 = vadd.f32 %v2099, %v2223
      %v2225 = vpop.f32.mrf.mxu0
      %v2226 = vadd.f32 %v2101, %v2225
      %2227 = vmatprep.mubr.bf16.mxu0 0
      %2228 = vmatmul.mubr.bf16.gmra.mxu0 %v2165
      %v2229 = vpop.f32.mrf.mxu0
      %v2230 = vadd.f32 %v2105, %v2229
      %v2231 = vpop.f32.mrf.mxu0
      %v2232 = vadd.f32 %v2107, %v2231
      %v2233 = vpop.f32.mrf.mxu0
      %v2234 = vadd.f32 %v2109, %v2233
      %v2235 = vpop.f32.mrf.mxu0
      %v2236 = vadd.f32 %v2111, %v2235
      %2237 = vmatprep.mubr.bf16.mxu0 0
      %2238 = vmatmul.mubr.bf16.gmra.mxu0 %v2168
      %v2239 = vpop.f32.mrf.mxu0
      %v2240 = vadd.f32 %v2115, %v2239
      %v2241 = vpop.f32.mrf.mxu0
      %v2242 = vadd.f32 %v2117, %v2241
      %v2243 = vpop.f32.mrf.mxu0
      %v2244 = vadd.f32 %v2119, %v2243
      %v2245 = vpop.f32.mrf.mxu0
      %v2246 = vadd.f32 %v2121, %v2245
      %2247 = vmatprep.mubr.bf16.mxu0 0
      %2248 = vmatmul.mubr.bf16.gmra.mxu0 %v2171
      %v2249 = vpop.f32.mrf.mxu0
      %v2250 = vadd.f32 %v2125, %v2249
      %v2251 = vpop.f32.mrf.mxu0
      %v2252 = vadd.f32 %v2127, %v2251
      %v2253 = vpop.f32.mrf.mxu0
      %v2254 = vadd.f32 %v2129, %v2253
      %v2255 = vpop.f32.mrf.mxu0
      %v2256 = vadd.f32 %v2131, %v2255
      %2257 = vmatprep.mubr.bf16.mxu0 0
      %2258 = vmatmul.mubr.bf16.gmra.mxu0 %v2174
      %v2259 = vpop.f32.mrf.mxu0
      %v2260 = vadd.f32 %v2135, %v2259
      %v2261 = vpop.f32.mrf.mxu0
      %v2262 = vadd.f32 %v2137, %v2261
      %v2263 = vpop.f32.mrf.mxu0
      %v2264 = vadd.f32 %v2139, %v2263
      %v2265 = vpop.f32.mrf.mxu0
      %v2266 = vadd.f32 %v2141, %v2265
      %2267 = vmatprep.mubr.bf16.mxu0 0
      %2268 = vmatmul.mubr.bf16.gmra.mxu0 %v2177
      %v2269 = vpop.f32.mrf.mxu0
      %v2270 = vadd.f32 %v2145, %v2269
      %v2271 = vpop.f32.mrf.mxu0
      %v2272 = vadd.f32 %v2147, %v2271
      %v2273 = vpop.f32.mrf.mxu0
      %v2274 = vadd.f32 %v2149, %v2273
      %v2275 = vpop.f32.mrf.mxu0
      %v2276 = vadd.f32 %v2151, %v2275
      %2277 = vdwg.mxu0
      %v2296 = vunpack.c.l.b16 %v923
      %v2297 = vunpack.c.l.b16 %v924
      %v2298 = vunpack.c.l.b16 %v925
      %v2299 = vunpack.c.l.b16 %v927
      %v2300 = vunpack.c.l.b16 %v928
      %v2301 = vunpack.c.l.b16 %v929
      %v2302 = vunpack.c.l.b16 %v931
      %v2303 = vunpack.c.l.b16 %v932
      %v2304 = vunpack.c.l.b16 %v933
      %v2305 = vunpack.c.l.b16 %v935
      %v2306 = vunpack.c.l.b16 %v936
      %v2307 = vunpack.c.l.b16 %v937
      %v2308 = vunpack.c.l.b16 %v939
      %v2309 = vunpack.c.l.b16 %v940
      %v2310 = vunpack.c.l.b16 %v941
      %v2311 = vunpack.c.l.b16 %v943
      %v2312 = vunpack.c.l.b16 %v944
      %v2313 = vunpack.c.l.b16 %v945
      %v2314 = vpack.c.b16 %v2297, %v2296
      %v2315 = vpack.c.b16 %v2298, %v2298
      %v2316 = vpack.c.b16 %v2300, %v2299
      %v2317 = vpack.c.b16 %v2301, %v2301
      %v2318 = vpack.c.b16 %v2303, %v2302
      %v2319 = vpack.c.b16 %v2304, %v2304
      %v2320 = vpack.c.b16 %v2306, %v2305
      %v2321 = vpack.c.b16 %v2307, %v2307
      %v2322 = vpack.c.b16 %v2309, %v2308
      %v2323 = vpack.c.b16 %v2310, %v2310
      %v2324 = vpack.c.b16 %v2312, %v2311
      %v2325 = vpack.c.b16 %v2313, %v2313
      %v2332 = vunpack.c.l.b16 %v926
      %v2333 = vunpack.c.l.b16 %v930
      %v2334 = vunpack.c.l.b16 %v934
      %v2335 = vunpack.c.l.b16 %v938
      %v2336 = vunpack.c.l.b16 %v942
      %v2337 = vunpack.c.l.b16 %v946
      %v2338 = vpack.c.b16 %v2298, %v2297
      %v2339 = vpack.c.b16 %v2332, %v2332
      %v2340 = vpack.c.b16 %v2301, %v2300
      %v2341 = vpack.c.b16 %v2333, %v2333
      %v2342 = vpack.c.b16 %v2304, %v2303
      %v2343 = vpack.c.b16 %v2334, %v2334
      %v2344 = vpack.c.b16 %v2307, %v2306
      %v2345 = vpack.c.b16 %v2335, %v2335
      %v2346 = vpack.c.b16 %v2310, %v2309
      %v2347 = vpack.c.b16 %v2336, %v2336
      %v2348 = vpack.c.b16 %v2313, %v2312
      %v2349 = vpack.c.b16 %v2337, %v2337
      %v2350 = vrot.slane %v2338, 7
      %v2351 = vrot.slane %v2339, 7
      %v2352 = vsel %vm1664, %v2350, %v2351
      %v2353 = vrot.slane %v2340, 7
      %v2354 = vrot.slane %v2341, 7
      %v2355 = vsel %vm1664, %v2353, %v2354
      %v2356 = vrot.slane %v2342, 7
      %v2357 = vrot.slane %v2343, 7
      %v2358 = vsel %vm1664, %v2356, %v2357
      %v2359 = vrot.slane %v2344, 7
      %v2360 = vrot.slane %v2345, 7
      %v2361 = vsel %vm1664, %v2359, %v2360
      %v2362 = vrot.slane %v2346, 7
      %v2363 = vrot.slane %v2347, 7
      %v2364 = vsel %vm1664, %v2362, %v2363
      %v2365 = vrot.slane %v2348, 7
      %v2366 = vrot.slane %v2349, 7
      %v2367 = vsel %vm1664, %v2365, %v2366
      %2368 = vrot.lane.b32.xlu0 %v2350, 4
      %v2369 = vpop.permute.xlu0 %2368
      %2370 = vrot.lane.b32.xlu0 %v2352, 4
      %v2371 = vpop.permute.xlu0 %2370
      %2372 = vrot.lane.b32.xlu0 %v2353, 4
      %v2373 = vpop.permute.xlu0 %2372
      %2374 = vrot.lane.b32.xlu0 %v2355, 4
      %v2375 = vpop.permute.xlu0 %2374
      %2376 = vrot.lane.b32.xlu0 %v2356, 4
      %v2377 = vpop.permute.xlu0 %2376
      %2378 = vrot.lane.b32.xlu0 %v2358, 4
      %v2379 = vpop.permute.xlu0 %2378
      %2380 = vrot.lane.b32.xlu0 %v2359, 4
      %v2381 = vpop.permute.xlu0 %2380
      %2382 = vrot.lane.b32.xlu0 %v2361, 4
      %v2383 = vpop.permute.xlu0 %2382
      %2384 = vrot.lane.b32.xlu0 %v2362, 4
      %v2385 = vpop.permute.xlu0 %2384
      %2386 = vrot.lane.b32.xlu0 %v2364, 4
      %v2387 = vpop.permute.xlu0 %2386
      %2388 = vrot.lane.b32.xlu0 %v2365, 4
      %v2389 = vpop.permute.xlu0 %2388
      %2390 = vrot.lane.b32.xlu0 %v2367, 4
      %v2391 = vpop.permute.xlu0 %2390
      %v2392 = vpack.c.b16 %v2332, %v2298
      %v2393 = vpack.c.b16 %v2333, %v2301
      %v2394 = vpack.c.b16 %v2334, %v2304
      %v2395 = vpack.c.b16 %v2335, %v2307
      %v2396 = vpack.c.b16 %v2336, %v2310
      %v2397 = vpack.c.b16 %v2337, %v2313
      %v2398 = vrot.slane %v2392, 6
      %v2399 = vrot.slane %v2393, 6
      %v2400 = vrot.slane %v2394, 6
      %v2401 = vrot.slane %v2395, 6
      %v2402 = vrot.slane %v2396, 6
      %v2403 = vrot.slane %v2397, 6
      %2404 = vrot.lane.b32.xlu0 %v2398, 8
      %v2405 = vpop.permute.xlu0 %2404
      %2406 = vrot.lane.b32.xlu0 %v2399, 8
      %v2407 = vpop.permute.xlu0 %2406
      %2408 = vrot.lane.b32.xlu0 %v2400, 8
      %v2409 = vpop.permute.xlu0 %2408
      %2410 = vrot.lane.b32.xlu0 %v2401, 8
      %v2411 = vpop.permute.xlu0 %2410
      %2412 = vrot.lane.b32.xlu0 %v2402, 8
      %v2413 = vpop.permute.xlu0 %2412
      %2414 = vrot.lane.b32.xlu0 %v2403, 8
      %v2415 = vpop.permute.xlu0 %2414
      %v2418 = vsel %vm1128, %v2314, %v2369
      %v2421 = vsel %vm1128, %v2315, %v2371
      %v2424 = vsel %vm1128, %v2316, %v2373
      %v2427 = vsel %vm1128, %v2317, %v2375
      %v2430 = vsel %vm1128, %v2318, %v2377
      %v2433 = vsel %vm1128, %v2319, %v2379
      %v2436 = vsel %vm1128, %v2320, %v2381
      %v2439 = vsel %vm1128, %v2321, %v2383
      %v2442 = vsel %vm1128, %v2322, %v2385
      %v2445 = vsel %vm1128, %v2323, %v2387
      %v2448 = vsel %vm1128, %v2324, %v2389
      %v2451 = vsel %vm1128, %v2325, %v2391
      %v2453 = vsel %vm1767, %v2418, %v2405
      %v2454 = vsel %vm1767, %v2421, %v2405
      %v2456 = vsel %vm1767, %v2424, %v2407
      %v2457 = vsel %vm1767, %v2427, %v2407
      %v2459 = vsel %vm1767, %v2430, %v2409
      %v2460 = vsel %vm1767, %v2433, %v2409
      %v2462 = vsel %vm1767, %v2436, %v2411
      %v2463 = vsel %vm1767, %v2439, %v2411
      %v2465 = vsel %vm1767, %v2442, %v2413
      %v2466 = vsel %vm1767, %v2445, %v2413
      %v2468 = vsel %vm1767, %v2448, %v2415
      %v2469 = vsel %vm1767, %v2451, %v2415
      %v2482 = vrot.slane %v2453, 2
      %v2483 = vrot.slane %v2454, 2
      %v2484 = vsel %vm1798, %v2482, %v2483
      %v2485 = vrot.slane %v2456, 2
      %v2486 = vrot.slane %v2457, 2
      %v2487 = vsel %vm1798, %v2485, %v2486
      %v2488 = vrot.slane %v2459, 2
      %v2489 = vrot.slane %v2460, 2
      %v2490 = vsel %vm1798, %v2488, %v2489
      %v2491 = vrot.slane %v2462, 2
      %v2492 = vrot.slane %v2463, 2
      %v2493 = vsel %vm1798, %v2491, %v2492
      %v2494 = vrot.slane %v2465, 2
      %v2495 = vrot.slane %v2466, 2
      %v2496 = vsel %vm1798, %v2494, %v2495
      %v2497 = vrot.slane %v2468, 2
      %v2498 = vrot.slane %v2469, 2
      %v2499 = vsel %vm1798, %v2497, %v2498
      %s2500 = scalar_lea.vmem %s8, 32
      %v2501 = vld [vmem:[%s2500] sm:$0xff]
      %v2502 = vld [vmem:[%s2500 + $0x8] sm:$0x33]
      %v2505 = vunpack.c.l.b16 %v2501
      %v2506 = vunpack.c.h.b16 %v2501
      %v2507 = vunpack.c.l.b16 %v2502
      %v2508 = vunpack.c.h.b16 %v2502
      %v2509 = vpack.c.b16 %v2507, %v2505
      %v2510 = vpack.c.b16 %v2508, %v2506
      %v2512 = vsel %vm2034, %v2484, 0
      %v2515 = vsel %vm2034, %v2487, 0
      %v2518 = vsel %vm2034, %v2490, 0
      %v2521 = vsel %vm2034, %v2493, 0
      %v2524 = vsel %vm2034, %v2496, 0
      %v2527 = vsel %vm2034, %v2499, 0
      %v2530 = vsel %vm2053, %v2509, 0
      %v2533 = vsel %vm2053, %v2510, 0
      %2535 = vmatprep.subr.bf16.mxu0 0
      %2536 = vmatpush1.bf16.msra.mxu0 0
      %2537 = vmatprep.subr.bf16.mxu0 0
      %2538 = vmatpush1.bf16.msra.mxu0 0
      %2539 = vmatprep.subr.bf16.mxu0 0
      %2540 = vmatpush1.bf16.msra.mxu0 0
      %2541 = vmatprep.subr.bf16.mxu0 0
      %2542 = vmatpush1.bf16.msra.mxu0 0
      %2543 = vmatprep.subr.bf16.mxu0 0
      %2544 = vmatpush1.bf16.msra.mxu0 0
      %2545 = vmatprep.subr.bf16.mxu0 0
      %2546 = vmatpush1.bf16.msra.mxu0 0
      %2547 = vmatprep.subr.bf16.mxu0 0
      %2548 = vmatpush1.bf16.msra.mxu0 0
      %2549 = vmatprep.subr.bf16.mxu0 %v2533
      %2550 = vmatpush1.bf16.msra.mxu0 %v2530
      %2551 = vmatprep.subr.bf16.mxu0 0
      %2552 = vmatpush2.bf16.msra.mxu0 0
      %2553 = vmatprep.subr.bf16.mxu0 0
      %2554 = vmatpush2.bf16.msra.mxu0 0
      %2555 = vmatprep.subr.bf16.mxu0 0
      %2556 = vmatpush2.bf16.msra.mxu0 0
      %2557 = vmatprep.subr.bf16.mxu0 0
      %2558 = vmatpush2.bf16.msra.mxu0 0
      %2559 = vmatprep.subr.bf16.mxu0 0
      %2560 = vmatpush2.bf16.msra.mxu0 0
      %2561 = vmatprep.subr.bf16.mxu0 0
      %2562 = vmatpush2.bf16.msra.mxu0 0
      %2563 = vmatprep.subr.bf16.mxu0 0
      %2564 = vmatpush2.bf16.msra.mxu0 0
      %2565 = vmatprep.subr.bf16.mxu0 0
      %2566 = vmatpush2.bf16.msra.mxu0 0
      %2567 = vmatprep.mubr.bf16.mxu0 0
      %2568 = vmatmul.mubr.bf16.gmra.mxu0 %v2512
      %v2569 = vpop.f32.mrf.mxu0
      %v2570 = vadd.f32 0.0, %v2569
      %v2571 = vpop.f32.mrf.mxu0
      %v2572 = vadd.f32 0.0, %v2571
      %v2573 = vpop.f32.mrf.mxu0
      %v2574 = vadd.f32 0.0, %v2573
      %v2575 = vpop.f32.mrf.mxu0
      %v2576 = vadd.f32 0.0, %v2575
      %2577 = vmatprep.mubr.bf16.mxu0 0
      %2578 = vmatmul.mubr.bf16.gmra.mxu0 %v2515
      %v2579 = vpop.f32.mrf.mxu0
      %v2580 = vadd.f32 0.0, %v2579
      %v2581 = vpop.f32.mrf.mxu0
      %v2582 = vadd.f32 0.0, %v2581
      %v2583 = vpop.f32.mrf.mxu0
      %v2584 = vadd.f32 0.0, %v2583
      %v2585 = vpop.f32.mrf.mxu0
      %v2586 = vadd.f32 0.0, %v2585
      %2587 = vmatprep.mubr.bf16.mxu0 0
      %2588 = vmatmul.mubr.bf16.gmra.mxu0 %v2518
      %v2589 = vpop.f32.mrf.mxu0
      %v2590 = vadd.f32 0.0, %v2589
      %v2591 = vpop.f32.mrf.mxu0
      %v2592 = vadd.f32 0.0, %v2591
      %v2593 = vpop.f32.mrf.mxu0
      %v2594 = vadd.f32 0.0, %v2593
      %v2595 = vpop.f32.mrf.mxu0
      %v2596 = vadd.f32 0.0, %v2595
      %2597 = vmatprep.mubr.bf16.mxu0 0
      %2598 = vmatmul.mubr.bf16.gmra.mxu0 %v2521
      %v2599 = vpop.f32.mrf.mxu0
      %v2600 = vadd.f32 0.0, %v2599
      %v2601 = vpop.f32.mrf.mxu0
      %v2602 = vadd.f32 0.0, %v2601
      %v2603 = vpop.f32.mrf.mxu0
      %v2604 = vadd.f32 0.0, %v2603
      %v2605 = vpop.f32.mrf.mxu0
      %v2606 = vadd.f32 0.0, %v2605
      %2607 = vmatprep.mubr.bf16.mxu0 0
      %2608 = vmatmul.mubr.bf16.gmra.mxu0 %v2524
      %v2609 = vpop.f32.mrf.mxu0
      %v2610 = vadd.f32 0.0, %v2609
      %v2611 = vpop.f32.mrf.mxu0
      %v2612 = vadd.f32 0.0, %v2611
      %v2613 = vpop.f32.mrf.mxu0
      %v2614 = vadd.f32 0.0, %v2613
      %v2615 = vpop.f32.mrf.mxu0
      %v2616 = vadd.f32 0.0, %v2615
      %2617 = vmatprep.mubr.bf16.mxu0 0
      %2618 = vmatmul.mubr.bf16.gmra.mxu0 %v2527
      %v2619 = vpop.f32.mrf.mxu0
      %v2620 = vadd.f32 0.0, %v2619
      %v2621 = vpop.f32.mrf.mxu0
      %v2622 = vadd.f32 0.0, %v2621
      %v2623 = vpop.f32.mrf.mxu0
      %v2624 = vadd.f32 0.0, %v2623
      %v2625 = vpop.f32.mrf.mxu0
      %v2626 = vadd.f32 0.0, %v2625
      %2627 = vdwg.mxu0
      %v2628 = vadd.f32 %v2220, %v2570
      %v2629 = vadd.f32 %v2222, %v2572
      %v2630 = vadd.f32 %v2224, %v2574
      %v2631 = vadd.f32 %v2226, %v2576
      %v2632 = vadd.f32 %v2230, %v2580
      %v2633 = vadd.f32 %v2232, %v2582
      %v2634 = vadd.f32 %v2234, %v2584
      %v2635 = vadd.f32 %v2236, %v2586
      %v2636 = vadd.f32 %v2240, %v2590
      %v2637 = vadd.f32 %v2242, %v2592
      %v2638 = vadd.f32 %v2244, %v2594
      %v2639 = vadd.f32 %v2246, %v2596
      %v2640 = vadd.f32 %v2250, %v2600
      %v2641 = vadd.f32 %v2252, %v2602
      %v2642 = vadd.f32 %v2254, %v2604
      %v2643 = vadd.f32 %v2256, %v2606
      %v2644 = vadd.f32 %v2260, %v2610
      %v2645 = vadd.f32 %v2262, %v2612
      %v2646 = vadd.f32 %v2264, %v2614
      %v2647 = vadd.f32 %v2266, %v2616
      %v2648 = vadd.f32 %v2270, %v2620
      %v2649 = vadd.f32 %v2272, %v2622
      %v2650 = vadd.f32 %v2274, %v2624
      %v2651 = vadd.f32 %v2276, %v2626
      %v2652 = vld [vmem:[%s11] sm:$0x3]
      %v2654 = vlaneseq
      %v2655 = vshrl.u32 %v2654, 7
      %v2656 = vsub.s32 0, %v2655
      %v2657 = vrot.slane %v2652, %v2656
      %v2658 = vlaneseq
      %v2659 = vshrl.u32 %v2658, 7
      %v2660 = vsub.s32 1, %v2659
      %v2661 = vrot.slane %v2652, %v2660
      %v2664 = vadd.f32 %v2628, %v2657
      %v2665 = vadd.f32 %v2629, %v2661
      %v2666 = vadd.f32 %v2630, %v2657
      %v2667 = vadd.f32 %v2631, %v2661
      %v2668 = vadd.f32 %v2632, %v2657
      %v2669 = vadd.f32 %v2633, %v2661
      %v2670 = vadd.f32 %v2634, %v2657
      %v2671 = vadd.f32 %v2635, %v2661
      %v2672 = vadd.f32 %v2636, %v2657
      %v2673 = vadd.f32 %v2637, %v2661
      %v2674 = vadd.f32 %v2638, %v2657
      %v2675 = vadd.f32 %v2639, %v2661
      %v2676 = vadd.f32 %v2640, %v2657
      %v2677 = vadd.f32 %v2641, %v2661
      %v2678 = vadd.f32 %v2642, %v2657
      %v2679 = vadd.f32 %v2643, %v2661
      %v2680 = vadd.f32 %v2644, %v2657
      %v2681 = vadd.f32 %v2645, %v2661
      %v2682 = vadd.f32 %v2646, %v2657
      %v2683 = vadd.f32 %v2647, %v2661
      %v2684 = vadd.f32 %v2648, %v2657
      %v2685 = vadd.f32 %v2649, %v2661
      %v2686 = vadd.f32 %v2650, %v2657
      %v2687 = vadd.f32 %v2651, %v2661
      %v2688 = vmax.f32 %v2664, 0.0
      %v2689 = vmax.f32 %v2665, 0.0
      %v2690 = vmax.f32 %v2666, 0.0
      %v2691 = vmax.f32 %v2667, 0.0
      %v2692 = vmax.f32 %v2668, 0.0
      %v2693 = vmax.f32 %v2669, 0.0
      %v2694 = vmax.f32 %v2670, 0.0
      %v2695 = vmax.f32 %v2671, 0.0
      %v2696 = vmax.f32 %v2672, 0.0
      %v2697 = vmax.f32 %v2673, 0.0
      %v2698 = vmax.f32 %v2674, 0.0
      %v2699 = vmax.f32 %v2675, 0.0
      %v2700 = vmax.f32 %v2676, 0.0
      %v2701 = vmax.f32 %v2677, 0.0
      %v2702 = vmax.f32 %v2678, 0.0
      %v2703 = vmax.f32 %v2679, 0.0
      %v2704 = vmax.f32 %v2680, 0.0
      %v2705 = vmax.f32 %v2681, 0.0
      %v2706 = vmax.f32 %v2682, 0.0
      %v2707 = vmax.f32 %v2683, 0.0
      %v2708 = vmax.f32 %v2684, 0.0
      %v2709 = vmax.f32 %v2685, 0.0
      %v2710 = vmax.f32 %v2686, 0.0
      %v2711 = vmax.f32 %v2687, 0.0
      %v2712 = vpack.c.bf16 %v2690, %v2688
      %v2713 = vpack.c.bf16 %v2691, %v2689
      %v2714 = vpack.c.bf16 %v2694, %v2692
      %v2715 = vpack.c.bf16 %v2695, %v2693
      %v2716 = vpack.c.bf16 %v2698, %v2696
      %v2717 = vpack.c.bf16 %v2699, %v2697
      %v2718 = vpack.c.bf16 %v2702, %v2700
      %v2719 = vpack.c.bf16 %v2703, %v2701
      %v2720 = vpack.c.bf16 %v2706, %v2704
      %v2721 = vpack.c.bf16 %v2707, %v2705
      %v2722 = vpack.c.bf16 %v2710, %v2708
      %v2723 = vpack.c.bf16 %v2711, %v2709
      %v2724 = vld [vmem:[#allocation2] sm:$0xff]
      %v2725 = vld [vmem:[#allocation2 + $0x8] sm:$0xff]
      %v2726 = vld [vmem:[#allocation2 + $0x10] sm:$0xff]
      %v2727 = vld [vmem:[#allocation2 + $0x18] sm:$0xff]
      %v2728 = vld [vmem:[#allocation2 + $0x20] sm:$0xff]
      %v2729 = vld [vmem:[#allocation2 + $0x28] sm:$0xff]
      %v2730 = vld [vmem:[#allocation2 + $0x30] sm:$0xff]
      %v2731 = vld [vmem:[#allocation2 + $0x38] sm:$0xff]
      %v2732 = vld [vmem:[#allocation2 + $0x40] sm:$0xff]
      %v2733 = vld [vmem:[#allocation2 + $0x48] sm:$0xff]
      %v2734 = vld [vmem:[#allocation2 + $0x50] sm:$0xff]
      %v2735 = vld [vmem:[#allocation2 + $0x58] sm:$0xff]
      %v2736 = vld [vmem:[#allocation2 + $0x60] sm:$0xff]
      %v2737 = vld [vmem:[#allocation2 + $0x68] sm:$0xff]
      %v2738 = vld [vmem:[#allocation2 + $0x70] sm:$0xff]
      %v2739 = vld [vmem:[#allocation2 + $0x78] sm:$0xff]
      %v2740 = vld [vmem:[#allocation2 + $0x80] sm:$0xff]
      %v2741 = vld [vmem:[#allocation2 + $0x88] sm:$0xff]
      %v2742 = vld [vmem:[#allocation2 + $0x90] sm:$0xff]
      %v2743 = vld [vmem:[#allocation2 + $0x98] sm:$0xff]
      %v2744 = vld [vmem:[#allocation2 + $0xa0] sm:$0xff]
      %v2745 = vld [vmem:[#allocation2 + $0xa8] sm:$0xff]
      %v2746 = vld [vmem:[#allocation2 + $0xb0] sm:$0xff]
      %v2747 = vld [vmem:[#allocation2 + $0xb8] sm:$0xff]
      %s2748 = scalar_lea.vmem %s9, 256
      %v2749 = vld [vmem:[%s2748] sm:$0xff]
      %v2750 = vld [vmem:[%s2748 + $0x8] sm:$0xff]
      %v2751 = vld [vmem:[%s2748 + $0x10] sm:$0xff]
      %v2752 = vld [vmem:[%s2748 + $0x18] sm:$0xff]
      %v2753 = vld [vmem:[%s2748 + $0x20] sm:$0xff]
      %v2754 = vld [vmem:[%s2748 + $0x28] sm:$0xff]
      %v2755 = vld [vmem:[%s2748 + $0x30] sm:$0xff]
      %v2756 = vld [vmem:[%s2748 + $0x38] sm:$0xff]
      %v2757 = vld [vmem:[%s2748 + $0x40] sm:$0xff]
      %v2758 = vld [vmem:[%s2748 + $0x48] sm:$0xff]
      %v2759 = vld [vmem:[%s2748 + $0x50] sm:$0xff]
      %v2760 = vld [vmem:[%s2748 + $0x58] sm:$0xff]
      %v2761 = vld [vmem:[%s2748 + $0x60] sm:$0xff]
      %v2762 = vld [vmem:[%s2748 + $0x68] sm:$0xff]
      %v2763 = vld [vmem:[%s2748 + $0x70] sm:$0xff]
      %v2764 = vld [vmem:[%s2748 + $0x78] sm:$0xff]
      %v2765 = vld [vmem:[%s2748 + $0x80] sm:$0xff]
      %v2766 = vld [vmem:[%s2748 + $0x88] sm:$0xff]
      %v2767 = vld [vmem:[%s2748 + $0x90] sm:$0xff]
      %v2768 = vld [vmem:[%s2748 + $0x98] sm:$0xff]
      %v2769 = vld [vmem:[%s2748 + $0xa0] sm:$0xff]
      %v2770 = vld [vmem:[%s2748 + $0xa8] sm:$0xff]
      %v2771 = vld [vmem:[%s2748 + $0xb0] sm:$0xff]
      %v2772 = vld [vmem:[%s2748 + $0xb8] sm:$0xff]
      %v2773 = vld [vmem:[%s2748 + $0xc0] sm:$0xff]
      %v2774 = vld [vmem:[%s2748 + $0xc8] sm:$0xff]
      %v2775 = vld [vmem:[%s2748 + $0xd0] sm:$0xff]
      %v2776 = vld [vmem:[%s2748 + $0xd8] sm:$0xff]
      %v2777 = vld [vmem:[%s2748 + $0xe0] sm:$0xff]
      %v2778 = vld [vmem:[%s2748 + $0xe8] sm:$0xff]
      %v2779 = vld [vmem:[%s2748 + $0xf0] sm:$0xff]
      %v2780 = vld [vmem:[%s2748 + $0xf8] sm:$0xff]
      %v2813 = vunpack.c.l.b16 %v2749
      %v2814 = vunpack.c.h.b16 %v2749
      %v2815 = vunpack.c.l.b16 %v2750
      %v2816 = vunpack.c.h.b16 %v2750
      %v2817 = vunpack.c.l.b16 %v2751
      %v2818 = vunpack.c.h.b16 %v2751
      %v2819 = vunpack.c.l.b16 %v2752
      %v2820 = vunpack.c.h.b16 %v2752
      %v2821 = vunpack.c.l.b16 %v2753
      %v2822 = vunpack.c.h.b16 %v2753
      %v2823 = vunpack.c.l.b16 %v2754
      %v2824 = vunpack.c.h.b16 %v2754
      %v2825 = vunpack.c.l.b16 %v2755
      %v2826 = vunpack.c.h.b16 %v2755
      %v2827 = vunpack.c.l.b16 %v2756
      %v2828 = vunpack.c.h.b16 %v2756
      %v2829 = vunpack.c.l.b16 %v2757
      %v2830 = vunpack.c.h.b16 %v2757
      %v2831 = vunpack.c.l.b16 %v2758
      %v2832 = vunpack.c.h.b16 %v2758
      %v2833 = vunpack.c.l.b16 %v2759
      %v2834 = vunpack.c.h.b16 %v2759
      %v2835 = vunpack.c.l.b16 %v2760
      %v2836 = vunpack.c.h.b16 %v2760
      %v2837 = vunpack.c.l.b16 %v2761
      %v2838 = vunpack.c.h.b16 %v2761
      %v2839 = vunpack.c.l.b16 %v2762
      %v2840 = vunpack.c.h.b16 %v2762
      %v2841 = vunpack.c.l.b16 %v2763
      %v2842 = vunpack.c.h.b16 %v2763
      %v2843 = vunpack.c.l.b16 %v2764
      %v2844 = vunpack.c.h.b16 %v2764
      %v2845 = vunpack.c.l.b16 %v2765
      %v2846 = vunpack.c.h.b16 %v2765
      %v2847 = vunpack.c.l.b16 %v2766
      %v2848 = vunpack.c.h.b16 %v2766
      %v2849 = vunpack.c.l.b16 %v2767
      %v2850 = vunpack.c.h.b16 %v2767
      %v2851 = vunpack.c.l.b16 %v2768
      %v2852 = vunpack.c.h.b16 %v2768
      %v2853 = vunpack.c.l.b16 %v2769
      %v2854 = vunpack.c.h.b16 %v2769
      %v2855 = vunpack.c.l.b16 %v2770
      %v2856 = vunpack.c.h.b16 %v2770
      %v2857 = vunpack.c.l.b16 %v2771
      %v2858 = vunpack.c.h.b16 %v2771
      %v2859 = vunpack.c.l.b16 %v2772
      %v2860 = vunpack.c.h.b16 %v2772
      %v2861 = vunpack.c.l.b16 %v2773
      %v2862 = vunpack.c.h.b16 %v2773
      %v2863 = vunpack.c.l.b16 %v2774
      %v2864 = vunpack.c.h.b16 %v2774
      %v2865 = vunpack.c.l.b16 %v2775
      %v2866 = vunpack.c.h.b16 %v2775
      %v2867 = vunpack.c.l.b16 %v2776
      %v2868 = vunpack.c.h.b16 %v2776
      %v2869 = vunpack.c.l.b16 %v2777
      %v2870 = vunpack.c.h.b16 %v2777
      %v2871 = vunpack.c.l.b16 %v2778
      %v2872 = vunpack.c.h.b16 %v2778
      %v2873 = vunpack.c.l.b16 %v2779
      %v2874 = vunpack.c.h.b16 %v2779
      %v2875 = vunpack.c.l.b16 %v2780
      %v2876 = vunpack.c.h.b16 %v2780
      %v2877 = vpack.c.b16 %v2815, %v2813
      %v2878 = vpack.c.b16 %v2816, %v2814
      %v2879 = vpack.c.b16 %v2819, %v2817
      %v2880 = vpack.c.b16 %v2820, %v2818
      %v2881 = vpack.c.b16 %v2823, %v2821
      %v2882 = vpack.c.b16 %v2824, %v2822
      %v2883 = vpack.c.b16 %v2827, %v2825
      %v2884 = vpack.c.b16 %v2828, %v2826
      %v2885 = vpack.c.b16 %v2831, %v2829
      %v2886 = vpack.c.b16 %v2832, %v2830
      %v2887 = vpack.c.b16 %v2835, %v2833
      %v2888 = vpack.c.b16 %v2836, %v2834
      %v2889 = vpack.c.b16 %v2839, %v2837
      %v2890 = vpack.c.b16 %v2840, %v2838
      %v2891 = vpack.c.b16 %v2843, %v2841
      %v2892 = vpack.c.b16 %v2844, %v2842
      %v2893 = vpack.c.b16 %v2847, %v2845
      %v2894 = vpack.c.b16 %v2848, %v2846
      %v2895 = vpack.c.b16 %v2851, %v2849
      %v2896 = vpack.c.b16 %v2852, %v2850
      %v2897 = vpack.c.b16 %v2855, %v2853
      %v2898 = vpack.c.b16 %v2856, %v2854
      %v2899 = vpack.c.b16 %v2859, %v2857
      %v2900 = vpack.c.b16 %v2860, %v2858
      %v2901 = vpack.c.b16 %v2863, %v2861
      %v2902 = vpack.c.b16 %v2864, %v2862
      %v2903 = vpack.c.b16 %v2867, %v2865
      %v2904 = vpack.c.b16 %v2868, %v2866
      %v2905 = vpack.c.b16 %v2871, %v2869
      %v2906 = vpack.c.b16 %v2872, %v2870
      %v2907 = vpack.c.b16 %v2875, %v2873
      %v2908 = vpack.c.b16 %v2876, %v2874
      %2941 = vmatprep.subr.bf16.mxu0 %v2892
      %2942 = vmatpush1.bf16.msra.mxu0 %v2891
      %2943 = vmatprep.subr.bf16.mxu0 %v2890
      %2944 = vmatpush1.bf16.msra.mxu0 %v2889
      %2945 = vmatprep.subr.bf16.mxu0 %v2888
      %2946 = vmatpush1.bf16.msra.mxu0 %v2887
      %2947 = vmatprep.subr.bf16.mxu0 %v2886
      %2948 = vmatpush1.bf16.msra.mxu0 %v2885
      %2949 = vmatprep.subr.bf16.mxu0 %v2884
      %2950 = vmatpush1.bf16.msra.mxu0 %v2883
      %2951 = vmatprep.subr.bf16.mxu0 %v2882
      %2952 = vmatpush1.bf16.msra.mxu0 %v2881
      %2953 = vmatprep.subr.bf16.mxu0 %v2880
      %2954 = vmatpush1.bf16.msra.mxu0 %v2879
      %2955 = vmatprep.subr.bf16.mxu0 %v2878
      %2956 = vmatpush1.bf16.msra.mxu0 %v2877
      %2957 = vmatprep.subr.bf16.mxu0 %v2908
      %2958 = vmatpush2.bf16.msra.mxu0 %v2907
      %2959 = vmatprep.subr.bf16.mxu0 %v2906
      %2960 = vmatpush2.bf16.msra.mxu0 %v2905
      %2961 = vmatprep.subr.bf16.mxu0 %v2904
      %2962 = vmatpush2.bf16.msra.mxu0 %v2903
      %2963 = vmatprep.subr.bf16.mxu0 %v2902
      %2964 = vmatpush2.bf16.msra.mxu0 %v2901
      %2965 = vmatprep.subr.bf16.mxu0 %v2900
      %2966 = vmatpush2.bf16.msra.mxu0 %v2899
      %2967 = vmatprep.subr.bf16.mxu0 %v2898
      %2968 = vmatpush2.bf16.msra.mxu0 %v2897
      %2969 = vmatprep.subr.bf16.mxu0 %v2896
      %2970 = vmatpush2.bf16.msra.mxu0 %v2895
      %2971 = vmatprep.subr.bf16.mxu0 %v2894
      %2972 = vmatpush2.bf16.msra.mxu0 %v2893
      %2973 = vmatprep.mubr.bf16.mxu0 %v2713
      %2974 = vmatmul.mubr.bf16.gmra.mxu0 %v2712
      %v2975 = vpop.f32.mrf.mxu0
      %v2976 = vadd.f32 0.0, %v2975
      %v2977 = vpop.f32.mrf.mxu0
      %v2978 = vadd.f32 0.0, %v2977
      %v2979 = vpop.f32.mrf.mxu0
      %v2980 = vadd.f32 0.0, %v2979
      %v2981 = vpop.f32.mrf.mxu0
      %v2982 = vadd.f32 0.0, %v2981
      %2983 = vmatprep.mubr.bf16.mxu0 %v2715
      %2984 = vmatmul.mubr.bf16.gmra.mxu0 %v2714
      %v2985 = vpop.f32.mrf.mxu0
      %v2986 = vadd.f32 0.0, %v2985
      %v2987 = vpop.f32.mrf.mxu0
      %v2988 = vadd.f32 0.0, %v2987
      %v2989 = vpop.f32.mrf.mxu0
      %v2990 = vadd.f32 0.0, %v2989
      %v2991 = vpop.f32.mrf.mxu0
      %v2992 = vadd.f32 0.0, %v2991
      %2993 = vmatprep.mubr.bf16.mxu0 %v2717
      %2994 = vmatmul.mubr.bf16.gmra.mxu0 %v2716
      %v2995 = vpop.f32.mrf.mxu0
      %v2996 = vadd.f32 0.0, %v2995
      %v2997 = vpop.f32.mrf.mxu0
      %v2998 = vadd.f32 0.0, %v2997
      %v2999 = vpop.f32.mrf.mxu0
      %v3000 = vadd.f32 0.0, %v2999
      %v3001 = vpop.f32.mrf.mxu0
      %v3002 = vadd.f32 0.0, %v3001
      %3003 = vmatprep.mubr.bf16.mxu0 %v2719
      %3004 = vmatmul.mubr.bf16.gmra.mxu0 %v2718
      %v3005 = vpop.f32.mrf.mxu0
      %v3006 = vadd.f32 0.0, %v3005
      %v3007 = vpop.f32.mrf.mxu0
      %v3008 = vadd.f32 0.0, %v3007
      %v3009 = vpop.f32.mrf.mxu0
      %v3010 = vadd.f32 0.0, %v3009
      %v3011 = vpop.f32.mrf.mxu0
      %v3012 = vadd.f32 0.0, %v3011
      %3013 = vmatprep.mubr.bf16.mxu0 %v2721
      %3014 = vmatmul.mubr.bf16.gmra.mxu0 %v2720
      %v3015 = vpop.f32.mrf.mxu0
      %v3016 = vadd.f32 0.0, %v3015
      %v3017 = vpop.f32.mrf.mxu0
      %v3018 = vadd.f32 0.0, %v3017
      %v3019 = vpop.f32.mrf.mxu0
      %v3020 = vadd.f32 0.0, %v3019
      %v3021 = vpop.f32.mrf.mxu0
      %v3022 = vadd.f32 0.0, %v3021
      %3023 = vmatprep.mubr.bf16.mxu0 %v2723
      %3024 = vmatmul.mubr.bf16.gmra.mxu0 %v2722
      %v3025 = vpop.f32.mrf.mxu0
      %v3026 = vadd.f32 0.0, %v3025
      %v3027 = vpop.f32.mrf.mxu0
      %v3028 = vadd.f32 0.0, %v3027
      %v3029 = vpop.f32.mrf.mxu0
      %v3030 = vadd.f32 0.0, %v3029
      %v3031 = vpop.f32.mrf.mxu0
      %v3032 = vadd.f32 0.0, %v3031
      %3033 = vdwg.mxu0
      %v3034 = vadd.f32 %v2724, %v2976
      %v3035 = vadd.f32 %v2725, %v2978
      %v3036 = vadd.f32 %v2726, %v2980
      %v3037 = vadd.f32 %v2727, %v2982
      %v3038 = vadd.f32 %v2728, %v2986
      %v3039 = vadd.f32 %v2729, %v2988
      %v3040 = vadd.f32 %v2730, %v2990
      %v3041 = vadd.f32 %v2731, %v2992
      %v3042 = vadd.f32 %v2732, %v2996
      %v3043 = vadd.f32 %v2733, %v2998
      %v3044 = vadd.f32 %v2734, %v3000
      %v3045 = vadd.f32 %v2735, %v3002
      %v3046 = vadd.f32 %v2736, %v3006
      %v3047 = vadd.f32 %v2737, %v3008
      %v3048 = vadd.f32 %v2738, %v3010
      %v3049 = vadd.f32 %v2739, %v3012
      %v3050 = vadd.f32 %v2740, %v3016
      %v3051 = vadd.f32 %v2741, %v3018
      %v3052 = vadd.f32 %v2742, %v3020
      %v3053 = vadd.f32 %v2743, %v3022
      %v3054 = vadd.f32 %v2744, %v3026
      %v3055 = vadd.f32 %v2745, %v3028
      %v3056 = vadd.f32 %v2746, %v3030
      %v3057 = vadd.f32 %v2747, %v3032
      %3058 = vst [vmem:[#allocation2] sm:$0xff] %v3034
      %3059 = vst [vmem:[#allocation2 + $0x8] sm:$0xff] %v3035
      %3060 = vst [vmem:[#allocation2 + $0x10] sm:$0xff] %v3036
      %3061 = vst [vmem:[#allocation2 + $0x18] sm:$0xff] %v3037
      %3062 = vst [vmem:[#allocation2 + $0x20] sm:$0xff] %v3038
      %3063 = vst [vmem:[#allocation2 + $0x28] sm:$0xff] %v3039
      %3064 = vst [vmem:[#allocation2 + $0x30] sm:$0xff] %v3040
      %3065 = vst [vmem:[#allocation2 + $0x38] sm:$0xff] %v3041
      %3066 = vst [vmem:[#allocation2 + $0x40] sm:$0xff] %v3042
      %3067 = vst [vmem:[#allocation2 + $0x48] sm:$0xff] %v3043
      %3068 = vst [vmem:[#allocation2 + $0x50] sm:$0xff] %v3044
      %3069 = vst [vmem:[#allocation2 + $0x58] sm:$0xff] %v3045
      %3070 = vst [vmem:[#allocation2 + $0x60] sm:$0xff] %v3046
      %3071 = vst [vmem:[#allocation2 + $0x68] sm:$0xff] %v3047
      %3072 = vst [vmem:[#allocation2 + $0x70] sm:$0xff] %v3048
      %3073 = vst [vmem:[#allocation2 + $0x78] sm:$0xff] %v3049
      %3074 = vst [vmem:[#allocation2 + $0x80] sm:$0xff] %v3050
      %3075 = vst [vmem:[#allocation2 + $0x88] sm:$0xff] %v3051
      %3076 = vst [vmem:[#allocation2 + $0x90] sm:$0xff] %v3052
      %3077 = vst [vmem:[#allocation2 + $0x98] sm:$0xff] %v3053
      %3078 = vst [vmem:[#allocation2 + $0xa0] sm:$0xff] %v3054
      %3079 = vst [vmem:[#allocation2 + $0xa8] sm:$0xff] %v3055
      %3080 = vst [vmem:[#allocation2 + $0xb0] sm:$0xff] %v3056
      %3081 = vst [vmem:[#allocation2 + $0xb8] sm:$0xff] %v3057
      %v3100 = vunpack.c.l.b16 %v821
      %v3101 = vunpack.c.l.b16 %v822
      %v3102 = vunpack.c.l.b16 %v823
      %v3103 = vunpack.c.l.b16 %v827
      %v3104 = vunpack.c.l.b16 %v828
      %v3105 = vunpack.c.l.b16 %v829
      %v3106 = vunpack.c.l.b16 %v833
      %v3107 = vunpack.c.l.b16 %v834
      %v3108 = vunpack.c.l.b16 %v835
      %v3109 = vunpack.c.l.b16 %v839
      %v3110 = vunpack.c.l.b16 %v840
      %v3111 = vunpack.c.l.b16 %v841
      %v3112 = vunpack.c.l.b16 %v845
      %v3113 = vunpack.c.l.b16 %v846
      %v3114 = vunpack.c.l.b16 %v847
      %v3115 = vunpack.c.l.b16 %v851
      %v3116 = vunpack.c.l.b16 %v852
      %v3117 = vunpack.c.l.b16 %v853
      %v3118 = vpack.c.b16 %v3101, %v3100
      %v3119 = vpack.c.b16 %v3102, %v3102
      %v3120 = vpack.c.b16 %v3104, %v3103
      %v3121 = vpack.c.b16 %v3105, %v3105
      %v3122 = vpack.c.b16 %v3107, %v3106
      %v3123 = vpack.c.b16 %v3108, %v3108
      %v3124 = vpack.c.b16 %v3110, %v3109
      %v3125 = vpack.c.b16 %v3111, %v3111
      %v3126 = vpack.c.b16 %v3113, %v3112
      %v3127 = vpack.c.b16 %v3114, %v3114
      %v3128 = vpack.c.b16 %v3116, %v3115
      %v3129 = vpack.c.b16 %v3117, %v3117
      %v3142 = vunpack.c.l.b16 %v824
      %v3143 = vunpack.c.l.b16 %v825
      %v3144 = vunpack.c.l.b16 %v830
      %v3145 = vunpack.c.l.b16 %v831
      %v3146 = vunpack.c.l.b16 %v836
      %v3147 = vunpack.c.l.b16 %v837
      %v3148 = vunpack.c.l.b16 %v842
      %v3149 = vunpack.c.l.b16 %v843
      %v3150 = vunpack.c.l.b16 %v848
      %v3151 = vunpack.c.l.b16 %v849
      %v3152 = vunpack.c.l.b16 %v854
      %v3153 = vunpack.c.l.b16 %v855
      %v3154 = vpack.c.b16 %v3142, %v3102
      %v3155 = vpack.c.b16 %v3143, %v3143
      %v3156 = vpack.c.b16 %v3144, %v3105
      %v3157 = vpack.c.b16 %v3145, %v3145
      %v3158 = vpack.c.b16 %v3146, %v3108
      %v3159 = vpack.c.b16 %v3147, %v3147
      %v3160 = vpack.c.b16 %v3148, %v3111
      %v3161 = vpack.c.b16 %v3149, %v3149
      %v3162 = vpack.c.b16 %v3150, %v3114
      %v3163 = vpack.c.b16 %v3151, %v3151
      %v3164 = vpack.c.b16 %v3152, %v3117
      %v3165 = vpack.c.b16 %v3153, %v3153
      %vm3166 = vcmask 1041408
      %v3167 = vrot.slane %v3154, 6
      %v3168 = vrot.slane %v3155, 6
      %v3169 = vsel %vm3166, %v3167, %v3168
      %v3170 = vrot.slane %v3156, 6
      %v3171 = vrot.slane %v3157, 6
      %v3172 = vsel %vm3166, %v3170, %v3171
      %v3173 = vrot.slane %v3158, 6
      %v3174 = vrot.slane %v3159, 6
      %v3175 = vsel %vm3166, %v3173, %v3174
      %v3176 = vrot.slane %v3160, 6
      %v3177 = vrot.slane %v3161, 6
      %v3178 = vsel %vm3166, %v3176, %v3177
      %v3179 = vrot.slane %v3162, 6
      %v3180 = vrot.slane %v3163, 6
      %v3181 = vsel %vm3166, %v3179, %v3180
      %v3182 = vrot.slane %v3164, 6
      %v3183 = vrot.slane %v3165, 6
      %v3184 = vsel %vm3166, %v3182, %v3183
      %3185 = vrot.lane.b32.xlu0 %v3167, 4
      %v3186 = vpop.permute.xlu0 %3185
      %3187 = vrot.lane.b32.xlu0 %v3169, 4
      %v3188 = vpop.permute.xlu0 %3187
      %3189 = vrot.lane.b32.xlu0 %v3170, 4
      %v3190 = vpop.permute.xlu0 %3189
      %3191 = vrot.lane.b32.xlu0 %v3172, 4
      %v3192 = vpop.permute.xlu0 %3191
      %3193 = vrot.lane.b32.xlu0 %v3173, 4
      %v3194 = vpop.permute.xlu0 %3193
      %3195 = vrot.lane.b32.xlu0 %v3175, 4
      %v3196 = vpop.permute.xlu0 %3195
      %3197 = vrot.lane.b32.xlu0 %v3176, 4
      %v3198 = vpop.permute.xlu0 %3197
      %3199 = vrot.lane.b32.xlu0 %v3178, 4
      %v3200 = vpop.permute.xlu0 %3199
      %3201 = vrot.lane.b32.xlu0 %v3179, 4
      %v3202 = vpop.permute.xlu0 %3201
      %3203 = vrot.lane.b32.xlu0 %v3181, 4
      %v3204 = vpop.permute.xlu0 %3203
      %3205 = vrot.lane.b32.xlu0 %v3182, 4
      %v3206 = vpop.permute.xlu0 %3205
      %3207 = vrot.lane.b32.xlu0 %v3184, 4
      %v3208 = vpop.permute.xlu0 %3207
      %v3215 = vunpack.c.l.b16 %v826
      %v3216 = vunpack.c.l.b16 %v832
      %v3217 = vunpack.c.l.b16 %v838
      %v3218 = vunpack.c.l.b16 %v844
      %v3219 = vunpack.c.l.b16 %v850
      %v3220 = vunpack.c.l.b16 %v856
      %v3221 = vpack.c.b16 %v3143, %v3142
      %v3222 = vpack.c.b16 %v3215, %v3215
      %v3223 = vpack.c.b16 %v3145, %v3144
      %v3224 = vpack.c.b16 %v3216, %v3216
      %v3225 = vpack.c.b16 %v3147, %v3146
      %v3226 = vpack.c.b16 %v3217, %v3217
      %v3227 = vpack.c.b16 %v3149, %v3148
      %v3228 = vpack.c.b16 %v3218, %v3218
      %v3229 = vpack.c.b16 %v3151, %v3150
      %v3230 = vpack.c.b16 %v3219, %v3219
      %v3231 = vpack.c.b16 %v3153, %v3152
      %v3232 = vpack.c.b16 %v3220, %v3220
      %3233 = vrot.lane.b32.xlu0 %v3221, 8
      %v3234 = vpop.permute.xlu0 %3233
      %3235 = vrot.lane.b32.xlu0 %v3222, 8
      %v3236 = vpop.permute.xlu0 %3235
      %3237 = vrot.lane.b32.xlu0 %v3223, 8
      %v3238 = vpop.permute.xlu0 %3237
      %3239 = vrot.lane.b32.xlu0 %v3224, 8
      %v3240 = vpop.permute.xlu0 %3239
      %3241 = vrot.lane.b32.xlu0 %v3225, 8
      %v3242 = vpop.permute.xlu0 %3241
      %3243 = vrot.lane.b32.xlu0 %v3226, 8
      %v3244 = vpop.permute.xlu0 %3243
      %3245 = vrot.lane.b32.xlu0 %v3227, 8
      %v3246 = vpop.permute.xlu0 %3245
      %3247 = vrot.lane.b32.xlu0 %v3228, 8
      %v3248 = vpop.permute.xlu0 %3247
      %3249 = vrot.lane.b32.xlu0 %v3229, 8
      %v3250 = vpop.permute.xlu0 %3249
      %3251 = vrot.lane.b32.xlu0 %v3230, 8
      %v3252 = vpop.permute.xlu0 %3251
      %3253 = vrot.lane.b32.xlu0 %v3231, 8
      %v3254 = vpop.permute.xlu0 %3253
      %3255 = vrot.lane.b32.xlu0 %v3232, 8
      %v3256 = vpop.permute.xlu0 %3255
      %v3259 = vsel %vm1128, %v3118, %v3186
      %v3262 = vsel %vm1128, %v3119, %v3188
      %v3265 = vsel %vm1128, %v3120, %v3190
      %v3268 = vsel %vm1128, %v3121, %v3192
      %v3271 = vsel %vm1128, %v3122, %v3194
      %v3274 = vsel %vm1128, %v3123, %v3196
      %v3277 = vsel %vm1128, %v3124, %v3198
      %v3280 = vsel %vm1128, %v3125, %v3200
      %v3283 = vsel %vm1128, %v3126, %v3202
      %v3286 = vsel %vm1128, %v3127, %v3204
      %v3289 = vsel %vm1128, %v3128, %v3206
      %v3292 = vsel %vm1128, %v3129, %v3208
      %v3294 = vsel %vm1767, %v3259, %v3234
      %v3296 = vsel %vm1767, %v3262, %v3236
      %v3298 = vsel %vm1767, %v3265, %v3238
      %v3300 = vsel %vm1767, %v3268, %v3240
      %v3302 = vsel %vm1767, %v3271, %v3242
      %v3304 = vsel %vm1767, %v3274, %v3244
      %v3306 = vsel %vm1767, %v3277, %v3246
      %v3308 = vsel %vm1767, %v3280, %v3248
      %v3310 = vsel %vm1767, %v3283, %v3250
      %v3312 = vsel %vm1767, %v3286, %v3252
      %v3314 = vsel %vm1767, %v3289, %v3254
      %v3316 = vsel %vm1767, %v3292, %v3256
      %vm3329 = vcmask 1044480
      %v3330 = vrot.slane %v3294, 3
      %v3331 = vrot.slane %v3296, 3
      %v3332 = vsel %vm3329, %v3330, %v3331
      %v3333 = vrot.slane %v3298, 3
      %v3334 = vrot.slane %v3300, 3
      %v3335 = vsel %vm3329, %v3333, %v3334
      %v3336 = vrot.slane %v3302, 3
      %v3337 = vrot.slane %v3304, 3
      %v3338 = vsel %vm3329, %v3336, %v3337
      %v3339 = vrot.slane %v3306, 3
      %v3340 = vrot.slane %v3308, 3
      %v3341 = vsel %vm3329, %v3339, %v3340
      %v3342 = vrot.slane %v3310, 3
      %v3343 = vrot.slane %v3312, 3
      %v3344 = vsel %vm3329, %v3342, %v3343
      %v3345 = vrot.slane %v3314, 3
      %v3346 = vrot.slane %v3316, 3
      %v3347 = vsel %vm3329, %v3345, %v3346
      %s3348 = scalar_lea.vmem %s8, 48
      %v3349 = vld [vmem:[%s3348] sm:$0xff]
      %v3350 = vld [vmem:[%s3348 + $0x8] sm:$0x33]
      %v3357 = vunpack.c.l.b16 %v881
      %v3358 = vunpack.c.l.b16 %v888
      %v3359 = vunpack.c.l.b16 %v895
      %v3360 = vunpack.c.l.b16 %v902
      %v3361 = vunpack.c.l.b16 %v909
      %v3362 = vunpack.c.l.b16 %v916
      %v3363 = vpack.c.b16 %v1825, %v3357
      %v3364 = vpack.c.b16 %v1826, %v1826
      %v3365 = vpack.c.b16 %v1828, %v3358
      %v3366 = vpack.c.b16 %v1829, %v1829
      %v3367 = vpack.c.b16 %v1831, %v3359
      %v3368 = vpack.c.b16 %v1832, %v1832
      %v3369 = vpack.c.b16 %v1834, %v3360
      %v3370 = vpack.c.b16 %v1835, %v1835
      %v3371 = vpack.c.b16 %v1837, %v3361
      %v3372 = vpack.c.b16 %v1838, %v1838
      %v3373 = vpack.c.b16 %v1840, %v3362
      %v3374 = vpack.c.b16 %v1841, %v1841
      %v3375 = vrot.slane %v1861, 6
      %v3376 = vrot.slane %v1862, 6
      %v3377 = vsel %vm3166, %v3375, %v3376
      %v3378 = vrot.slane %v1863, 6
      %v3379 = vrot.slane %v1864, 6
      %v3380 = vsel %vm3166, %v3378, %v3379
      %v3381 = vrot.slane %v1865, 6
      %v3382 = vrot.slane %v1866, 6
      %v3383 = vsel %vm3166, %v3381, %v3382
      %v3384 = vrot.slane %v1867, 6
      %v3385 = vrot.slane %v1868, 6
      %v3386 = vsel %vm3166, %v3384, %v3385
      %v3387 = vrot.slane %v1869, 6
      %v3388 = vrot.slane %v1870, 6
      %v3389 = vsel %vm3166, %v3387, %v3388
      %v3390 = vrot.slane %v1871, 6
      %v3391 = vrot.slane %v1872, 6
      %v3392 = vsel %vm3166, %v3390, %v3391
      %3393 = vrot.lane.b32.xlu0 %v3375, 4
      %v3394 = vpop.permute.xlu0 %3393
      %3395 = vrot.lane.b32.xlu0 %v3377, 4
      %v3396 = vpop.permute.xlu0 %3395
      %3397 = vrot.lane.b32.xlu0 %v3378, 4
      %v3398 = vpop.permute.xlu0 %3397
      %3399 = vrot.lane.b32.xlu0 %v3380, 4
      %v3400 = vpop.permute.xlu0 %3399
      %3401 = vrot.lane.b32.xlu0 %v3381, 4
      %v3402 = vpop.permute.xlu0 %3401
      %3403 = vrot.lane.b32.xlu0 %v3383, 4
      %v3404 = vpop.permute.xlu0 %3403
      %3405 = vrot.lane.b32.xlu0 %v3384, 4
      %v3406 = vpop.permute.xlu0 %3405
      %3407 = vrot.lane.b32.xlu0 %v3386, 4
      %v3408 = vpop.permute.xlu0 %3407
      %3409 = vrot.lane.b32.xlu0 %v3387, 4
      %v3410 = vpop.permute.xlu0 %3409
      %3411 = vrot.lane.b32.xlu0 %v3389, 4
      %v3412 = vpop.permute.xlu0 %3411
      %3413 = vrot.lane.b32.xlu0 %v3390, 4
      %v3414 = vpop.permute.xlu0 %3413
      %3415 = vrot.lane.b32.xlu0 %v3392, 4
      %v3416 = vpop.permute.xlu0 %3415
      %v3423 = vunpack.c.l.b16 %v886
      %v3424 = vunpack.c.l.b16 %v893
      %v3425 = vunpack.c.l.b16 %v900
      %v3426 = vunpack.c.l.b16 %v907
      %v3427 = vunpack.c.l.b16 %v914
      %v3428 = vunpack.c.l.b16 %v921
      %v3429 = vpack.c.b16 %v3423, %v3423
      %v3430 = vpack.c.b16 %v3424, %v3424
      %v3431 = vpack.c.b16 %v3425, %v3425
      %v3432 = vpack.c.b16 %v3426, %v3426
      %v3433 = vpack.c.b16 %v3427, %v3427
      %v3434 = vpack.c.b16 %v3428, %v3428
      %3435 = vrot.lane.b32.xlu0 %v1915, 8
      %v3436 = vpop.permute.xlu0 %3435
      %3437 = vrot.lane.b32.xlu0 %v3429, 8
      %v3438 = vpop.permute.xlu0 %3437
      %3439 = vrot.lane.b32.xlu0 %v1916, 8
      %v3440 = vpop.permute.xlu0 %3439
      %3441 = vrot.lane.b32.xlu0 %v3430, 8
      %v3442 = vpop.permute.xlu0 %3441
      %3443 = vrot.lane.b32.xlu0 %v1917, 8
      %v3444 = vpop.permute.xlu0 %3443
      %3445 = vrot.lane.b32.xlu0 %v3431, 8
      %v3446 = vpop.permute.xlu0 %3445
      %3447 = vrot.lane.b32.xlu0 %v1918, 8
      %v3448 = vpop.permute.xlu0 %3447
      %3449 = vrot.lane.b32.xlu0 %v3432, 8
      %v3450 = vpop.permute.xlu0 %3449
      %3451 = vrot.lane.b32.xlu0 %v1919, 8
      %v3452 = vpop.permute.xlu0 %3451
      %3453 = vrot.lane.b32.xlu0 %v3433, 8
      %v3454 = vpop.permute.xlu0 %3453
      %3455 = vrot.lane.b32.xlu0 %v1920, 8
      %v3456 = vpop.permute.xlu0 %3455
      %3457 = vrot.lane.b32.xlu0 %v3434, 8
      %v3458 = vpop.permute.xlu0 %3457
      %v3461 = vsel %vm1128, %v3363, %v3394
      %v3464 = vsel %vm1128, %v3364, %v3396
      %v3467 = vsel %vm1128, %v3365, %v3398
      %v3470 = vsel %vm1128, %v3366, %v3400
      %v3473 = vsel %vm1128, %v3367, %v3402
      %v3476 = vsel %vm1128, %v3368, %v3404
      %v3479 = vsel %vm1128, %v3369, %v3406
      %v3482 = vsel %vm1128, %v3370, %v3408
      %v3485 = vsel %vm1128, %v3371, %v3410
      %v3488 = vsel %vm1128, %v3372, %v3412
      %v3491 = vsel %vm1128, %v3373, %v3414
      %v3494 = vsel %vm1128, %v3374, %v3416
      %v3496 = vsel %vm1767, %v3461, %v3436
      %v3498 = vsel %vm1767, %v3464, %v3438
      %v3500 = vsel %vm1767, %v3467, %v3440
      %v3502 = vsel %vm1767, %v3470, %v3442
      %v3504 = vsel %vm1767, %v3473, %v3444
      %v3506 = vsel %vm1767, %v3476, %v3446
      %v3508 = vsel %vm1767, %v3479, %v3448
      %v3510 = vsel %vm1767, %v3482, %v3450
      %v3512 = vsel %vm1767, %v3485, %v3452
      %v3514 = vsel %vm1767, %v3488, %v3454
      %v3516 = vsel %vm1767, %v3491, %v3456
      %v3518 = vsel %vm1767, %v3494, %v3458
      %v3531 = vrot.slane %v3496, 3
      %v3532 = vrot.slane %v3498, 3
      %v3533 = vsel %vm3329, %v3531, %v3532
      %v3534 = vrot.slane %v3500, 3
      %v3535 = vrot.slane %v3502, 3
      %v3536 = vsel %vm3329, %v3534, %v3535
      %v3537 = vrot.slane %v3504, 3
      %v3538 = vrot.slane %v3506, 3
      %v3539 = vsel %vm3329, %v3537, %v3538
      %v3540 = vrot.slane %v3508, 3
      %v3541 = vrot.slane %v3510, 3
      %v3542 = vsel %vm3329, %v3540, %v3541
      %v3543 = vrot.slane %v3512, 3
      %v3544 = vrot.slane %v3514, 3
      %v3545 = vsel %vm3329, %v3543, %v3544
      %v3546 = vrot.slane %v3516, 3
      %v3547 = vrot.slane %v3518, 3
      %v3548 = vsel %vm3329, %v3546, %v3547
      %s3549 = scalar_lea.vmem %s8, 64
      %v3550 = vld [vmem:[%s3549] sm:$0xff]
      %v3551 = vld [vmem:[%s3549 + $0x8] sm:$0x33]
      %v3554 = vunpack.c.l.b16 %v3550
      %v3555 = vunpack.c.h.b16 %v3550
      %v3556 = vunpack.c.l.b16 %v3551
      %v3557 = vunpack.c.h.b16 %v3551
      %v3558 = vpack.c.b16 %v3556, %v3554
      %v3559 = vpack.c.b16 %v3557, %v3555
      %v3561 = vsel %vm2034, %v3533, 0
      %v3564 = vsel %vm2034, %v3536, 0
      %v3567 = vsel %vm2034, %v3539, 0
      %v3570 = vsel %vm2034, %v3542, 0
      %v3573 = vsel %vm2034, %v3545, 0
      %v3576 = vsel %vm2034, %v3548, 0
      %v3579 = vsel %vm2053, %v3558, 0
      %v3582 = vsel %vm2053, %v3559, 0
      %3584 = vmatprep.subr.bf16.mxu0 0
      %3585 = vmatpush1.bf16.msra.mxu0 0
      %3586 = vmatprep.subr.bf16.mxu0 0
      %3587 = vmatpush1.bf16.msra.mxu0 0
      %3588 = vmatprep.subr.bf16.mxu0 0
      %3589 = vmatpush1.bf16.msra.mxu0 0
      %3590 = vmatprep.subr.bf16.mxu0 0
      %3591 = vmatpush1.bf16.msra.mxu0 0
      %3592 = vmatprep.subr.bf16.mxu0 0
      %3593 = vmatpush1.bf16.msra.mxu0 0
      %3594 = vmatprep.subr.bf16.mxu0 0
      %3595 = vmatpush1.bf16.msra.mxu0 0
      %3596 = vmatprep.subr.bf16.mxu0 0
      %3597 = vmatpush1.bf16.msra.mxu0 0
      %3598 = vmatprep.subr.bf16.mxu0 %v3582
      %3599 = vmatpush1.bf16.msra.mxu0 %v3579
      %3600 = vmatprep.subr.bf16.mxu0 0
      %3601 = vmatpush2.bf16.msra.mxu0 0
      %3602 = vmatprep.subr.bf16.mxu0 0
      %3603 = vmatpush2.bf16.msra.mxu0 0
      %3604 = vmatprep.subr.bf16.mxu0 0
      %3605 = vmatpush2.bf16.msra.mxu0 0
      %3606 = vmatprep.subr.bf16.mxu0 0
      %3607 = vmatpush2.bf16.msra.mxu0 0
      %3608 = vmatprep.subr.bf16.mxu0 0
      %3609 = vmatpush2.bf16.msra.mxu0 0
      %3610 = vmatprep.subr.bf16.mxu0 0
      %3611 = vmatpush2.bf16.msra.mxu0 0
      %3612 = vmatprep.subr.bf16.mxu0 0
      %3613 = vmatpush2.bf16.msra.mxu0 0
      %3614 = vmatprep.subr.bf16.mxu0 0
      %3615 = vmatpush2.bf16.msra.mxu0 0
      %3616 = vmatprep.mubr.bf16.mxu0 0
      %3617 = vmatmul.mubr.bf16.gmra.mxu0 %v3561
      %v3618 = vpop.f32.mrf.mxu0
      %v3619 = vadd.f32 0.0, %v3618
      %v3620 = vpop.f32.mrf.mxu0
      %v3621 = vadd.f32 0.0, %v3620
      %v3622 = vpop.f32.mrf.mxu0
      %v3623 = vadd.f32 0.0, %v3622
      %v3624 = vpop.f32.mrf.mxu0
      %v3625 = vadd.f32 0.0, %v3624
      %3626 = vmatprep.mubr.bf16.mxu0 0
      %3627 = vmatmul.mubr.bf16.gmra.mxu0 %v3564
      %v3628 = vpop.f32.mrf.mxu0
      %v3629 = vadd.f32 0.0, %v3628
      %v3630 = vpop.f32.mrf.mxu0
      %v3631 = vadd.f32 0.0, %v3630
      %v3632 = vpop.f32.mrf.mxu0
      %v3633 = vadd.f32 0.0, %v3632
      %v3634 = vpop.f32.mrf.mxu0
      %v3635 = vadd.f32 0.0, %v3634
      %3636 = vmatprep.mubr.bf16.mxu0 0
      %3637 = vmatmul.mubr.bf16.gmra.mxu0 %v3567
      %v3638 = vpop.f32.mrf.mxu0
      %v3639 = vadd.f32 0.0, %v3638
      %v3640 = vpop.f32.mrf.mxu0
      %v3641 = vadd.f32 0.0, %v3640
      %v3642 = vpop.f32.mrf.mxu0
      %v3643 = vadd.f32 0.0, %v3642
      %v3644 = vpop.f32.mrf.mxu0
      %v3645 = vadd.f32 0.0, %v3644
      %3646 = vmatprep.mubr.bf16.mxu0 0
      %3647 = vmatmul.mubr.bf16.gmra.mxu0 %v3570
      %v3648 = vpop.f32.mrf.mxu0
      %v3649 = vadd.f32 0.0, %v3648
      %v3650 = vpop.f32.mrf.mxu0
      %v3651 = vadd.f32 0.0, %v3650
      %v3652 = vpop.f32.mrf.mxu0
      %v3653 = vadd.f32 0.0, %v3652
      %v3654 = vpop.f32.mrf.mxu0
      %v3655 = vadd.f32 0.0, %v3654
      %3656 = vmatprep.mubr.bf16.mxu0 0
      %3657 = vmatmul.mubr.bf16.gmra.mxu0 %v3573
      %v3658 = vpop.f32.mrf.mxu0
      %v3659 = vadd.f32 0.0, %v3658
      %v3660 = vpop.f32.mrf.mxu0
      %v3661 = vadd.f32 0.0, %v3660
      %v3662 = vpop.f32.mrf.mxu0
      %v3663 = vadd.f32 0.0, %v3662
      %v3664 = vpop.f32.mrf.mxu0
      %v3665 = vadd.f32 0.0, %v3664
      %3666 = vmatprep.mubr.bf16.mxu0 0
      %3667 = vmatmul.mubr.bf16.gmra.mxu0 %v3576
      %v3668 = vpop.f32.mrf.mxu0
      %v3669 = vadd.f32 0.0, %v3668
      %v3670 = vpop.f32.mrf.mxu0
      %v3671 = vadd.f32 0.0, %v3670
      %v3672 = vpop.f32.mrf.mxu0
      %v3673 = vadd.f32 0.0, %v3672
      %v3674 = vpop.f32.mrf.mxu0
      %v3675 = vadd.f32 0.0, %v3674
      %3676 = vdwg.mxu0
      %v3679 = vunpack.c.l.b16 %v3349
      %v3680 = vunpack.c.h.b16 %v3349
      %v3681 = vunpack.c.l.b16 %v3350
      %v3682 = vunpack.c.h.b16 %v3350
      %v3683 = vpack.c.b16 %v3681, %v3679
      %v3684 = vpack.c.b16 %v3682, %v3680
      %v3686 = vsel %vm2034, %v3332, 0
      %v3689 = vsel %vm2034, %v3335, 0
      %v3692 = vsel %vm2034, %v3338, 0
      %v3695 = vsel %vm2034, %v3341, 0
      %v3698 = vsel %vm2034, %v3344, 0
      %v3701 = vsel %vm2034, %v3347, 0
      %v3704 = vsel %vm2053, %v3683, 0
      %v3707 = vsel %vm2053, %v3684, 0
      %3709 = vmatprep.subr.bf16.mxu0 0
      %3710 = vmatpush1.bf16.msra.mxu0 0
      %3711 = vmatprep.subr.bf16.mxu0 0
      %3712 = vmatpush1.bf16.msra.mxu0 0
      %3713 = vmatprep.subr.bf16.mxu0 0
      %3714 = vmatpush1.bf16.msra.mxu0 0
      %3715 = vmatprep.subr.bf16.mxu0 0
      %3716 = vmatpush1.bf16.msra.mxu0 0
      %3717 = vmatprep.subr.bf16.mxu0 0
      %3718 = vmatpush1.bf16.msra.mxu0 0
      %3719 = vmatprep.subr.bf16.mxu0 0
      %3720 = vmatpush1.bf16.msra.mxu0 0
      %3721 = vmatprep.subr.bf16.mxu0 0
      %3722 = vmatpush1.bf16.msra.mxu0 0
      %3723 = vmatprep.subr.bf16.mxu0 %v3707
      %3724 = vmatpush1.bf16.msra.mxu0 %v3704
      %3725 = vmatprep.subr.bf16.mxu0 0
      %3726 = vmatpush2.bf16.msra.mxu0 0
      %3727 = vmatprep.subr.bf16.mxu0 0
      %3728 = vmatpush2.bf16.msra.mxu0 0
      %3729 = vmatprep.subr.bf16.mxu0 0
      %3730 = vmatpush2.bf16.msra.mxu0 0
      %3731 = vmatprep.subr.bf16.mxu0 0
      %3732 = vmatpush2.bf16.msra.mxu0 0
      %3733 = vmatprep.subr.bf16.mxu0 0
      %3734 = vmatpush2.bf16.msra.mxu0 0
      %3735 = vmatprep.subr.bf16.mxu0 0
      %3736 = vmatpush2.bf16.msra.mxu0 0
      %3737 = vmatprep.subr.bf16.mxu0 0
      %3738 = vmatpush2.bf16.msra.mxu0 0
      %3739 = vmatprep.subr.bf16.mxu0 0
      %3740 = vmatpush2.bf16.msra.mxu0 0
      %3741 = vmatprep.mubr.bf16.mxu0 0
      %3742 = vmatmul.mubr.bf16.gmra.mxu0 %v3686
      %v3743 = vpop.f32.mrf.mxu0
      %v3744 = vadd.f32 %v3619, %v3743
      %v3745 = vpop.f32.mrf.mxu0
      %v3746 = vadd.f32 %v3621, %v3745
      %v3747 = vpop.f32.mrf.mxu0
      %v3748 = vadd.f32 %v3623, %v3747
      %v3749 = vpop.f32.mrf.mxu0
      %v3750 = vadd.f32 %v3625, %v3749
      %3751 = vmatprep.mubr.bf16.mxu0 0
      %3752 = vmatmul.mubr.bf16.gmra.mxu0 %v3689
      %v3753 = vpop.f32.mrf.mxu0
      %v3754 = vadd.f32 %v3629, %v3753
      %v3755 = vpop.f32.mrf.mxu0
      %v3756 = vadd.f32 %v3631, %v3755
      %v3757 = vpop.f32.mrf.mxu0
      %v3758 = vadd.f32 %v3633, %v3757
      %v3759 = vpop.f32.mrf.mxu0
      %v3760 = vadd.f32 %v3635, %v3759
      %3761 = vmatprep.mubr.bf16.mxu0 0
      %3762 = vmatmul.mubr.bf16.gmra.mxu0 %v3692
      %v3763 = vpop.f32.mrf.mxu0
      %v3764 = vadd.f32 %v3639, %v3763
      %v3765 = vpop.f32.mrf.mxu0
      %v3766 = vadd.f32 %v3641, %v3765
      %v3767 = vpop.f32.mrf.mxu0
      %v3768 = vadd.f32 %v3643, %v3767
      %v3769 = vpop.f32.mrf.mxu0
      %v3770 = vadd.f32 %v3645, %v3769
      %3771 = vmatprep.mubr.bf16.mxu0 0
      %3772 = vmatmul.mubr.bf16.gmra.mxu0 %v3695
      %v3773 = vpop.f32.mrf.mxu0
      %v3774 = vadd.f32 %v3649, %v3773
      %v3775 = vpop.f32.mrf.mxu0
      %v3776 = vadd.f32 %v3651, %v3775
      %v3777 = vpop.f32.mrf.mxu0
      %v3778 = vadd.f32 %v3653, %v3777
      %v3779 = vpop.f32.mrf.mxu0
      %v3780 = vadd.f32 %v3655, %v3779
      %3781 = vmatprep.mubr.bf16.mxu0 0
      %3782 = vmatmul.mubr.bf16.gmra.mxu0 %v3698
      %v3783 = vpop.f32.mrf.mxu0
      %v3784 = vadd.f32 %v3659, %v3783
      %v3785 = vpop.f32.mrf.mxu0
      %v3786 = vadd.f32 %v3661, %v3785
      %v3787 = vpop.f32.mrf.mxu0
      %v3788 = vadd.f32 %v3663, %v3787
      %v3789 = vpop.f32.mrf.mxu0
      %v3790 = vadd.f32 %v3665, %v3789
      %3791 = vmatprep.mubr.bf16.mxu0 0
      %3792 = vmatmul.mubr.bf16.gmra.mxu0 %v3701
      %v3793 = vpop.f32.mrf.mxu0
      %v3794 = vadd.f32 %v3669, %v3793
      %v3795 = vpop.f32.mrf.mxu0
      %v3796 = vadd.f32 %v3671, %v3795
      %v3797 = vpop.f32.mrf.mxu0
      %v3798 = vadd.f32 %v3673, %v3797
      %v3799 = vpop.f32.mrf.mxu0
      %v3800 = vadd.f32 %v3675, %v3799
      %3801 = vdwg.mxu0
      %v3820 = vunpack.c.l.b16 %v947
      %v3821 = vunpack.c.l.b16 %v948
      %v3822 = vunpack.c.l.b16 %v949
      %v3823 = vunpack.c.l.b16 %v953
      %v3824 = vunpack.c.l.b16 %v954
      %v3825 = vunpack.c.l.b16 %v955
      %v3826 = vunpack.c.l.b16 %v959
      %v3827 = vunpack.c.l.b16 %v960
      %v3828 = vunpack.c.l.b16 %v961
      %v3829 = vunpack.c.l.b16 %v965
      %v3830 = vunpack.c.l.b16 %v966
      %v3831 = vunpack.c.l.b16 %v967
      %v3832 = vunpack.c.l.b16 %v971
      %v3833 = vunpack.c.l.b16 %v972
      %v3834 = vunpack.c.l.b16 %v973
      %v3835 = vunpack.c.l.b16 %v977
      %v3836 = vunpack.c.l.b16 %v978
      %v3837 = vunpack.c.l.b16 %v979
      %v3838 = vpack.c.b16 %v3821, %v3820
      %v3839 = vpack.c.b16 %v3822, %v3822
      %v3840 = vpack.c.b16 %v3824, %v3823
      %v3841 = vpack.c.b16 %v3825, %v3825
      %v3842 = vpack.c.b16 %v3827, %v3826
      %v3843 = vpack.c.b16 %v3828, %v3828
      %v3844 = vpack.c.b16 %v3830, %v3829
      %v3845 = vpack.c.b16 %v3831, %v3831
      %v3846 = vpack.c.b16 %v3833, %v3832
      %v3847 = vpack.c.b16 %v3834, %v3834
      %v3848 = vpack.c.b16 %v3836, %v3835
      %v3849 = vpack.c.b16 %v3837, %v3837
      %v3862 = vunpack.c.l.b16 %v950
      %v3863 = vunpack.c.l.b16 %v951
      %v3864 = vunpack.c.l.b16 %v956
      %v3865 = vunpack.c.l.b16 %v957
      %v3866 = vunpack.c.l.b16 %v962
      %v3867 = vunpack.c.l.b16 %v963
      %v3868 = vunpack.c.l.b16 %v968
      %v3869 = vunpack.c.l.b16 %v969
      %v3870 = vunpack.c.l.b16 %v974
      %v3871 = vunpack.c.l.b16 %v975
      %v3872 = vunpack.c.l.b16 %v980
      %v3873 = vunpack.c.l.b16 %v981
      %v3874 = vpack.c.b16 %v3862, %v3822
      %v3875 = vpack.c.b16 %v3863, %v3863
      %v3876 = vpack.c.b16 %v3864, %v3825
      %v3877 = vpack.c.b16 %v3865, %v3865
      %v3878 = vpack.c.b16 %v3866, %v3828
      %v3879 = vpack.c.b16 %v3867, %v3867
      %v3880 = vpack.c.b16 %v3868, %v3831
      %v3881 = vpack.c.b16 %v3869, %v3869
      %v3882 = vpack.c.b16 %v3870, %v3834
      %v3883 = vpack.c.b16 %v3871, %v3871
      %v3884 = vpack.c.b16 %v3872, %v3837
      %v3885 = vpack.c.b16 %v3873, %v3873
      %v3886 = vrot.slane %v3874, 6
      %v3887 = vrot.slane %v3875, 6
      %v3888 = vsel %vm3166, %v3886, %v3887
      %v3889 = vrot.slane %v3876, 6
      %v3890 = vrot.slane %v3877, 6
      %v3891 = vsel %vm3166, %v3889, %v3890
      %v3892 = vrot.slane %v3878, 6
      %v3893 = vrot.slane %v3879, 6
      %v3894 = vsel %vm3166, %v3892, %v3893
      %v3895 = vrot.slane %v3880, 6
      %v3896 = vrot.slane %v3881, 6
      %v3897 = vsel %vm3166, %v3895, %v3896
      %v3898 = vrot.slane %v3882, 6
      %v3899 = vrot.slane %v3883, 6
      %v3900 = vsel %vm3166, %v3898, %v3899
      %v3901 = vrot.slane %v3884, 6
      %v3902 = vrot.slane %v3885, 6
      %v3903 = vsel %vm3166, %v3901, %v3902
      %3904 = vrot.lane.b32.xlu0 %v3886, 4
      %v3905 = vpop.permute.xlu0 %3904
      %3906 = vrot.lane.b32.xlu0 %v3888, 4
      %v3907 = vpop.permute.xlu0 %3906
      %3908 = vrot.lane.b32.xlu0 %v3889, 4
      %v3909 = vpop.permute.xlu0 %3908
      %3910 = vrot.lane.b32.xlu0 %v3891, 4
      %v3911 = vpop.permute.xlu0 %3910
      %3912 = vrot.lane.b32.xlu0 %v3892, 4
      %v3913 = vpop.permute.xlu0 %3912
      %3914 = vrot.lane.b32.xlu0 %v3894, 4
      %v3915 = vpop.permute.xlu0 %3914
      %3916 = vrot.lane.b32.xlu0 %v3895, 4
      %v3917 = vpop.permute.xlu0 %3916
      %3918 = vrot.lane.b32.xlu0 %v3897, 4
      %v3919 = vpop.permute.xlu0 %3918
      %3920 = vrot.lane.b32.xlu0 %v3898, 4
      %v3921 = vpop.permute.xlu0 %3920
      %3922 = vrot.lane.b32.xlu0 %v3900, 4
      %v3923 = vpop.permute.xlu0 %3922
      %3924 = vrot.lane.b32.xlu0 %v3901, 4
      %v3925 = vpop.permute.xlu0 %3924
      %3926 = vrot.lane.b32.xlu0 %v3903, 4
      %v3927 = vpop.permute.xlu0 %3926
      %v3934 = vunpack.c.l.b16 %v952
      %v3935 = vunpack.c.l.b16 %v958
      %v3936 = vunpack.c.l.b16 %v964
      %v3937 = vunpack.c.l.b16 %v970
      %v3938 = vunpack.c.l.b16 %v976
      %v3939 = vunpack.c.l.b16 %v982
      %v3940 = vpack.c.b16 %v3863, %v3862
      %v3941 = vpack.c.b16 %v3934, %v3934
      %v3942 = vpack.c.b16 %v3865, %v3864
      %v3943 = vpack.c.b16 %v3935, %v3935
      %v3944 = vpack.c.b16 %v3867, %v3866
      %v3945 = vpack.c.b16 %v3936, %v3936
      %v3946 = vpack.c.b16 %v3869, %v3868
      %v3947 = vpack.c.b16 %v3937, %v3937
      %v3948 = vpack.c.b16 %v3871, %v3870
      %v3949 = vpack.c.b16 %v3938, %v3938
      %v3950 = vpack.c.b16 %v3873, %v3872
      %v3951 = vpack.c.b16 %v3939, %v3939
      %3952 = vrot.lane.b32.xlu0 %v3940, 8
      %v3953 = vpop.permute.xlu0 %3952
      %3954 = vrot.lane.b32.xlu0 %v3941, 8
      %v3955 = vpop.permute.xlu0 %3954
      %3956 = vrot.lane.b32.xlu0 %v3942, 8
      %v3957 = vpop.permute.xlu0 %3956
      %3958 = vrot.lane.b32.xlu0 %v3943, 8
      %v3959 = vpop.permute.xlu0 %3958
      %3960 = vrot.lane.b32.xlu0 %v3944, 8
      %v3961 = vpop.permute.xlu0 %3960
      %3962 = vrot.lane.b32.xlu0 %v3945, 8
      %v3963 = vpop.permute.xlu0 %3962
      %3964 = vrot.lane.b32.xlu0 %v3946, 8
      %v3965 = vpop.permute.xlu0 %3964
      %3966 = vrot.lane.b32.xlu0 %v3947, 8
      %v3967 = vpop.permute.xlu0 %3966
      %3968 = vrot.lane.b32.xlu0 %v3948, 8
      %v3969 = vpop.permute.xlu0 %3968
      %3970 = vrot.lane.b32.xlu0 %v3949, 8
      %v3971 = vpop.permute.xlu0 %3970
      %3972 = vrot.lane.b32.xlu0 %v3950, 8
      %v3973 = vpop.permute.xlu0 %3972
      %3974 = vrot.lane.b32.xlu0 %v3951, 8
      %v3975 = vpop.permute.xlu0 %3974
      %v3978 = vsel %vm1128, %v3838, %v3905
      %v3981 = vsel %vm1128, %v3839, %v3907
      %v3984 = vsel %vm1128, %v3840, %v3909
      %v3987 = vsel %vm1128, %v3841, %v3911
      %v3990 = vsel %vm1128, %v3842, %v3913
      %v3993 = vsel %vm1128, %v3843, %v3915
      %v3996 = vsel %vm1128, %v3844, %v3917
      %v3999 = vsel %vm1128, %v3845, %v3919
      %v4002 = vsel %vm1128, %v3846, %v3921
      %v4005 = vsel %vm1128, %v3847, %v3923
      %v4008 = vsel %vm1128, %v3848, %v3925
      %v4011 = vsel %vm1128, %v3849, %v3927
      %v4013 = vsel %vm1767, %v3978, %v3953
      %v4015 = vsel %vm1767, %v3981, %v3955
      %v4017 = vsel %vm1767, %v3984, %v3957
      %v4019 = vsel %vm1767, %v3987, %v3959
      %v4021 = vsel %vm1767, %v3990, %v3961
      %v4023 = vsel %vm1767, %v3993, %v3963
      %v4025 = vsel %vm1767, %v3996, %v3965
      %v4027 = vsel %vm1767, %v3999, %v3967
      %v4029 = vsel %vm1767, %v4002, %v3969
      %v4031 = vsel %vm1767, %v4005, %v3971
      %v4033 = vsel %vm1767, %v4008, %v3973
      %v4035 = vsel %vm1767, %v4011, %v3975
      %v4048 = vrot.slane %v4013, 3
      %v4049 = vrot.slane %v4015, 3
      %v4050 = vsel %vm3329, %v4048, %v4049
      %v4051 = vrot.slane %v4017, 3
      %v4052 = vrot.slane %v4019, 3
      %v4053 = vsel %vm3329, %v4051, %v4052
      %v4054 = vrot.slane %v4021, 3
      %v4055 = vrot.slane %v4023, 3
      %v4056 = vsel %vm3329, %v4054, %v4055
      %v4057 = vrot.slane %v4025, 3
      %v4058 = vrot.slane %v4027, 3
      %v4059 = vsel %vm3329, %v4057, %v4058
      %v4060 = vrot.slane %v4029, 3
      %v4061 = vrot.slane %v4031, 3
      %v4062 = vsel %vm3329, %v4060, %v4061
      %v4063 = vrot.slane %v4033, 3
      %v4064 = vrot.slane %v4035, 3
      %v4065 = vsel %vm3329, %v4063, %v4064
      %s4066 = scalar_lea.vmem %s8, 80
      %v4067 = vld [vmem:[%s4066] sm:$0xff]
      %v4068 = vld [vmem:[%s4066 + $0x8] sm:$0x33]
      %v4071 = vunpack.c.l.b16 %v4067
      %v4072 = vunpack.c.h.b16 %v4067
      %v4073 = vunpack.c.l.b16 %v4068
      %v4074 = vunpack.c.h.b16 %v4068
      %v4075 = vpack.c.b16 %v4073, %v4071
      %v4076 = vpack.c.b16 %v4074, %v4072
      %v4078 = vsel %vm2034, %v4050, 0
      %v4081 = vsel %vm2034, %v4053, 0
      %v4084 = vsel %vm2034, %v4056, 0
      %v4087 = vsel %vm2034, %v4059, 0
      %v4090 = vsel %vm2034, %v4062, 0
      %v4093 = vsel %vm2034, %v4065, 0
      %v4096 = vsel %vm2053, %v4075, 0
      %v4099 = vsel %vm2053, %v4076, 0
      %4101 = vmatprep.subr.bf16.mxu0 0
      %4102 = vmatpush1.bf16.msra.mxu0 0
      %4103 = vmatprep.subr.bf16.mxu0 0
      %4104 = vmatpush1.bf16.msra.mxu0 0
      %4105 = vmatprep.subr.bf16.mxu0 0
      %4106 = vmatpush1.bf16.msra.mxu0 0
      %4107 = vmatprep.subr.bf16.mxu0 0
      %4108 = vmatpush1.bf16.msra.mxu0 0
      %4109 = vmatprep.subr.bf16.mxu0 0
      %4110 = vmatpush1.bf16.msra.mxu0 0
      %4111 = vmatprep.subr.bf16.mxu0 0
      %4112 = vmatpush1.bf16.msra.mxu0 0
      %4113 = vmatprep.subr.bf16.mxu0 0
      %4114 = vmatpush1.bf16.msra.mxu0 0
      %4115 = vmatprep.subr.bf16.mxu0 %v4099
      %4116 = vmatpush1.bf16.msra.mxu0 %v4096
      %4117 = vmatprep.subr.bf16.mxu0 0
      %4118 = vmatpush2.bf16.msra.mxu0 0
      %4119 = vmatprep.subr.bf16.mxu0 0
      %4120 = vmatpush2.bf16.msra.mxu0 0
      %4121 = vmatprep.subr.bf16.mxu0 0
      %4122 = vmatpush2.bf16.msra.mxu0 0
      %4123 = vmatprep.subr.bf16.mxu0 0
      %4124 = vmatpush2.bf16.msra.mxu0 0
      %4125 = vmatprep.subr.bf16.mxu0 0
      %4126 = vmatpush2.bf16.msra.mxu0 0
      %4127 = vmatprep.subr.bf16.mxu0 0
      %4128 = vmatpush2.bf16.msra.mxu0 0
      %4129 = vmatprep.subr.bf16.mxu0 0
      %4130 = vmatpush2.bf16.msra.mxu0 0
      %4131 = vmatprep.subr.bf16.mxu0 0
      %4132 = vmatpush2.bf16.msra.mxu0 0
      %4133 = vmatprep.mubr.bf16.mxu0 0
      %4134 = vmatmul.mubr.bf16.gmra.mxu0 %v4078
      %v4135 = vpop.f32.mrf.mxu0
      %v4136 = vadd.f32 0.0, %v4135
      %v4137 = vpop.f32.mrf.mxu0
      %v4138 = vadd.f32 0.0, %v4137
      %v4139 = vpop.f32.mrf.mxu0
      %v4140 = vadd.f32 0.0, %v4139
      %v4141 = vpop.f32.mrf.mxu0
      %v4142 = vadd.f32 0.0, %v4141
      %4143 = vmatprep.mubr.bf16.mxu0 0
      %4144 = vmatmul.mubr.bf16.gmra.mxu0 %v4081
      %v4145 = vpop.f32.mrf.mxu0
      %v4146 = vadd.f32 0.0, %v4145
      %v4147 = vpop.f32.mrf.mxu0
      %v4148 = vadd.f32 0.0, %v4147
      %v4149 = vpop.f32.mrf.mxu0
      %v4150 = vadd.f32 0.0, %v4149
      %v4151 = vpop.f32.mrf.mxu0
      %v4152 = vadd.f32 0.0, %v4151
      %4153 = vmatprep.mubr.bf16.mxu0 0
      %4154 = vmatmul.mubr.bf16.gmra.mxu0 %v4084
      %v4155 = vpop.f32.mrf.mxu0
      %v4156 = vadd.f32 0.0, %v4155
      %v4157 = vpop.f32.mrf.mxu0
      %v4158 = vadd.f32 0.0, %v4157
      %v4159 = vpop.f32.mrf.mxu0
      %v4160 = vadd.f32 0.0, %v4159
      %v4161 = vpop.f32.mrf.mxu0
      %v4162 = vadd.f32 0.0, %v4161
      %4163 = vmatprep.mubr.bf16.mxu0 0
      %4164 = vmatmul.mubr.bf16.gmra.mxu0 %v4087
      %v4165 = vpop.f32.mrf.mxu0
      %v4166 = vadd.f32 0.0, %v4165
      %v4167 = vpop.f32.mrf.mxu0
      %v4168 = vadd.f32 0.0, %v4167
      %v4169 = vpop.f32.mrf.mxu0
      %v4170 = vadd.f32 0.0, %v4169
      %v4171 = vpop.f32.mrf.mxu0
      %v4172 = vadd.f32 0.0, %v4171
      %4173 = vmatprep.mubr.bf16.mxu0 0
      %4174 = vmatmul.mubr.bf16.gmra.mxu0 %v4090
      %v4175 = vpop.f32.mrf.mxu0
      %v4176 = vadd.f32 0.0, %v4175
      %v4177 = vpop.f32.mrf.mxu0
      %v4178 = vadd.f32 0.0, %v4177
      %v4179 = vpop.f32.mrf.mxu0
      %v4180 = vadd.f32 0.0, %v4179
      %v4181 = vpop.f32.mrf.mxu0
      %v4182 = vadd.f32 0.0, %v4181
      %4183 = vmatprep.mubr.bf16.mxu0 0
      %4184 = vmatmul.mubr.bf16.gmra.mxu0 %v4093
      %v4185 = vpop.f32.mrf.mxu0
      %v4186 = vadd.f32 0.0, %v4185
      %v4187 = vpop.f32.mrf.mxu0
      %v4188 = vadd.f32 0.0, %v4187
      %v4189 = vpop.f32.mrf.mxu0
      %v4190 = vadd.f32 0.0, %v4189
      %v4191 = vpop.f32.mrf.mxu0
      %v4192 = vadd.f32 0.0, %v4191
      %4193 = vdwg.mxu0
      %v4194 = vadd.f32 %v3744, %v4136
      %v4195 = vadd.f32 %v3746, %v4138
      %v4196 = vadd.f32 %v3748, %v4140
      %v4197 = vadd.f32 %v3750, %v4142
      %v4198 = vadd.f32 %v3754, %v4146
      %v4199 = vadd.f32 %v3756, %v4148
      %v4200 = vadd.f32 %v3758, %v4150
      %v4201 = vadd.f32 %v3760, %v4152
      %v4202 = vadd.f32 %v3764, %v4156
      %v4203 = vadd.f32 %v3766, %v4158
      %v4204 = vadd.f32 %v3768, %v4160
      %v4205 = vadd.f32 %v3770, %v4162
      %v4206 = vadd.f32 %v3774, %v4166
      %v4207 = vadd.f32 %v3776, %v4168
      %v4208 = vadd.f32 %v3778, %v4170
      %v4209 = vadd.f32 %v3780, %v4172
      %v4210 = vadd.f32 %v3784, %v4176
      %v4211 = vadd.f32 %v3786, %v4178
      %v4212 = vadd.f32 %v3788, %v4180
      %v4213 = vadd.f32 %v3790, %v4182
      %v4214 = vadd.f32 %v3794, %v4186
      %v4215 = vadd.f32 %v3796, %v4188
      %v4216 = vadd.f32 %v3798, %v4190
      %v4217 = vadd.f32 %v3800, %v4192
      %s4218 = scalar_lea.vmem %s11, 2
      %v4219 = vld [vmem:[%s4218] sm:$0x3]
      %v4221 = vlaneseq
      %v4222 = vshrl.u32 %v4221, 7
      %v4223 = vsub.s32 0, %v4222
      %v4224 = vrot.slane %v4219, %v4223
      %v4225 = vlaneseq
      %v4226 = vshrl.u32 %v4225, 7
      %v4227 = vsub.s32 1, %v4226
      %v4228 = vrot.slane %v4219, %v4227
      %v4231 = vadd.f32 %v4194, %v4224
      %v4232 = vadd.f32 %v4195, %v4228
      %v4233 = vadd.f32 %v4196, %v4224
      %v4234 = vadd.f32 %v4197, %v4228
      %v4235 = vadd.f32 %v4198, %v4224
      %v4236 = vadd.f32 %v4199, %v4228
      %v4237 = vadd.f32 %v4200, %v4224
      %v4238 = vadd.f32 %v4201, %v4228
      %v4239 = vadd.f32 %v4202, %v4224
      %v4240 = vadd.f32 %v4203, %v4228
      %v4241 = vadd.f32 %v4204, %v4224
      %v4242 = vadd.f32 %v4205, %v4228
      %v4243 = vadd.f32 %v4206, %v4224
      %v4244 = vadd.f32 %v4207, %v4228
      %v4245 = vadd.f32 %v4208, %v4224
      %v4246 = vadd.f32 %v4209, %v4228
      %v4247 = vadd.f32 %v4210, %v4224
      %v4248 = vadd.f32 %v4211, %v4228
      %v4249 = vadd.f32 %v4212, %v4224
      %v4250 = vadd.f32 %v4213, %v4228
      %v4251 = vadd.f32 %v4214, %v4224
      %v4252 = vadd.f32 %v4215, %v4228
      %v4253 = vadd.f32 %v4216, %v4224
      %v4254 = vadd.f32 %v4217, %v4228
      %v4255 = vmax.f32 %v4231, 0.0
      %v4256 = vmax.f32 %v4232, 0.0
      %v4257 = vmax.f32 %v4233, 0.0
      %v4258 = vmax.f32 %v4234, 0.0
      %v4259 = vmax.f32 %v4235, 0.0
      %v4260 = vmax.f32 %v4236, 0.0
      %v4261 = vmax.f32 %v4237, 0.0
      %v4262 = vmax.f32 %v4238, 0.0
      %v4263 = vmax.f32 %v4239, 0.0
      %v4264 = vmax.f32 %v4240, 0.0
      %v4265 = vmax.f32 %v4241, 0.0
      %v4266 = vmax.f32 %v4242, 0.0
      %v4267 = vmax.f32 %v4243, 0.0
      %v4268 = vmax.f32 %v4244, 0.0
      %v4269 = vmax.f32 %v4245, 0.0
      %v4270 = vmax.f32 %v4246, 0.0
      %v4271 = vmax.f32 %v4247, 0.0
      %v4272 = vmax.f32 %v4248, 0.0
      %v4273 = vmax.f32 %v4249, 0.0
      %v4274 = vmax.f32 %v4250, 0.0
      %v4275 = vmax.f32 %v4251, 0.0
      %v4276 = vmax.f32 %v4252, 0.0
      %v4277 = vmax.f32 %v4253, 0.0
      %v4278 = vmax.f32 %v4254, 0.0
      %v4279 = vpack.c.bf16 %v4257, %v4255
      %v4280 = vpack.c.bf16 %v4258, %v4256
      %v4281 = vpack.c.bf16 %v4261, %v4259
      %v4282 = vpack.c.bf16 %v4262, %v4260
      %v4283 = vpack.c.bf16 %v4265, %v4263
      %v4284 = vpack.c.bf16 %v4266, %v4264
      %v4285 = vpack.c.bf16 %v4269, %v4267
      %v4286 = vpack.c.bf16 %v4270, %v4268
      %v4287 = vpack.c.bf16 %v4273, %v4271
      %v4288 = vpack.c.bf16 %v4274, %v4272
      %v4289 = vpack.c.bf16 %v4277, %v4275
      %v4290 = vpack.c.bf16 %v4278, %v4276
      %v4291 = vld [vmem:[#allocation2] sm:$0xff]
      %v4292 = vld [vmem:[#allocation2 + $0x8] sm:$0xff]
      %v4293 = vld [vmem:[#allocation2 + $0x10] sm:$0xff]
      %v4294 = vld [vmem:[#allocation2 + $0x18] sm:$0xff]
      %v4295 = vld [vmem:[#allocation2 + $0x20] sm:$0xff]
      %v4296 = vld [vmem:[#allocation2 + $0x28] sm:$0xff]
      %v4297 = vld [vmem:[#allocation2 + $0x30] sm:$0xff]
      %v4298 = vld [vmem:[#allocation2 + $0x38] sm:$0xff]
      %v4299 = vld [vmem:[#allocation2 + $0x40] sm:$0xff]
      %v4300 = vld [vmem:[#allocation2 + $0x48] sm:$0xff]
      %v4301 = vld [vmem:[#allocation2 + $0x50] sm:$0xff]
      %v4302 = vld [vmem:[#allocation2 + $0x58] sm:$0xff]
      %v4303 = vld [vmem:[#allocation2 + $0x60] sm:$0xff]
      %v4304 = vld [vmem:[#allocation2 + $0x68] sm:$0xff]
      %v4305 = vld [vmem:[#allocation2 + $0x70] sm:$0xff]
      %v4306 = vld [vmem:[#allocation2 + $0x78] sm:$0xff]
      %v4307 = vld [vmem:[#allocation2 + $0x80] sm:$0xff]
      %v4308 = vld [vmem:[#allocation2 + $0x88] sm:$0xff]
      %v4309 = vld [vmem:[#allocation2 + $0x90] sm:$0xff]
      %v4310 = vld [vmem:[#allocation2 + $0x98] sm:$0xff]
      %v4311 = vld [vmem:[#allocation2 + $0xa0] sm:$0xff]
      %v4312 = vld [vmem:[#allocation2 + $0xa8] sm:$0xff]
      %v4313 = vld [vmem:[#allocation2 + $0xb0] sm:$0xff]
      %v4314 = vld [vmem:[#allocation2 + $0xb8] sm:$0xff]
      %s4315 = scalar_lea.vmem %s9, 512
      %v4316 = vld [vmem:[%s4315] sm:$0xff]
      %v4317 = vld [vmem:[%s4315 + $0x8] sm:$0xff]
      %v4318 = vld [vmem:[%s4315 + $0x10] sm:$0xff]
      %v4319 = vld [vmem:[%s4315 + $0x18] sm:$0xff]
      %v4320 = vld [vmem:[%s4315 + $0x20] sm:$0xff]
      %v4321 = vld [vmem:[%s4315 + $0x28] sm:$0xff]
      %v4322 = vld [vmem:[%s4315 + $0x30] sm:$0xff]
      %v4323 = vld [vmem:[%s4315 + $0x38] sm:$0xff]
      %v4324 = vld [vmem:[%s4315 + $0x40] sm:$0xff]
      %v4325 = vld [vmem:[%s4315 + $0x48] sm:$0xff]
      %v4326 = vld [vmem:[%s4315 + $0x50] sm:$0xff]
      %v4327 = vld [vmem:[%s4315 + $0x58] sm:$0xff]
      %v4328 = vld [vmem:[%s4315 + $0x60] sm:$0xff]
      %v4329 = vld [vmem:[%s4315 + $0x68] sm:$0xff]
      %v4330 = vld [vmem:[%s4315 + $0x70] sm:$0xff]
      %v4331 = vld [vmem:[%s4315 + $0x78] sm:$0xff]
      %v4332 = vld [vmem:[%s4315 + $0x80] sm:$0xff]
      %v4333 = vld [vmem:[%s4315 + $0x88] sm:$0xff]
      %v4334 = vld [vmem:[%s4315 + $0x90] sm:$0xff]
      %v4335 = vld [vmem:[%s4315 + $0x98] sm:$0xff]
      %v4336 = vld [vmem:[%s4315 + $0xa0] sm:$0xff]
      %v4337 = vld [vmem:[%s4315 + $0xa8] sm:$0xff]
      %v4338 = vld [vmem:[%s4315 + $0xb0] sm:$0xff]
      %v4339 = vld [vmem:[%s4315 + $0xb8] sm:$0xff]
      %v4340 = vld [vmem:[%s4315 + $0xc0] sm:$0xff]
      %v4341 = vld [vmem:[%s4315 + $0xc8] sm:$0xff]
      %v4342 = vld [vmem:[%s4315 + $0xd0] sm:$0xff]
      %v4343 = vld [vmem:[%s4315 + $0xd8] sm:$0xff]
      %v4344 = vld [vmem:[%s4315 + $0xe0] sm:$0xff]
      %v4345 = vld [vmem:[%s4315 + $0xe8] sm:$0xff]
      %v4346 = vld [vmem:[%s4315 + $0xf0] sm:$0xff]
      %v4347 = vld [vmem:[%s4315 + $0xf8] sm:$0xff]
      %v4380 = vunpack.c.l.b16 %v4316
      %v4381 = vunpack.c.h.b16 %v4316
      %v4382 = vunpack.c.l.b16 %v4317
      %v4383 = vunpack.c.h.b16 %v4317
      %v4384 = vunpack.c.l.b16 %v4318
      %v4385 = vunpack.c.h.b16 %v4318
      %v4386 = vunpack.c.l.b16 %v4319
      %v4387 = vunpack.c.h.b16 %v4319
      %v4388 = vunpack.c.l.b16 %v4320
      %v4389 = vunpack.c.h.b16 %v4320
      %v4390 = vunpack.c.l.b16 %v4321
      %v4391 = vunpack.c.h.b16 %v4321
      %v4392 = vunpack.c.l.b16 %v4322
      %v4393 = vunpack.c.h.b16 %v4322
      %v4394 = vunpack.c.l.b16 %v4323
      %v4395 = vunpack.c.h.b16 %v4323
      %v4396 = vunpack.c.l.b16 %v4324
      %v4397 = vunpack.c.h.b16 %v4324
      %v4398 = vunpack.c.l.b16 %v4325
      %v4399 = vunpack.c.h.b16 %v4325
      %v4400 = vunpack.c.l.b16 %v4326
      %v4401 = vunpack.c.h.b16 %v4326
      %v4402 = vunpack.c.l.b16 %v4327
      %v4403 = vunpack.c.h.b16 %v4327
      %v4404 = vunpack.c.l.b16 %v4328
      %v4405 = vunpack.c.h.b16 %v4328
      %v4406 = vunpack.c.l.b16 %v4329
      %v4407 = vunpack.c.h.b16 %v4329
      %v4408 = vunpack.c.l.b16 %v4330
      %v4409 = vunpack.c.h.b16 %v4330
      %v4410 = vunpack.c.l.b16 %v4331
      %v4411 = vunpack.c.h.b16 %v4331
      %v4412 = vunpack.c.l.b16 %v4332
      %v4413 = vunpack.c.h.b16 %v4332
      %v4414 = vunpack.c.l.b16 %v4333
      %v4415 = vunpack.c.h.b16 %v4333
      %v4416 = vunpack.c.l.b16 %v4334
      %v4417 = vunpack.c.h.b16 %v4334
      %v4418 = vunpack.c.l.b16 %v4335
      %v4419 = vunpack.c.h.b16 %v4335
      %v4420 = vunpack.c.l.b16 %v4336
      %v4421 = vunpack.c.h.b16 %v4336
      %v4422 = vunpack.c.l.b16 %v4337
      %v4423 = vunpack.c.h.b16 %v4337
      %v4424 = vunpack.c.l.b16 %v4338
      %v4425 = vunpack.c.h.b16 %v4338
      %v4426 = vunpack.c.l.b16 %v4339
      %v4427 = vunpack.c.h.b16 %v4339
      %v4428 = vunpack.c.l.b16 %v4340
      %v4429 = vunpack.c.h.b16 %v4340
      %v4430 = vunpack.c.l.b16 %v4341
      %v4431 = vunpack.c.h.b16 %v4341
      %v4432 = vunpack.c.l.b16 %v4342
      %v4433 = vunpack.c.h.b16 %v4342
      %v4434 = vunpack.c.l.b16 %v4343
      %v4435 = vunpack.c.h.b16 %v4343
      %v4436 = vunpack.c.l.b16 %v4344
      %v4437 = vunpack.c.h.b16 %v4344
      %v4438 = vunpack.c.l.b16 %v4345
      %v4439 = vunpack.c.h.b16 %v4345
      %v4440 = vunpack.c.l.b16 %v4346
      %v4441 = vunpack.c.h.b16 %v4346
      %v4442 = vunpack.c.l.b16 %v4347
      %v4443 = vunpack.c.h.b16 %v4347
      %v4444 = vpack.c.b16 %v4382, %v4380
      %v4445 = vpack.c.b16 %v4383, %v4381
      %v4446 = vpack.c.b16 %v4386, %v4384
      %v4447 = vpack.c.b16 %v4387, %v4385
      %v4448 = vpack.c.b16 %v4390, %v4388
      %v4449 = vpack.c.b16 %v4391, %v4389
      %v4450 = vpack.c.b16 %v4394, %v4392
      %v4451 = vpack.c.b16 %v4395, %v4393
      %v4452 = vpack.c.b16 %v4398, %v4396
      %v4453 = vpack.c.b16 %v4399, %v4397
      %v4454 = vpack.c.b16 %v4402, %v4400
      %v4455 = vpack.c.b16 %v4403, %v4401
      %v4456 = vpack.c.b16 %v4406, %v4404
      %v4457 = vpack.c.b16 %v4407, %v4405
      %v4458 = vpack.c.b16 %v4410, %v4408
      %v4459 = vpack.c.b16 %v4411, %v4409
      %v4460 = vpack.c.b16 %v4414, %v4412
      %v4461 = vpack.c.b16 %v4415, %v4413
      %v4462 = vpack.c.b16 %v4418, %v4416
      %v4463 = vpack.c.b16 %v4419, %v4417
      %v4464 = vpack.c.b16 %v4422, %v4420
      %v4465 = vpack.c.b16 %v4423, %v4421
      %v4466 = vpack.c.b16 %v4426, %v4424
      %v4467 = vpack.c.b16 %v4427, %v4425
      %v4468 = vpack.c.b16 %v4430, %v4428
      %v4469 = vpack.c.b16 %v4431, %v4429
      %v4470 = vpack.c.b16 %v4434, %v4432
      %v4471 = vpack.c.b16 %v4435, %v4433
      %v4472 = vpack.c.b16 %v4438, %v4436
      %v4473 = vpack.c.b16 %v4439, %v4437
      %v4474 = vpack.c.b16 %v4442, %v4440
      %v4475 = vpack.c.b16 %v4443, %v4441
      %4508 = vmatprep.subr.bf16.mxu0 %v4459
      %4509 = vmatpush1.bf16.msra.mxu0 %v4458
      %4510 = vmatprep.subr.bf16.mxu0 %v4457
      %4511 = vmatpush1.bf16.msra.mxu0 %v4456
      %4512 = vmatprep.subr.bf16.mxu0 %v4455
      %4513 = vmatpush1.bf16.msra.mxu0 %v4454
      %4514 = vmatprep.subr.bf16.mxu0 %v4453
      %4515 = vmatpush1.bf16.msra.mxu0 %v4452
      %4516 = vmatprep.subr.bf16.mxu0 %v4451
      %4517 = vmatpush1.bf16.msra.mxu0 %v4450
      %4518 = vmatprep.subr.bf16.mxu0 %v4449
      %4519 = vmatpush1.bf16.msra.mxu0 %v4448
      %4520 = vmatprep.subr.bf16.mxu0 %v4447
      %4521 = vmatpush1.bf16.msra.mxu0 %v4446
      %4522 = vmatprep.subr.bf16.mxu0 %v4445
      %4523 = vmatpush1.bf16.msra.mxu0 %v4444
      %4524 = vmatprep.subr.bf16.mxu0 %v4475
      %4525 = vmatpush2.bf16.msra.mxu0 %v4474
      %4526 = vmatprep.subr.bf16.mxu0 %v4473
      %4527 = vmatpush2.bf16.msra.mxu0 %v4472
      %4528 = vmatprep.subr.bf16.mxu0 %v4471
      %4529 = vmatpush2.bf16.msra.mxu0 %v4470
      %4530 = vmatprep.subr.bf16.mxu0 %v4469
      %4531 = vmatpush2.bf16.msra.mxu0 %v4468
      %4532 = vmatprep.subr.bf16.mxu0 %v4467
      %4533 = vmatpush2.bf16.msra.mxu0 %v4466
      %4534 = vmatprep.subr.bf16.mxu0 %v4465
      %4535 = vmatpush2.bf16.msra.mxu0 %v4464
      %4536 = vmatprep.subr.bf16.mxu0 %v4463
      %4537 = vmatpush2.bf16.msra.mxu0 %v4462
      %4538 = vmatprep.subr.bf16.mxu0 %v4461
      %4539 = vmatpush2.bf16.msra.mxu0 %v4460
      %4540 = vmatprep.mubr.bf16.mxu0 %v4280
      %4541 = vmatmul.mubr.bf16.gmra.mxu0 %v4279
      %v4542 = vpop.f32.mrf.mxu0
      %v4543 = vadd.f32 0.0, %v4542
      %v4544 = vpop.f32.mrf.mxu0
      %v4545 = vadd.f32 0.0, %v4544
      %v4546 = vpop.f32.mrf.mxu0
      %v4547 = vadd.f32 0.0, %v4546
      %v4548 = vpop.f32.mrf.mxu0
      %v4549 = vadd.f32 0.0, %v4548
      %4550 = vmatprep.mubr.bf16.mxu0 %v4282
      %4551 = vmatmul.mubr.bf16.gmra.mxu0 %v4281
      %v4552 = vpop.f32.mrf.mxu0
      %v4553 = vadd.f32 0.0, %v4552
      %v4554 = vpop.f32.mrf.mxu0
      %v4555 = vadd.f32 0.0, %v4554
      %v4556 = vpop.f32.mrf.mxu0
      %v4557 = vadd.f32 0.0, %v4556
      %v4558 = vpop.f32.mrf.mxu0
      %v4559 = vadd.f32 0.0, %v4558
      %4560 = vmatprep.mubr.bf16.mxu0 %v4284
      %4561 = vmatmul.mubr.bf16.gmra.mxu0 %v4283
      %v4562 = vpop.f32.mrf.mxu0
      %v4563 = vadd.f32 0.0, %v4562
      %v4564 = vpop.f32.mrf.mxu0
      %v4565 = vadd.f32 0.0, %v4564
      %v4566 = vpop.f32.mrf.mxu0
      %v4567 = vadd.f32 0.0, %v4566
      %v4568 = vpop.f32.mrf.mxu0
      %v4569 = vadd.f32 0.0, %v4568
      %4570 = vmatprep.mubr.bf16.mxu0 %v4286
      %4571 = vmatmul.mubr.bf16.gmra.mxu0 %v4285
      %v4572 = vpop.f32.mrf.mxu0
      %v4573 = vadd.f32 0.0, %v4572
      %v4574 = vpop.f32.mrf.mxu0
      %v4575 = vadd.f32 0.0, %v4574
      %v4576 = vpop.f32.mrf.mxu0
      %v4577 = vadd.f32 0.0, %v4576
      %v4578 = vpop.f32.mrf.mxu0
      %v4579 = vadd.f32 0.0, %v4578
      %4580 = vmatprep.mubr.bf16.mxu0 %v4288
      %4581 = vmatmul.mubr.bf16.gmra.mxu0 %v4287
      %v4582 = vpop.f32.mrf.mxu0
      %v4583 = vadd.f32 0.0, %v4582
      %v4584 = vpop.f32.mrf.mxu0
      %v4585 = vadd.f32 0.0, %v4584
      %v4586 = vpop.f32.mrf.mxu0
      %v4587 = vadd.f32 0.0, %v4586
      %v4588 = vpop.f32.mrf.mxu0
      %v4589 = vadd.f32 0.0, %v4588
      %4590 = vmatprep.mubr.bf16.mxu0 %v4290
      %4591 = vmatmul.mubr.bf16.gmra.mxu0 %v4289
      %v4592 = vpop.f32.mrf.mxu0
      %v4593 = vadd.f32 0.0, %v4592
      %v4594 = vpop.f32.mrf.mxu0
      %v4595 = vadd.f32 0.0, %v4594
      %v4596 = vpop.f32.mrf.mxu0
      %v4597 = vadd.f32 0.0, %v4596
      %v4598 = vpop.f32.mrf.mxu0
      %v4599 = vadd.f32 0.0, %v4598
      %4600 = vdwg.mxu0
      %v4601 = vadd.f32 %v4291, %v4543
      %v4602 = vadd.f32 %v4292, %v4545
      %v4603 = vadd.f32 %v4293, %v4547
      %v4604 = vadd.f32 %v4294, %v4549
      %v4605 = vadd.f32 %v4295, %v4553
      %v4606 = vadd.f32 %v4296, %v4555
      %v4607 = vadd.f32 %v4297, %v4557
      %v4608 = vadd.f32 %v4298, %v4559
      %v4609 = vadd.f32 %v4299, %v4563
      %v4610 = vadd.f32 %v4300, %v4565
      %v4611 = vadd.f32 %v4301, %v4567
      %v4612 = vadd.f32 %v4302, %v4569
      %v4613 = vadd.f32 %v4303, %v4573
      %v4614 = vadd.f32 %v4304, %v4575
      %v4615 = vadd.f32 %v4305, %v4577
      %v4616 = vadd.f32 %v4306, %v4579
      %v4617 = vadd.f32 %v4307, %v4583
      %v4618 = vadd.f32 %v4308, %v4585
      %v4619 = vadd.f32 %v4309, %v4587
      %v4620 = vadd.f32 %v4310, %v4589
      %v4621 = vadd.f32 %v4311, %v4593
      %v4622 = vadd.f32 %v4312, %v4595
      %v4623 = vadd.f32 %v4313, %v4597
      %v4624 = vadd.f32 %v4314, %v4599
      %4625 = vst [vmem:[#allocation2] sm:$0xff] %v4601
      %4626 = vst [vmem:[#allocation2 + $0x8] sm:$0xff] %v4602
      %4627 = vst [vmem:[#allocation2 + $0x10] sm:$0xff] %v4603
      %4628 = vst [vmem:[#allocation2 + $0x18] sm:$0xff] %v4604
      %4629 = vst [vmem:[#allocation2 + $0x20] sm:$0xff] %v4605
      %4630 = vst [vmem:[#allocation2 + $0x28] sm:$0xff] %v4606
      %4631 = vst [vmem:[#allocation2 + $0x30] sm:$0xff] %v4607
      %4632 = vst [vmem:[#allocation2 + $0x38] sm:$0xff] %v4608
      %4633 = vst [vmem:[#allocation2 + $0x40] sm:$0xff] %v4609
      %4634 = vst [vmem:[#allocation2 + $0x48] sm:$0xff] %v4610
      %4635 = vst [vmem:[#allocation2 + $0x50] sm:$0xff] %v4611
      %4636 = vst [vmem:[#allocation2 + $0x58] sm:$0xff] %v4612
      %4637 = vst [vmem:[#allocation2 + $0x60] sm:$0xff] %v4613
      %4638 = vst [vmem:[#allocation2 + $0x68] sm:$0xff] %v4614
      %4639 = vst [vmem:[#allocation2 + $0x70] sm:$0xff] %v4615
      %4640 = vst [vmem:[#allocation2 + $0x78] sm:$0xff] %v4616
      %4641 = vst [vmem:[#allocation2 + $0x80] sm:$0xff] %v4617
      %4642 = vst [vmem:[#allocation2 + $0x88] sm:$0xff] %v4618
      %4643 = vst [vmem:[#allocation2 + $0x90] sm:$0xff] %v4619
      %4644 = vst [vmem:[#allocation2 + $0x98] sm:$0xff] %v4620
      %4645 = vst [vmem:[#allocation2 + $0xa0] sm:$0xff] %v4621
      %4646 = vst [vmem:[#allocation2 + $0xa8] sm:$0xff] %v4622
      %4647 = vst [vmem:[#allocation2 + $0xb0] sm:$0xff] %v4623
      %4648 = vst [vmem:[#allocation2 + $0xb8] sm:$0xff] %v4624
      %v4661 = vunpack.c.l.b16 %v779
      %v4662 = vunpack.c.l.b16 %v780
      %v4663 = vunpack.c.l.b16 %v786
      %v4664 = vunpack.c.l.b16 %v787
      %v4665 = vunpack.c.l.b16 %v793
      %v4666 = vunpack.c.l.b16 %v794
      %v4667 = vunpack.c.l.b16 %v800
      %v4668 = vunpack.c.l.b16 %v801
      %v4669 = vunpack.c.l.b16 %v807
      %v4670 = vunpack.c.l.b16 %v808
      %v4671 = vunpack.c.l.b16 %v814
      %v4672 = vunpack.c.l.b16 %v815
      %v4673 = vpack.c.b16 %v4662, %v4661
      %v4674 = vpack.c.b16 %v4664, %v4663
      %v4675 = vpack.c.b16 %v4666, %v4665
      %v4676 = vpack.c.b16 %v4668, %v4667
      %v4677 = vpack.c.b16 %v4670, %v4669
      %v4678 = vpack.c.b16 %v4672, %v4671
      %v4697 = vunpack.c.l.b16 %v781
      %v4698 = vunpack.c.l.b16 %v782
      %v4699 = vunpack.c.l.b16 %v783
      %v4700 = vunpack.c.l.b16 %v788
      %v4701 = vunpack.c.l.b16 %v789
      %v4702 = vunpack.c.l.b16 %v790
      %v4703 = vunpack.c.l.b16 %v795
      %v4704 = vunpack.c.l.b16 %v796
      %v4705 = vunpack.c.l.b16 %v797
      %v4706 = vunpack.c.l.b16 %v802
      %v4707 = vunpack.c.l.b16 %v803
      %v4708 = vunpack.c.l.b16 %v804
      %v4709 = vunpack.c.l.b16 %v809
      %v4710 = vunpack.c.l.b16 %v810
      %v4711 = vunpack.c.l.b16 %v811
      %v4712 = vunpack.c.l.b16 %v816
      %v4713 = vunpack.c.l.b16 %v817
      %v4714 = vunpack.c.l.b16 %v818
      %v4715 = vpack.c.b16 %v4698, %v4697
      %v4716 = vpack.c.b16 %v4699, %v4699
      %v4717 = vpack.c.b16 %v4701, %v4700
      %v4718 = vpack.c.b16 %v4702, %v4702
      %v4719 = vpack.c.b16 %v4704, %v4703
      %v4720 = vpack.c.b16 %v4705, %v4705
      %v4721 = vpack.c.b16 %v4707, %v4706
      %v4722 = vpack.c.b16 %v4708, %v4708
      %v4723 = vpack.c.b16 %v4710, %v4709
      %v4724 = vpack.c.b16 %v4711, %v4711
      %v4725 = vpack.c.b16 %v4713, %v4712
      %v4726 = vpack.c.b16 %v4714, %v4714
      %vm4727 = vcmask 1046528
      %v4728 = vrot.slane %v4715, 1
      %v4729 = vrot.slane %v4716, 1
      %v4730 = vsel %vm4727, %v4728, %v4729
      %v4731 = vrot.slane %v4717, 1
      %v4732 = vrot.slane %v4718, 1
      %v4733 = vsel %vm4727, %v4731, %v4732
      %v4734 = vrot.slane %v4719, 1
      %v4735 = vrot.slane %v4720, 1
      %v4736 = vsel %vm4727, %v4734, %v4735
      %v4737 = vrot.slane %v4721, 1
      %v4738 = vrot.slane %v4722, 1
      %v4739 = vsel %vm4727, %v4737, %v4738
      %v4740 = vrot.slane %v4723, 1
      %v4741 = vrot.slane %v4724, 1
      %v4742 = vsel %vm4727, %v4740, %v4741
      %v4743 = vrot.slane %v4725, 1
      %v4744 = vrot.slane %v4726, 1
      %v4745 = vsel %vm4727, %v4743, %v4744
      %4746 = vrot.lane.b32.xlu0 %v4730, 4
      %v4747 = vpop.permute.xlu0 %4746
      %4748 = vrot.lane.b32.xlu0 %v4733, 4
      %v4749 = vpop.permute.xlu0 %4748
      %4750 = vrot.lane.b32.xlu0 %v4736, 4
      %v4751 = vpop.permute.xlu0 %4750
      %4752 = vrot.lane.b32.xlu0 %v4739, 4
      %v4753 = vpop.permute.xlu0 %4752
      %4754 = vrot.lane.b32.xlu0 %v4742, 4
      %v4755 = vpop.permute.xlu0 %4754
      %4756 = vrot.lane.b32.xlu0 %v4745, 4
      %v4757 = vpop.permute.xlu0 %4756
      %v4770 = vunpack.c.l.b16 %v784
      %v4771 = vunpack.c.l.b16 %v785
      %v4772 = vunpack.c.l.b16 %v791
      %v4773 = vunpack.c.l.b16 %v792
      %v4774 = vunpack.c.l.b16 %v798
      %v4775 = vunpack.c.l.b16 %v799
      %v4776 = vunpack.c.l.b16 %v805
      %v4777 = vunpack.c.l.b16 %v806
      %v4778 = vunpack.c.l.b16 %v812
      %v4779 = vunpack.c.l.b16 %v813
      %v4780 = vunpack.c.l.b16 %v819
      %v4781 = vunpack.c.l.b16 %v820
      %v4782 = vpack.c.b16 %v4770, %v4699
      %v4783 = vpack.c.b16 %v4771, %v4771
      %v4784 = vpack.c.b16 %v4772, %v4702
      %v4785 = vpack.c.b16 %v4773, %v4773
      %v4786 = vpack.c.b16 %v4774, %v4705
      %v4787 = vpack.c.b16 %v4775, %v4775
      %v4788 = vpack.c.b16 %v4776, %v4708
      %v4789 = vpack.c.b16 %v4777, %v4777
      %v4790 = vpack.c.b16 %v4778, %v4711
      %v4791 = vpack.c.b16 %v4779, %v4779
      %v4792 = vpack.c.b16 %v4780, %v4714
      %v4793 = vpack.c.b16 %v4781, %v4781
      %v4794 = vrot.slane %v4782, 2
      %v4795 = vrot.slane %v4783, 2
      %v4796 = vsel %vm1798, %v4794, %v4795
      %v4797 = vrot.slane %v4784, 2
      %v4798 = vrot.slane %v4785, 2
      %v4799 = vsel %vm1798, %v4797, %v4798
      %v4800 = vrot.slane %v4786, 2
      %v4801 = vrot.slane %v4787, 2
      %v4802 = vsel %vm1798, %v4800, %v4801
      %v4803 = vrot.slane %v4788, 2
      %v4804 = vrot.slane %v4789, 2
      %v4805 = vsel %vm1798, %v4803, %v4804
      %v4806 = vrot.slane %v4790, 2
      %v4807 = vrot.slane %v4791, 2
      %v4808 = vsel %vm1798, %v4806, %v4807
      %v4809 = vrot.slane %v4792, 2
      %v4810 = vrot.slane %v4793, 2
      %v4811 = vsel %vm1798, %v4809, %v4810
      %4812 = vrot.lane.b32.xlu0 %v4796, 8
      %v4813 = vpop.permute.xlu0 %4812
      %4814 = vrot.lane.b32.xlu0 %v4799, 8
      %v4815 = vpop.permute.xlu0 %4814
      %4816 = vrot.lane.b32.xlu0 %v4802, 8
      %v4817 = vpop.permute.xlu0 %4816
      %4818 = vrot.lane.b32.xlu0 %v4805, 8
      %v4819 = vpop.permute.xlu0 %4818
      %4820 = vrot.lane.b32.xlu0 %v4808, 8
      %v4821 = vpop.permute.xlu0 %4820
      %4822 = vrot.lane.b32.xlu0 %v4811, 8
      %v4823 = vpop.permute.xlu0 %4822
      %v4826 = vsel %vm1128, %v4673, %v4747
      %v4829 = vsel %vm1128, %v4674, %v4749
      %v4832 = vsel %vm1128, %v4675, %v4751
      %v4835 = vsel %vm1128, %v4676, %v4753
      %v4838 = vsel %vm1128, %v4677, %v4755
      %v4841 = vsel %vm1128, %v4678, %v4757
      %v4843 = vsel %vm1767, %v4826, %v4813
      %v4845 = vsel %vm1767, %v4829, %v4815
      %v4847 = vsel %vm1767, %v4832, %v4817
      %v4849 = vsel %vm1767, %v4835, %v4819
      %v4851 = vsel %vm1767, %v4838, %v4821
      %v4853 = vsel %vm1767, %v4841, %v4823
      %s4854 = scalar_lea.vmem %s8, 96
      %v4855 = vld [vmem:[%s4854] sm:$0xff]
      %v4856 = vld [vmem:[%s4854 + $0x8] sm:$0x33]
      %v4857 = vrot.slane %v1861, 1
      %v4858 = vrot.slane %v1862, 1
      %v4859 = vsel %vm4727, %v4857, %v4858
      %v4860 = vrot.slane %v1863, 1
      %v4861 = vrot.slane %v1864, 1
      %v4862 = vsel %vm4727, %v4860, %v4861
      %v4863 = vrot.slane %v1865, 1
      %v4864 = vrot.slane %v1866, 1
      %v4865 = vsel %vm4727, %v4863, %v4864
      %v4866 = vrot.slane %v1867, 1
      %v4867 = vrot.slane %v1868, 1
      %v4868 = vsel %vm4727, %v4866, %v4867
      %v4869 = vrot.slane %v1869, 1
      %v4870 = vrot.slane %v1870, 1
      %v4871 = vsel %vm4727, %v4869, %v4870
      %v4872 = vrot.slane %v1871, 1
      %v4873 = vrot.slane %v1872, 1
      %v4874 = vsel %vm4727, %v4872, %v4873
      %4875 = vrot.lane.b32.xlu0 %v4859, 4
      %v4876 = vpop.permute.xlu0 %4875
      %4877 = vrot.lane.b32.xlu0 %v4862, 4
      %v4878 = vpop.permute.xlu0 %4877
      %4879 = vrot.lane.b32.xlu0 %v4865, 4
      %v4880 = vpop.permute.xlu0 %4879
      %4881 = vrot.lane.b32.xlu0 %v4868, 4
      %v4882 = vpop.permute.xlu0 %4881
      %4883 = vrot.lane.b32.xlu0 %v4871, 4
      %v4884 = vpop.permute.xlu0 %4883
      %4885 = vrot.lane.b32.xlu0 %v4874, 4
      %v4886 = vpop.permute.xlu0 %4885
      %v4893 = vunpack.c.l.b16 %v887
      %v4894 = vunpack.c.l.b16 %v894
      %v4895 = vunpack.c.l.b16 %v901
      %v4896 = vunpack.c.l.b16 %v908
      %v4897 = vunpack.c.l.b16 %v915
      %v4898 = vunpack.c.l.b16 %v922
      %v4899 = vpack.c.b16 %v3423, %v1855
      %v4900 = vpack.c.b16 %v4893, %v4893
      %v4901 = vpack.c.b16 %v3424, %v1856
      %v4902 = vpack.c.b16 %v4894, %v4894
      %v4903 = vpack.c.b16 %v3425, %v1857
      %v4904 = vpack.c.b16 %v4895, %v4895
      %v4905 = vpack.c.b16 %v3426, %v1858
      %v4906 = vpack.c.b16 %v4896, %v4896
      %v4907 = vpack.c.b16 %v3427, %v1859
      %v4908 = vpack.c.b16 %v4897, %v4897
      %v4909 = vpack.c.b16 %v3428, %v1860
      %v4910 = vpack.c.b16 %v4898, %v4898
      %v4911 = vrot.slane %v4899, 2
      %v4912 = vrot.slane %v4900, 2
      %v4913 = vsel %vm1798, %v4911, %v4912
      %v4914 = vrot.slane %v4901, 2
      %v4915 = vrot.slane %v4902, 2
      %v4916 = vsel %vm1798, %v4914, %v4915
      %v4917 = vrot.slane %v4903, 2
      %v4918 = vrot.slane %v4904, 2
      %v4919 = vsel %vm1798, %v4917, %v4918
      %v4920 = vrot.slane %v4905, 2
      %v4921 = vrot.slane %v4906, 2
      %v4922 = vsel %vm1798, %v4920, %v4921
      %v4923 = vrot.slane %v4907, 2
      %v4924 = vrot.slane %v4908, 2
      %v4925 = vsel %vm1798, %v4923, %v4924
      %v4926 = vrot.slane %v4909, 2
      %v4927 = vrot.slane %v4910, 2
      %v4928 = vsel %vm1798, %v4926, %v4927
      %4929 = vrot.lane.b32.xlu0 %v4913, 8
      %v4930 = vpop.permute.xlu0 %4929
      %4931 = vrot.lane.b32.xlu0 %v4916, 8
      %v4932 = vpop.permute.xlu0 %4931
      %4933 = vrot.lane.b32.xlu0 %v4919, 8
      %v4934 = vpop.permute.xlu0 %4933
      %4935 = vrot.lane.b32.xlu0 %v4922, 8
      %v4936 = vpop.permute.xlu0 %4935
      %4937 = vrot.lane.b32.xlu0 %v4925, 8
      %v4938 = vpop.permute.xlu0 %4937
      %4939 = vrot.lane.b32.xlu0 %v4928, 8
      %v4940 = vpop.permute.xlu0 %4939
      %v4942 = vsel %vm1128, %v3363, %v4876
      %v4944 = vsel %vm1128, %v3365, %v4878
      %v4946 = vsel %vm1128, %v3367, %v4880
      %v4948 = vsel %vm1128, %v3369, %v4882
      %v4950 = vsel %vm1128, %v3371, %v4884
      %v4952 = vsel %vm1128, %v3373, %v4886
      %v4954 = vsel %vm1767, %v4942, %v4930
      %v4956 = vsel %vm1767, %v4944, %v4932
      %v4958 = vsel %vm1767, %v4946, %v4934
      %v4960 = vsel %vm1767, %v4948, %v4936
      %v4962 = vsel %vm1767, %v4950, %v4938
      %v4964 = vsel %vm1767, %v4952, %v4940
      %s4965 = scalar_lea.vmem %s8, 112
      %v4966 = vld [vmem:[%s4965] sm:$0xff]
      %v4967 = vld [vmem:[%s4965 + $0x8] sm:$0x33]
      %v4970 = vunpack.c.l.b16 %v4966
      %v4971 = vunpack.c.h.b16 %v4966
      %v4972 = vunpack.c.l.b16 %v4967
      %v4973 = vunpack.c.h.b16 %v4967
      %v4974 = vpack.c.b16 %v4972, %v4970
      %v4975 = vpack.c.b16 %v4973, %v4971
      %v4976 = vsel %vm2034, %v4954, 0
      %v4978 = vsel %vm2034, %v4956, 0
      %v4980 = vsel %vm2034, %v4958, 0
      %v4982 = vsel %vm2034, %v4960, 0
      %v4984 = vsel %vm2034, %v4962, 0
      %v4986 = vsel %vm2034, %v4964, 0
      %v4989 = vsel %vm2053, %v4974, 0
      %v4992 = vsel %vm2053, %v4975, 0
      %4994 = vmatprep.subr.bf16.mxu0 0
      %4995 = vmatpush1.bf16.msra.mxu0 0
      %4996 = vmatprep.subr.bf16.mxu0 0
      %4997 = vmatpush1.bf16.msra.mxu0 0
      %4998 = vmatprep.subr.bf16.mxu0 0
      %4999 = vmatpush1.bf16.msra.mxu0 0
      %5000 = vmatprep.subr.bf16.mxu0 0
      %5001 = vmatpush1.bf16.msra.mxu0 0
      %5002 = vmatprep.subr.bf16.mxu0 0
      %5003 = vmatpush1.bf16.msra.mxu0 0
      %5004 = vmatprep.subr.bf16.mxu0 0
      %5005 = vmatpush1.bf16.msra.mxu0 0
      %5006 = vmatprep.subr.bf16.mxu0 0
      %5007 = vmatpush1.bf16.msra.mxu0 0
      %5008 = vmatprep.subr.bf16.mxu0 %v4992
      %5009 = vmatpush1.bf16.msra.mxu0 %v4989
      %5010 = vmatprep.subr.bf16.mxu0 0
      %5011 = vmatpush2.bf16.msra.mxu0 0
      %5012 = vmatprep.subr.bf16.mxu0 0
      %5013 = vmatpush2.bf16.msra.mxu0 0
      %5014 = vmatprep.subr.bf16.mxu0 0
      %5015 = vmatpush2.bf16.msra.mxu0 0
      %5016 = vmatprep.subr.bf16.mxu0 0
      %5017 = vmatpush2.bf16.msra.mxu0 0
      %5018 = vmatprep.subr.bf16.mxu0 0
      %5019 = vmatpush2.bf16.msra.mxu0 0
      %5020 = vmatprep.subr.bf16.mxu0 0
      %5021 = vmatpush2.bf16.msra.mxu0 0
      %5022 = vmatprep.subr.bf16.mxu0 0
      %5023 = vmatpush2.bf16.msra.mxu0 0
      %5024 = vmatprep.subr.bf16.mxu0 0
      %5025 = vmatpush2.bf16.msra.mxu0 0
      %5026 = vmatprep.mubr.bf16.mxu0 0
      %5027 = vmatmul.mubr.bf16.gmra.mxu0 %v4976
      %v5028 = vpop.f32.mrf.mxu0
      %v5029 = vadd.f32 0.0, %v5028
      %v5030 = vpop.f32.mrf.mxu0
      %v5031 = vadd.f32 0.0, %v5030
      %v5032 = vpop.f32.mrf.mxu0
      %v5033 = vadd.f32 0.0, %v5032
      %v5034 = vpop.f32.mrf.mxu0
      %v5035 = vadd.f32 0.0, %v5034
      %5036 = vmatprep.mubr.bf16.mxu0 0
      %5037 = vmatmul.mubr.bf16.gmra.mxu0 %v4978
      %v5038 = vpop.f32.mrf.mxu0
      %v5039 = vadd.f32 0.0, %v5038
      %v5040 = vpop.f32.mrf.mxu0
      %v5041 = vadd.f32 0.0, %v5040
      %v5042 = vpop.f32.mrf.mxu0
      %v5043 = vadd.f32 0.0, %v5042
      %v5044 = vpop.f32.mrf.mxu0
      %v5045 = vadd.f32 0.0, %v5044
      %5046 = vmatprep.mubr.bf16.mxu0 0
      %5047 = vmatmul.mubr.bf16.gmra.mxu0 %v4980
      %v5048 = vpop.f32.mrf.mxu0
      %v5049 = vadd.f32 0.0, %v5048
      %v5050 = vpop.f32.mrf.mxu0
      %v5051 = vadd.f32 0.0, %v5050
      %v5052 = vpop.f32.mrf.mxu0
      %v5053 = vadd.f32 0.0, %v5052
      %v5054 = vpop.f32.mrf.mxu0
      %v5055 = vadd.f32 0.0, %v5054
      %5056 = vmatprep.mubr.bf16.mxu0 0
      %5057 = vmatmul.mubr.bf16.gmra.mxu0 %v4982
      %v5058 = vpop.f32.mrf.mxu0
      %v5059 = vadd.f32 0.0, %v5058
      %v5060 = vpop.f32.mrf.mxu0
      %v5061 = vadd.f32 0.0, %v5060
      %v5062 = vpop.f32.mrf.mxu0
      %v5063 = vadd.f32 0.0, %v5062
      %v5064 = vpop.f32.mrf.mxu0
      %v5065 = vadd.f32 0.0, %v5064
      %5066 = vmatprep.mubr.bf16.mxu0 0
      %5067 = vmatmul.mubr.bf16.gmra.mxu0 %v4984
      %v5068 = vpop.f32.mrf.mxu0
      %v5069 = vadd.f32 0.0, %v5068
      %v5070 = vpop.f32.mrf.mxu0
      %v5071 = vadd.f32 0.0, %v5070
      %v5072 = vpop.f32.mrf.mxu0
      %v5073 = vadd.f32 0.0, %v5072
      %v5074 = vpop.f32.mrf.mxu0
      %v5075 = vadd.f32 0.0, %v5074
      %5076 = vmatprep.mubr.bf16.mxu0 0
      %5077 = vmatmul.mubr.bf16.gmra.mxu0 %v4986
      %v5078 = vpop.f32.mrf.mxu0
      %v5079 = vadd.f32 0.0, %v5078
      %v5080 = vpop.f32.mrf.mxu0
      %v5081 = vadd.f32 0.0, %v5080
      %v5082 = vpop.f32.mrf.mxu0
      %v5083 = vadd.f32 0.0, %v5082
      %v5084 = vpop.f32.mrf.mxu0
      %v5085 = vadd.f32 0.0, %v5084
      %5086 = vdwg.mxu0
      %v5089 = vunpack.c.l.b16 %v4855
      %v5090 = vunpack.c.h.b16 %v4855
      %v5091 = vunpack.c.l.b16 %v4856
      %v5092 = vunpack.c.h.b16 %v4856
      %v5093 = vpack.c.b16 %v5091, %v5089
      %v5094 = vpack.c.b16 %v5092, %v5090
      %v5095 = vsel %vm2034, %v4843, 0
      %v5097 = vsel %vm2034, %v4845, 0
      %v5099 = vsel %vm2034, %v4847, 0
      %v5101 = vsel %vm2034, %v4849, 0
      %v5103 = vsel %vm2034, %v4851, 0
      %v5105 = vsel %vm2034, %v4853, 0
      %v5108 = vsel %vm2053, %v5093, 0
      %v5111 = vsel %vm2053, %v5094, 0
      %5113 = vmatprep.subr.bf16.mxu0 0
      %5114 = vmatpush1.bf16.msra.mxu0 0
      %5115 = vmatprep.subr.bf16.mxu0 0
      %5116 = vmatpush1.bf16.msra.mxu0 0
      %5117 = vmatprep.subr.bf16.mxu0 0
      %5118 = vmatpush1.bf16.msra.mxu0 0
      %5119 = vmatprep.subr.bf16.mxu0 0
      %5120 = vmatpush1.bf16.msra.mxu0 0
      %5121 = vmatprep.subr.bf16.mxu0 0
      %5122 = vmatpush1.bf16.msra.mxu0 0
      %5123 = vmatprep.subr.bf16.mxu0 0
      %5124 = vmatpush1.bf16.msra.mxu0 0
      %5125 = vmatprep.subr.bf16.mxu0 0
      %5126 = vmatpush1.bf16.msra.mxu0 0
      %5127 = vmatprep.subr.bf16.mxu0 %v5111
      %5128 = vmatpush1.bf16.msra.mxu0 %v5108
      %5129 = vmatprep.subr.bf16.mxu0 0
      %5130 = vmatpush2.bf16.msra.mxu0 0
      %5131 = vmatprep.subr.bf16.mxu0 0
      %5132 = vmatpush2.bf16.msra.mxu0 0
      %5133 = vmatprep.subr.bf16.mxu0 0
      %5134 = vmatpush2.bf16.msra.mxu0 0
      %5135 = vmatprep.subr.bf16.mxu0 0
      %5136 = vmatpush2.bf16.msra.mxu0 0
      %5137 = vmatprep.subr.bf16.mxu0 0
      %5138 = vmatpush2.bf16.msra.mxu0 0
      %5139 = vmatprep.subr.bf16.mxu0 0
      %5140 = vmatpush2.bf16.msra.mxu0 0
      %5141 = vmatprep.subr.bf16.mxu0 0
      %5142 = vmatpush2.bf16.msra.mxu0 0
      %5143 = vmatprep.subr.bf16.mxu0 0
      %5144 = vmatpush2.bf16.msra.mxu0 0
      %5145 = vmatprep.mubr.bf16.mxu0 0
      %5146 = vmatmul.mubr.bf16.gmra.mxu0 %v5095
      %v5147 = vpop.f32.mrf.mxu0
      %v5148 = vadd.f32 %v5029, %v5147
      %v5149 = vpop.f32.mrf.mxu0
      %v5150 = vadd.f32 %v5031, %v5149
      %v5151 = vpop.f32.mrf.mxu0
      %v5152 = vadd.f32 %v5033, %v5151
      %v5153 = vpop.f32.mrf.mxu0
      %v5154 = vadd.f32 %v5035, %v5153
      %5155 = vmatprep.mubr.bf16.mxu0 0
      %5156 = vmatmul.mubr.bf16.gmra.mxu0 %v5097
      %v5157 = vpop.f32.mrf.mxu0
      %v5158 = vadd.f32 %v5039, %v5157
      %v5159 = vpop.f32.mrf.mxu0
      %v5160 = vadd.f32 %v5041, %v5159
      %v5161 = vpop.f32.mrf.mxu0
      %v5162 = vadd.f32 %v5043, %v5161
      %v5163 = vpop.f32.mrf.mxu0
      %v5164 = vadd.f32 %v5045, %v5163
      %5165 = vmatprep.mubr.bf16.mxu0 0
      %5166 = vmatmul.mubr.bf16.gmra.mxu0 %v5099
      %v5167 = vpop.f32.mrf.mxu0
      %v5168 = vadd.f32 %v5049, %v5167
      %v5169 = vpop.f32.mrf.mxu0
      %v5170 = vadd.f32 %v5051, %v5169
      %v5171 = vpop.f32.mrf.mxu0
      %v5172 = vadd.f32 %v5053, %v5171
      %v5173 = vpop.f32.mrf.mxu0
      %v5174 = vadd.f32 %v5055, %v5173
      %5175 = vmatprep.mubr.bf16.mxu0 0
      %5176 = vmatmul.mubr.bf16.gmra.mxu0 %v5101
      %v5177 = vpop.f32.mrf.mxu0
      %v5178 = vadd.f32 %v5059, %v5177
      %v5179 = vpop.f32.mrf.mxu0
      %v5180 = vadd.f32 %v5061, %v5179
      %v5181 = vpop.f32.mrf.mxu0
      %v5182 = vadd.f32 %v5063, %v5181
      %v5183 = vpop.f32.mrf.mxu0
      %v5184 = vadd.f32 %v5065, %v5183
      %5185 = vmatprep.mubr.bf16.mxu0 0
      %5186 = vmatmul.mubr.bf16.gmra.mxu0 %v5103
      %v5187 = vpop.f32.mrf.mxu0
      %v5188 = vadd.f32 %v5069, %v5187
      %v5189 = vpop.f32.mrf.mxu0
      %v5190 = vadd.f32 %v5071, %v5189
      %v5191 = vpop.f32.mrf.mxu0
      %v5192 = vadd.f32 %v5073, %v5191
      %v5193 = vpop.f32.mrf.mxu0
      %v5194 = vadd.f32 %v5075, %v5193
      %5195 = vmatprep.mubr.bf16.mxu0 0
      %5196 = vmatmul.mubr.bf16.gmra.mxu0 %v5105
      %v5197 = vpop.f32.mrf.mxu0
      %v5198 = vadd.f32 %v5079, %v5197
      %v5199 = vpop.f32.mrf.mxu0
      %v5200 = vadd.f32 %v5081, %v5199
      %v5201 = vpop.f32.mrf.mxu0
      %v5202 = vadd.f32 %v5083, %v5201
      %v5203 = vpop.f32.mrf.mxu0
      %v5204 = vadd.f32 %v5085, %v5203
      %5205 = vdwg.mxu0
      %v5218 = vunpack.c.l.b16 %v983
      %v5219 = vunpack.c.l.b16 %v984
      %v5220 = vunpack.c.l.b16 %v990
      %v5221 = vunpack.c.l.b16 %v991
      %v5222 = vunpack.c.l.b16 %v997
      %v5223 = vunpack.c.l.b16 %v998
      %v5224 = vunpack.c.l.b16 %v1004
      %v5225 = vunpack.c.l.b16 %v1005
      %v5226 = vunpack.c.l.b16 %v1011
      %v5227 = vunpack.c.l.b16 %v1012
      %v5228 = vunpack.c.l.b16 %v1018
      %v5229 = vunpack.c.l.b16 %v1019
      %v5230 = vpack.c.b16 %v5219, %v5218
      %v5231 = vpack.c.b16 %v5221, %v5220
      %v5232 = vpack.c.b16 %v5223, %v5222
      %v5233 = vpack.c.b16 %v5225, %v5224
      %v5234 = vpack.c.b16 %v5227, %v5226
      %v5235 = vpack.c.b16 %v5229, %v5228
      %v5254 = vunpack.c.l.b16 %v985
      %v5255 = vunpack.c.l.b16 %v986
      %v5256 = vunpack.c.l.b16 %v987
      %v5257 = vunpack.c.l.b16 %v992
      %v5258 = vunpack.c.l.b16 %v993
      %v5259 = vunpack.c.l.b16 %v994
      %v5260 = vunpack.c.l.b16 %v999
      %v5261 = vunpack.c.l.b16 %v1000
      %v5262 = vunpack.c.l.b16 %v1001
      %v5263 = vunpack.c.l.b16 %v1006
      %v5264 = vunpack.c.l.b16 %v1007
      %v5265 = vunpack.c.l.b16 %v1008
      %v5266 = vunpack.c.l.b16 %v1013
      %v5267 = vunpack.c.l.b16 %v1014
      %v5268 = vunpack.c.l.b16 %v1015
      %v5269 = vunpack.c.l.b16 %v1020
      %v5270 = vunpack.c.l.b16 %v1021
      %v5271 = vunpack.c.l.b16 %v1022
      %v5272 = vpack.c.b16 %v5255, %v5254
      %v5273 = vpack.c.b16 %v5256, %v5256
      %v5274 = vpack.c.b16 %v5258, %v5257
      %v5275 = vpack.c.b16 %v5259, %v5259
      %v5276 = vpack.c.b16 %v5261, %v5260
      %v5277 = vpack.c.b16 %v5262, %v5262
      %v5278 = vpack.c.b16 %v5264, %v5263
      %v5279 = vpack.c.b16 %v5265, %v5265
      %v5280 = vpack.c.b16 %v5267, %v5266
      %v5281 = vpack.c.b16 %v5268, %v5268
      %v5282 = vpack.c.b16 %v5270, %v5269
      %v5283 = vpack.c.b16 %v5271, %v5271
      %v5284 = vrot.slane %v5272, 1
      %v5285 = vrot.slane %v5273, 1
      %v5286 = vsel %vm4727, %v5284, %v5285
      %v5287 = vrot.slane %v5274, 1
      %v5288 = vrot.slane %v5275, 1
      %v5289 = vsel %vm4727, %v5287, %v5288
      %v5290 = vrot.slane %v5276, 1
      %v5291 = vrot.slane %v5277, 1
      %v5292 = vsel %vm4727, %v5290, %v5291
      %v5293 = vrot.slane %v5278, 1
      %v5294 = vrot.slane %v5279, 1
      %v5295 = vsel %vm4727, %v5293, %v5294
      %v5296 = vrot.slane %v5280, 1
      %v5297 = vrot.slane %v5281, 1
      %v5298 = vsel %vm4727, %v5296, %v5297
      %v5299 = vrot.slane %v5282, 1
      %v5300 = vrot.slane %v5283, 1
      %v5301 = vsel %vm4727, %v5299, %v5300
      %5302 = vrot.lane.b32.xlu0 %v5286, 4
      %v5303 = vpop.permute.xlu0 %5302
      %5304 = vrot.lane.b32.xlu0 %v5289, 4
      %v5305 = vpop.permute.xlu0 %5304
      %5306 = vrot.lane.b32.xlu0 %v5292, 4
      %v5307 = vpop.permute.xlu0 %5306
      %5308 = vrot.lane.b32.xlu0 %v5295, 4
      %v5309 = vpop.permute.xlu0 %5308
      %5310 = vrot.lane.b32.xlu0 %v5298, 4
      %v5311 = vpop.permute.xlu0 %5310
      %5312 = vrot.lane.b32.xlu0 %v5301, 4
      %v5313 = vpop.permute.xlu0 %5312
      %v5326 = vunpack.c.l.b16 %v988
      %v5327 = vunpack.c.l.b16 %v989
      %v5328 = vunpack.c.l.b16 %v995
      %v5329 = vunpack.c.l.b16 %v996
      %v5330 = vunpack.c.l.b16 %v1002
      %v5331 = vunpack.c.l.b16 %v1003
      %v5332 = vunpack.c.l.b16 %v1009
      %v5333 = vunpack.c.l.b16 %v1010
      %v5334 = vunpack.c.l.b16 %v1016
      %v5335 = vunpack.c.l.b16 %v1017
      %v5336 = vunpack.c.l.b16 %v1023
      %v5337 = vunpack.c.l.b16 %v1024
      %v5338 = vpack.c.b16 %v5326, %v5256
      %v5339 = vpack.c.b16 %v5327, %v5327
      %v5340 = vpack.c.b16 %v5328, %v5259
      %v5341 = vpack.c.b16 %v5329, %v5329
      %v5342 = vpack.c.b16 %v5330, %v5262
      %v5343 = vpack.c.b16 %v5331, %v5331
      %v5344 = vpack.c.b16 %v5332, %v5265
      %v5345 = vpack.c.b16 %v5333, %v5333
      %v5346 = vpack.c.b16 %v5334, %v5268
      %v5347 = vpack.c.b16 %v5335, %v5335
      %v5348 = vpack.c.b16 %v5336, %v5271
      %v5349 = vpack.c.b16 %v5337, %v5337
      %v5350 = vrot.slane %v5338, 2
      %v5351 = vrot.slane %v5339, 2
      %v5352 = vsel %vm1798, %v5350, %v5351
      %v5353 = vrot.slane %v5340, 2
      %v5354 = vrot.slane %v5341, 2
      %v5355 = vsel %vm1798, %v5353, %v5354
      %v5356 = vrot.slane %v5342, 2
      %v5357 = vrot.slane %v5343, 2
      %v5358 = vsel %vm1798, %v5356, %v5357
      %v5359 = vrot.slane %v5344, 2
      %v5360 = vrot.slane %v5345, 2
      %v5361 = vsel %vm1798, %v5359, %v5360
      %v5362 = vrot.slane %v5346, 2
      %v5363 = vrot.slane %v5347, 2
      %v5364 = vsel %vm1798, %v5362, %v5363
      %v5365 = vrot.slane %v5348, 2
      %v5366 = vrot.slane %v5349, 2
      %v5367 = vsel %vm1798, %v5365, %v5366
      %5368 = vrot.lane.b32.xlu0 %v5352, 8
      %v5369 = vpop.permute.xlu0 %5368
      %5370 = vrot.lane.b32.xlu0 %v5355, 8
      %v5371 = vpop.permute.xlu0 %5370
      %5372 = vrot.lane.b32.xlu0 %v5358, 8
      %v5373 = vpop.permute.xlu0 %5372
      %5374 = vrot.lane.b32.xlu0 %v5361, 8
      %v5375 = vpop.permute.xlu0 %5374
      %5376 = vrot.lane.b32.xlu0 %v5364, 8
      %v5377 = vpop.permute.xlu0 %5376
      %5378 = vrot.lane.b32.xlu0 %v5367, 8
      %v5379 = vpop.permute.xlu0 %5378
      %v5382 = vsel %vm1128, %v5230, %v5303
      %v5385 = vsel %vm1128, %v5231, %v5305
      %v5388 = vsel %vm1128, %v5232, %v5307
      %v5391 = vsel %vm1128, %v5233, %v5309
      %v5394 = vsel %vm1128, %v5234, %v5311
      %v5397 = vsel %vm1128, %v5235, %v5313
      %v5399 = vsel %vm1767, %v5382, %v5369
      %v5401 = vsel %vm1767, %v5385, %v5371
      %v5403 = vsel %vm1767, %v5388, %v5373
      %v5405 = vsel %vm1767, %v5391, %v5375
      %v5407 = vsel %vm1767, %v5394, %v5377
      %v5409 = vsel %vm1767, %v5397, %v5379
      %s5410 = scalar_lea.vmem %s8, 128
      %v5411 = vld [vmem:[%s5410] sm:$0xff]
      %v5412 = vld [vmem:[%s5410 + $0x8] sm:$0x33]
      %v5415 = vunpack.c.l.b16 %v5411
      %v5416 = vunpack.c.h.b16 %v5411
      %v5417 = vunpack.c.l.b16 %v5412
      %v5418 = vunpack.c.h.b16 %v5412
      %v5419 = vpack.c.b16 %v5417, %v5415
      %v5420 = vpack.c.b16 %v5418, %v5416
      %v5421 = vsel %vm2034, %v5399, 0
      %v5423 = vsel %vm2034, %v5401, 0
      %v5425 = vsel %vm2034, %v5403, 0
      %v5427 = vsel %vm2034, %v5405, 0
      %v5429 = vsel %vm2034, %v5407, 0
      %v5431 = vsel %vm2034, %v5409, 0
      %v5434 = vsel %vm2053, %v5419, 0
      %v5437 = vsel %vm2053, %v5420, 0
      %5439 = vmatprep.subr.bf16.mxu0 0
      %5440 = vmatpush1.bf16.msra.mxu0 0
      %5441 = vmatprep.subr.bf16.mxu0 0
      %5442 = vmatpush1.bf16.msra.mxu0 0
      %5443 = vmatprep.subr.bf16.mxu0 0
      %5444 = vmatpush1.bf16.msra.mxu0 0
      %5445 = vmatprep.subr.bf16.mxu0 0
      %5446 = vmatpush1.bf16.msra.mxu0 0
      %5447 = vmatprep.subr.bf16.mxu0 0
      %5448 = vmatpush1.bf16.msra.mxu0 0
      %5449 = vmatprep.subr.bf16.mxu0 0
      %5450 = vmatpush1.bf16.msra.mxu0 0
      %5451 = vmatprep.subr.bf16.mxu0 0
      %5452 = vmatpush1.bf16.msra.mxu0 0
      %5453 = vmatprep.subr.bf16.mxu0 %v5437
      %5454 = vmatpush1.bf16.msra.mxu0 %v5434
      %5455 = vmatprep.subr.bf16.mxu0 0
      %5456 = vmatpush2.bf16.msra.mxu0 0
      %5457 = vmatprep.subr.bf16.mxu0 0
      %5458 = vmatpush2.bf16.msra.mxu0 0
      %5459 = vmatprep.subr.bf16.mxu0 0
      %5460 = vmatpush2.bf16.msra.mxu0 0
      %5461 = vmatprep.subr.bf16.mxu0 0
      %5462 = vmatpush2.bf16.msra.mxu0 0
      %5463 = vmatprep.subr.bf16.mxu0 0
      %5464 = vmatpush2.bf16.msra.mxu0 0
      %5465 = vmatprep.subr.bf16.mxu0 0
      %5466 = vmatpush2.bf16.msra.mxu0 0
      %5467 = vmatprep.subr.bf16.mxu0 0
      %5468 = vmatpush2.bf16.msra.mxu0 0
      %5469 = vmatprep.subr.bf16.mxu0 0
      %5470 = vmatpush2.bf16.msra.mxu0 0
      %5471 = vmatprep.mubr.bf16.mxu0 0
      %5472 = vmatmul.mubr.bf16.gmra.mxu0 %v5421
      %v5473 = vpop.f32.mrf.mxu0
      %v5474 = vadd.f32 0.0, %v5473
      %v5475 = vpop.f32.mrf.mxu0
      %v5476 = vadd.f32 0.0, %v5475
      %v5477 = vpop.f32.mrf.mxu0
      %v5478 = vadd.f32 0.0, %v5477
      %v5479 = vpop.f32.mrf.mxu0
      %v5480 = vadd.f32 0.0, %v5479
      %5481 = vmatprep.mubr.bf16.mxu0 0
      %5482 = vmatmul.mubr.bf16.gmra.mxu0 %v5423
      %v5483 = vpop.f32.mrf.mxu0
      %v5484 = vadd.f32 0.0, %v5483
      %v5485 = vpop.f32.mrf.mxu0
      %v5486 = vadd.f32 0.0, %v5485
      %v5487 = vpop.f32.mrf.mxu0
      %v5488 = vadd.f32 0.0, %v5487
      %v5489 = vpop.f32.mrf.mxu0
      %v5490 = vadd.f32 0.0, %v5489
      %5491 = vmatprep.mubr.bf16.mxu0 0
      %5492 = vmatmul.mubr.bf16.gmra.mxu0 %v5425
      %v5493 = vpop.f32.mrf.mxu0
      %v5494 = vadd.f32 0.0, %v5493
      %v5495 = vpop.f32.mrf.mxu0
      %v5496 = vadd.f32 0.0, %v5495
      %v5497 = vpop.f32.mrf.mxu0
      %v5498 = vadd.f32 0.0, %v5497
      %v5499 = vpop.f32.mrf.mxu0
      %v5500 = vadd.f32 0.0, %v5499
      %5501 = vmatprep.mubr.bf16.mxu0 0
      %5502 = vmatmul.mubr.bf16.gmra.mxu0 %v5427
      %v5503 = vpop.f32.mrf.mxu0
      %v5504 = vadd.f32 0.0, %v5503
      %v5505 = vpop.f32.mrf.mxu0
      %v5506 = vadd.f32 0.0, %v5505
      %v5507 = vpop.f32.mrf.mxu0
      %v5508 = vadd.f32 0.0, %v5507
      %v5509 = vpop.f32.mrf.mxu0
      %v5510 = vadd.f32 0.0, %v5509
      %5511 = vmatprep.mubr.bf16.mxu0 0
      %5512 = vmatmul.mubr.bf16.gmra.mxu0 %v5429
      %v5513 = vpop.f32.mrf.mxu0
      %v5514 = vadd.f32 0.0, %v5513
      %v5515 = vpop.f32.mrf.mxu0
      %v5516 = vadd.f32 0.0, %v5515
      %v5517 = vpop.f32.mrf.mxu0
      %v5518 = vadd.f32 0.0, %v5517
      %v5519 = vpop.f32.mrf.mxu0
      %v5520 = vadd.f32 0.0, %v5519
      %5521 = vmatprep.mubr.bf16.mxu0 0
      %5522 = vmatmul.mubr.bf16.gmra.mxu0 %v5431
      %v5523 = vpop.f32.mrf.mxu0
      %v5524 = vadd.f32 0.0, %v5523
      %v5525 = vpop.f32.mrf.mxu0
      %v5526 = vadd.f32 0.0, %v5525
      %v5527 = vpop.f32.mrf.mxu0
      %v5528 = vadd.f32 0.0, %v5527
      %v5529 = vpop.f32.mrf.mxu0
      %v5530 = vadd.f32 0.0, %v5529
      %5531 = vdwg.mxu0
      %v5532 = vadd.f32 %v5148, %v5474
      %v5533 = vadd.f32 %v5150, %v5476
      %v5534 = vadd.f32 %v5152, %v5478
      %v5535 = vadd.f32 %v5154, %v5480
      %v5536 = vadd.f32 %v5158, %v5484
      %v5537 = vadd.f32 %v5160, %v5486
      %v5538 = vadd.f32 %v5162, %v5488
      %v5539 = vadd.f32 %v5164, %v5490
      %v5540 = vadd.f32 %v5168, %v5494
      %v5541 = vadd.f32 %v5170, %v5496
      %v5542 = vadd.f32 %v5172, %v5498
      %v5543 = vadd.f32 %v5174, %v5500
      %v5544 = vadd.f32 %v5178, %v5504
      %v5545 = vadd.f32 %v5180, %v5506
      %v5546 = vadd.f32 %v5182, %v5508
      %v5547 = vadd.f32 %v5184, %v5510
      %v5548 = vadd.f32 %v5188, %v5514
      %v5549 = vadd.f32 %v5190, %v5516
      %v5550 = vadd.f32 %v5192, %v5518
      %v5551 = vadd.f32 %v5194, %v5520
      %v5552 = vadd.f32 %v5198, %v5524
      %v5553 = vadd.f32 %v5200, %v5526
      %v5554 = vadd.f32 %v5202, %v5528
      %v5555 = vadd.f32 %v5204, %v5530
      %s5556 = scalar_lea.vmem %s11, 4
      %v5557 = vld [vmem:[%s5556] sm:$0x3]
      %v5559 = vlaneseq
      %v5560 = vshrl.u32 %v5559, 7
      %v5561 = vsub.s32 0, %v5560
      %v5562 = vrot.slane %v5557, %v5561
      %v5563 = vlaneseq
      %v5564 = vshrl.u32 %v5563, 7
      %v5565 = vsub.s32 1, %v5564
      %v5566 = vrot.slane %v5557, %v5565
      %v5569 = vadd.f32 %v5532, %v5562
      %v5570 = vadd.f32 %v5533, %v5566
      %v5571 = vadd.f32 %v5534, %v5562
      %v5572 = vadd.f32 %v5535, %v5566
      %v5573 = vadd.f32 %v5536, %v5562
      %v5574 = vadd.f32 %v5537, %v5566
      %v5575 = vadd.f32 %v5538, %v5562
      %v5576 = vadd.f32 %v5539, %v5566
      %v5577 = vadd.f32 %v5540, %v5562
      %v5578 = vadd.f32 %v5541, %v5566
      %v5579 = vadd.f32 %v5542, %v5562
      %v5580 = vadd.f32 %v5543, %v5566
      %v5581 = vadd.f32 %v5544, %v5562
      %v5582 = vadd.f32 %v5545, %v5566
      %v5583 = vadd.f32 %v5546, %v5562
      %v5584 = vadd.f32 %v5547, %v5566
      %v5585 = vadd.f32 %v5548, %v5562
      %v5586 = vadd.f32 %v5549, %v5566
      %v5587 = vadd.f32 %v5550, %v5562
      %v5588 = vadd.f32 %v5551, %v5566
      %v5589 = vadd.f32 %v5552, %v5562
      %v5590 = vadd.f32 %v5553, %v5566
      %v5591 = vadd.f32 %v5554, %v5562
      %v5592 = vadd.f32 %v5555, %v5566
      %v5593 = vmax.f32 %v5569, 0.0
      %v5594 = vmax.f32 %v5570, 0.0
      %v5595 = vmax.f32 %v5571, 0.0
      %v5596 = vmax.f32 %v5572, 0.0
      %v5597 = vmax.f32 %v5573, 0.0
      %v5598 = vmax.f32 %v5574, 0.0
      %v5599 = vmax.f32 %v5575, 0.0
      %v5600 = vmax.f32 %v5576, 0.0
      %v5601 = vmax.f32 %v5577, 0.0
      %v5602 = vmax.f32 %v5578, 0.0
      %v5603 = vmax.f32 %v5579, 0.0
      %v5604 = vmax.f32 %v5580, 0.0
      %v5605 = vmax.f32 %v5581, 0.0
      %v5606 = vmax.f32 %v5582, 0.0
      %v5607 = vmax.f32 %v5583, 0.0
      %v5608 = vmax.f32 %v5584, 0.0
      %v5609 = vmax.f32 %v5585, 0.0
      %v5610 = vmax.f32 %v5586, 0.0
      %v5611 = vmax.f32 %v5587, 0.0
      %v5612 = vmax.f32 %v5588, 0.0
      %v5613 = vmax.f32 %v5589, 0.0
      %v5614 = vmax.f32 %v5590, 0.0
      %v5615 = vmax.f32 %v5591, 0.0
      %v5616 = vmax.f32 %v5592, 0.0
      %v5617 = vpack.c.bf16 %v5595, %v5593
      %v5618 = vpack.c.bf16 %v5596, %v5594
      %v5619 = vpack.c.bf16 %v5599, %v5597
      %v5620 = vpack.c.bf16 %v5600, %v5598
      %v5621 = vpack.c.bf16 %v5603, %v5601
      %v5622 = vpack.c.bf16 %v5604, %v5602
      %v5623 = vpack.c.bf16 %v5607, %v5605
      %v5624 = vpack.c.bf16 %v5608, %v5606
      %v5625 = vpack.c.bf16 %v5611, %v5609
      %v5626 = vpack.c.bf16 %v5612, %v5610
      %v5627 = vpack.c.bf16 %v5615, %v5613
      %v5628 = vpack.c.bf16 %v5616, %v5614
      %v5629 = vld [vmem:[#allocation2] sm:$0xff]
      %v5630 = vld [vmem:[#allocation2 + $0x8] sm:$0xff]
      %v5631 = vld [vmem:[#allocation2 + $0x10] sm:$0xff]
      %v5632 = vld [vmem:[#allocation2 + $0x18] sm:$0xff]
      %v5633 = vld [vmem:[#allocation2 + $0x20] sm:$0xff]
      %v5634 = vld [vmem:[#allocation2 + $0x28] sm:$0xff]
      %v5635 = vld [vmem:[#allocation2 + $0x30] sm:$0xff]
      %v5636 = vld [vmem:[#allocation2 + $0x38] sm:$0xff]
      %v5637 = vld [vmem:[#allocation2 + $0x40] sm:$0xff]
      %v5638 = vld [vmem:[#allocation2 + $0x48] sm:$0xff]
      %v5639 = vld [vmem:[#allocation2 + $0x50] sm:$0xff]
      %v5640 = vld [vmem:[#allocation2 + $0x58] sm:$0xff]
      %v5641 = vld [vmem:[#allocation2 + $0x60] sm:$0xff]
      %v5642 = vld [vmem:[#allocation2 + $0x68] sm:$0xff]
      %v5643 = vld [vmem:[#allocation2 + $0x70] sm:$0xff]
      %v5644 = vld [vmem:[#allocation2 + $0x78] sm:$0xff]
      %v5645 = vld [vmem:[#allocation2 + $0x80] sm:$0xff]
      %v5646 = vld [vmem:[#allocation2 + $0x88] sm:$0xff]
      %v5647 = vld [vmem:[#allocation2 + $0x90] sm:$0xff]
      %v5648 = vld [vmem:[#allocation2 + $0x98] sm:$0xff]
      %v5649 = vld [vmem:[#allocation2 + $0xa0] sm:$0xff]
      %v5650 = vld [vmem:[#allocation2 + $0xa8] sm:$0xff]
      %v5651 = vld [vmem:[#allocation2 + $0xb0] sm:$0xff]
      %v5652 = vld [vmem:[#allocation2 + $0xb8] sm:$0xff]
      %s5653 = scalar_lea.vmem %s9, 768
      %v5654 = vld [vmem:[%s5653] sm:$0xff]
      %v5655 = vld [vmem:[%s5653 + $0x8] sm:$0xff]
      %v5656 = vld [vmem:[%s5653 + $0x10] sm:$0xff]
      %v5657 = vld [vmem:[%s5653 + $0x18] sm:$0xff]
      %v5658 = vld [vmem:[%s5653 + $0x20] sm:$0xff]
      %v5659 = vld [vmem:[%s5653 + $0x28] sm:$0xff]
      %v5660 = vld [vmem:[%s5653 + $0x30] sm:$0xff]
      %v5661 = vld [vmem:[%s5653 + $0x38] sm:$0xff]
      %v5662 = vld [vmem:[%s5653 + $0x40] sm:$0xff]
      %v5663 = vld [vmem:[%s5653 + $0x48] sm:$0xff]
      %v5664 = vld [vmem:[%s5653 + $0x50] sm:$0xff]
      %v5665 = vld [vmem:[%s5653 + $0x58] sm:$0xff]
      %v5666 = vld [vmem:[%s5653 + $0x60] sm:$0xff]
      %v5667 = vld [vmem:[%s5653 + $0x68] sm:$0xff]
      %v5668 = vld [vmem:[%s5653 + $0x70] sm:$0xff]
      %v5669 = vld [vmem:[%s5653 + $0x78] sm:$0xff]
      %v5670 = vld [vmem:[%s5653 + $0x80] sm:$0xff]
      %v5671 = vld [vmem:[%s5653 + $0x88] sm:$0xff]
      %v5672 = vld [vmem:[%s5653 + $0x90] sm:$0xff]
      %v5673 = vld [vmem:[%s5653 + $0x98] sm:$0xff]
      %v5674 = vld [vmem:[%s5653 + $0xa0] sm:$0xff]
      %v5675 = vld [vmem:[%s5653 + $0xa8] sm:$0xff]
      %v5676 = vld [vmem:[%s5653 + $0xb0] sm:$0xff]
      %v5677 = vld [vmem:[%s5653 + $0xb8] sm:$0xff]
      %v5678 = vld [vmem:[%s5653 + $0xc0] sm:$0xff]
      %v5679 = vld [vmem:[%s5653 + $0xc8] sm:$0xff]
      %v5680 = vld [vmem:[%s5653 + $0xd0] sm:$0xff]
      %v5681 = vld [vmem:[%s5653 + $0xd8] sm:$0xff]
      %v5682 = vld [vmem:[%s5653 + $0xe0] sm:$0xff]
      %v5683 = vld [vmem:[%s5653 + $0xe8] sm:$0xff]
      %v5684 = vld [vmem:[%s5653 + $0xf0] sm:$0xff]
      %v5685 = vld [vmem:[%s5653 + $0xf8] sm:$0xff]
      %v5718 = vunpack.c.l.b16 %v5654
      %v5719 = vunpack.c.h.b16 %v5654
      %v5720 = vunpack.c.l.b16 %v5655
      %v5721 = vunpack.c.h.b16 %v5655
      %v5722 = vunpack.c.l.b16 %v5656
      %v5723 = vunpack.c.h.b16 %v5656
      %v5724 = vunpack.c.l.b16 %v5657
      %v5725 = vunpack.c.h.b16 %v5657
      %v5726 = vunpack.c.l.b16 %v5658
      %v5727 = vunpack.c.h.b16 %v5658
      %v5728 = vunpack.c.l.b16 %v5659
      %v5729 = vunpack.c.h.b16 %v5659
      %v5730 = vunpack.c.l.b16 %v5660
      %v5731 = vunpack.c.h.b16 %v5660
      %v5732 = vunpack.c.l.b16 %v5661
      %v5733 = vunpack.c.h.b16 %v5661
      %v5734 = vunpack.c.l.b16 %v5662
      %v5735 = vunpack.c.h.b16 %v5662
      %v5736 = vunpack.c.l.b16 %v5663
      %v5737 = vunpack.c.h.b16 %v5663
      %v5738 = vunpack.c.l.b16 %v5664
      %v5739 = vunpack.c.h.b16 %v5664
      %v5740 = vunpack.c.l.b16 %v5665
      %v5741 = vunpack.c.h.b16 %v5665
      %v5742 = vunpack.c.l.b16 %v5666
      %v5743 = vunpack.c.h.b16 %v5666
      %v5744 = vunpack.c.l.b16 %v5667
      %v5745 = vunpack.c.h.b16 %v5667
      %v5746 = vunpack.c.l.b16 %v5668
      %v5747 = vunpack.c.h.b16 %v5668
      %v5748 = vunpack.c.l.b16 %v5669
      %v5749 = vunpack.c.h.b16 %v5669
      %v5750 = vunpack.c.l.b16 %v5670
      %v5751 = vunpack.c.h.b16 %v5670
      %v5752 = vunpack.c.l.b16 %v5671
      %v5753 = vunpack.c.h.b16 %v5671
      %v5754 = vunpack.c.l.b16 %v5672
      %v5755 = vunpack.c.h.b16 %v5672
      %v5756 = vunpack.c.l.b16 %v5673
      %v5757 = vunpack.c.h.b16 %v5673
      %v5758 = vunpack.c.l.b16 %v5674
      %v5759 = vunpack.c.h.b16 %v5674
      %v5760 = vunpack.c.l.b16 %v5675
      %v5761 = vunpack.c.h.b16 %v5675
      %v5762 = vunpack.c.l.b16 %v5676
      %v5763 = vunpack.c.h.b16 %v5676
      %v5764 = vunpack.c.l.b16 %v5677
      %v5765 = vunpack.c.h.b16 %v5677
      %v5766 = vunpack.c.l.b16 %v5678
      %v5767 = vunpack.c.h.b16 %v5678
      %v5768 = vunpack.c.l.b16 %v5679
      %v5769 = vunpack.c.h.b16 %v5679
      %v5770 = vunpack.c.l.b16 %v5680
      %v5771 = vunpack.c.h.b16 %v5680
      %v5772 = vunpack.c.l.b16 %v5681
      %v5773 = vunpack.c.h.b16 %v5681
      %v5774 = vunpack.c.l.b16 %v5682
      %v5775 = vunpack.c.h.b16 %v5682
      %v5776 = vunpack.c.l.b16 %v5683
      %v5777 = vunpack.c.h.b16 %v5683
      %v5778 = vunpack.c.l.b16 %v5684
      %v5779 = vunpack.c.h.b16 %v5684
      %v5780 = vunpack.c.l.b16 %v5685
      %v5781 = vunpack.c.h.b16 %v5685
      %v5782 = vpack.c.b16 %v5720, %v5718
      %v5783 = vpack.c.b16 %v5721, %v5719
      %v5784 = vpack.c.b16 %v5724, %v5722
      %v5785 = vpack.c.b16 %v5725, %v5723
      %v5786 = vpack.c.b16 %v5728, %v5726
      %v5787 = vpack.c.b16 %v5729, %v5727
      %v5788 = vpack.c.b16 %v5732, %v5730
      %v5789 = vpack.c.b16 %v5733, %v5731
      %v5790 = vpack.c.b16 %v5736, %v5734
      %v5791 = vpack.c.b16 %v5737, %v5735
      %v5792 = vpack.c.b16 %v5740, %v5738
      %v5793 = vpack.c.b16 %v5741, %v5739
      %v5794 = vpack.c.b16 %v5744, %v5742
      %v5795 = vpack.c.b16 %v5745, %v5743
      %v5796 = vpack.c.b16 %v5748, %v5746
      %v5797 = vpack.c.b16 %v5749, %v5747
      %v5798 = vpack.c.b16 %v5752, %v5750
      %v5799 = vpack.c.b16 %v5753, %v5751
      %v5800 = vpack.c.b16 %v5756, %v5754
      %v5801 = vpack.c.b16 %v5757, %v5755
      %v5802 = vpack.c.b16 %v5760, %v5758
      %v5803 = vpack.c.b16 %v5761, %v5759
      %v5804 = vpack.c.b16 %v5764, %v5762
      %v5805 = vpack.c.b16 %v5765, %v5763
      %v5806 = vpack.c.b16 %v5768, %v5766
      %v5807 = vpack.c.b16 %v5769, %v5767
      %v5808 = vpack.c.b16 %v5772, %v5770
      %v5809 = vpack.c.b16 %v5773, %v5771
      %v5810 = vpack.c.b16 %v5776, %v5774
      %v5811 = vpack.c.b16 %v5777, %v5775
      %v5812 = vpack.c.b16 %v5780, %v5778
      %v5813 = vpack.c.b16 %v5781, %v5779
      %5846 = vmatprep.subr.bf16.mxu0 %v5797
      %5847 = vmatpush1.bf16.msra.mxu0 %v5796
      %5848 = vmatprep.subr.bf16.mxu0 %v5795
      %5849 = vmatpush1.bf16.msra.mxu0 %v5794
      %5850 = vmatprep.subr.bf16.mxu0 %v5793
      %5851 = vmatpush1.bf16.msra.mxu0 %v5792
      %5852 = vmatprep.subr.bf16.mxu0 %v5791
      %5853 = vmatpush1.bf16.msra.mxu0 %v5790
      %5854 = vmatprep.subr.bf16.mxu0 %v5789
      %5855 = vmatpush1.bf16.msra.mxu0 %v5788
      %5856 = vmatprep.subr.bf16.mxu0 %v5787
      %5857 = vmatpush1.bf16.msra.mxu0 %v5786
      %5858 = vmatprep.subr.bf16.mxu0 %v5785
      %5859 = vmatpush1.bf16.msra.mxu0 %v5784
      %5860 = vmatprep.subr.bf16.mxu0 %v5783
      %5861 = vmatpush1.bf16.msra.mxu0 %v5782
      %5862 = vmatprep.subr.bf16.mxu0 %v5813
      %5863 = vmatpush2.bf16.msra.mxu0 %v5812
      %5864 = vmatprep.subr.bf16.mxu0 %v5811
      %5865 = vmatpush2.bf16.msra.mxu0 %v5810
      %5866 = vmatprep.subr.bf16.mxu0 %v5809
      %5867 = vmatpush2.bf16.msra.mxu0 %v5808
      %5868 = vmatprep.subr.bf16.mxu0 %v5807
      %5869 = vmatpush2.bf16.msra.mxu0 %v5806
      %5870 = vmatprep.subr.bf16.mxu0 %v5805
      %5871 = vmatpush2.bf16.msra.mxu0 %v5804
      %5872 = vmatprep.subr.bf16.mxu0 %v5803
      %5873 = vmatpush2.bf16.msra.mxu0 %v5802
      %5874 = vmatprep.subr.bf16.mxu0 %v5801
      %5875 = vmatpush2.bf16.msra.mxu0 %v5800
      %5876 = vmatprep.subr.bf16.mxu0 %v5799
      %5877 = vmatpush2.bf16.msra.mxu0 %v5798
      %5878 = vmatprep.mubr.bf16.mxu0 %v5618
      %5879 = vmatmul.mubr.bf16.gmra.mxu0 %v5617
      %v5880 = vpop.f32.mrf.mxu0
      %v5881 = vadd.f32 0.0, %v5880
      %v5882 = vpop.f32.mrf.mxu0
      %v5883 = vadd.f32 0.0, %v5882
      %v5884 = vpop.f32.mrf.mxu0
      %v5885 = vadd.f32 0.0, %v5884
      %v5886 = vpop.f32.mrf.mxu0
      %v5887 = vadd.f32 0.0, %v5886
      %5888 = vmatprep.mubr.bf16.mxu0 %v5620
      %5889 = vmatmul.mubr.bf16.gmra.mxu0 %v5619
      %v5890 = vpop.f32.mrf.mxu0
      %v5891 = vadd.f32 0.0, %v5890
      %v5892 = vpop.f32.mrf.mxu0
      %v5893 = vadd.f32 0.0, %v5892
      %v5894 = vpop.f32.mrf.mxu0
      %v5895 = vadd.f32 0.0, %v5894
      %v5896 = vpop.f32.mrf.mxu0
      %v5897 = vadd.f32 0.0, %v5896
      %5898 = vmatprep.mubr.bf16.mxu0 %v5622
      %5899 = vmatmul.mubr.bf16.gmra.mxu0 %v5621
      %v5900 = vpop.f32.mrf.mxu0
      %v5901 = vadd.f32 0.0, %v5900
      %v5902 = vpop.f32.mrf.mxu0
      %v5903 = vadd.f32 0.0, %v5902
      %v5904 = vpop.f32.mrf.mxu0
      %v5905 = vadd.f32 0.0, %v5904
      %v5906 = vpop.f32.mrf.mxu0
      %v5907 = vadd.f32 0.0, %v5906
      %5908 = vmatprep.mubr.bf16.mxu0 %v5624
      %5909 = vmatmul.mubr.bf16.gmra.mxu0 %v5623
      %v5910 = vpop.f32.mrf.mxu0
      %v5911 = vadd.f32 0.0, %v5910
      %v5912 = vpop.f32.mrf.mxu0
      %v5913 = vadd.f32 0.0, %v5912
      %v5914 = vpop.f32.mrf.mxu0
      %v5915 = vadd.f32 0.0, %v5914
      %v5916 = vpop.f32.mrf.mxu0
      %v5917 = vadd.f32 0.0, %v5916
      %5918 = vmatprep.mubr.bf16.mxu0 %v5626
      %5919 = vmatmul.mubr.bf16.gmra.mxu0 %v5625
      %v5920 = vpop.f32.mrf.mxu0
      %v5921 = vadd.f32 0.0, %v5920
      %v5922 = vpop.f32.mrf.mxu0
      %v5923 = vadd.f32 0.0, %v5922
      %v5924 = vpop.f32.mrf.mxu0
      %v5925 = vadd.f32 0.0, %v5924
      %v5926 = vpop.f32.mrf.mxu0
      %v5927 = vadd.f32 0.0, %v5926
      %5928 = vmatprep.mubr.bf16.mxu0 %v5628
      %5929 = vmatmul.mubr.bf16.gmra.mxu0 %v5627
      %v5930 = vpop.f32.mrf.mxu0
      %v5931 = vadd.f32 0.0, %v5930
      %v5932 = vpop.f32.mrf.mxu0
      %v5933 = vadd.f32 0.0, %v5932
      %v5934 = vpop.f32.mrf.mxu0
      %v5935 = vadd.f32 0.0, %v5934
      %v5936 = vpop.f32.mrf.mxu0
      %v5937 = vadd.f32 0.0, %v5936
      %5938 = vdwg.mxu0
      %v5939 = vadd.f32 %v5629, %v5881
      %v5940 = vadd.f32 %v5630, %v5883
      %v5941 = vadd.f32 %v5631, %v5885
      %v5942 = vadd.f32 %v5632, %v5887
      %v5943 = vadd.f32 %v5633, %v5891
      %v5944 = vadd.f32 %v5634, %v5893
      %v5945 = vadd.f32 %v5635, %v5895
      %v5946 = vadd.f32 %v5636, %v5897
      %v5947 = vadd.f32 %v5637, %v5901
      %v5948 = vadd.f32 %v5638, %v5903
      %v5949 = vadd.f32 %v5639, %v5905
      %v5950 = vadd.f32 %v5640, %v5907
      %v5951 = vadd.f32 %v5641, %v5911
      %v5952 = vadd.f32 %v5642, %v5913
      %v5953 = vadd.f32 %v5643, %v5915
      %v5954 = vadd.f32 %v5644, %v5917
      %v5955 = vadd.f32 %v5645, %v5921
      %v5956 = vadd.f32 %v5646, %v5923
      %v5957 = vadd.f32 %v5647, %v5925
      %v5958 = vadd.f32 %v5648, %v5927
      %v5959 = vadd.f32 %v5649, %v5931
      %v5960 = vadd.f32 %v5650, %v5933
      %v5961 = vadd.f32 %v5651, %v5935
      %v5962 = vadd.f32 %v5652, %v5937
      %5963 = vst [vmem:[#allocation2] sm:$0xff] %v5939
      %5964 = vst [vmem:[#allocation2 + $0x8] sm:$0xff] %v5940
      %5965 = vst [vmem:[#allocation2 + $0x10] sm:$0xff] %v5941
      %5966 = vst [vmem:[#allocation2 + $0x18] sm:$0xff] %v5942
      %5967 = vst [vmem:[#allocation2 + $0x20] sm:$0xff] %v5943
      %5968 = vst [vmem:[#allocation2 + $0x28] sm:$0xff] %v5944
      %5969 = vst [vmem:[#allocation2 + $0x30] sm:$0xff] %v5945
      %5970 = vst [vmem:[#allocation2 + $0x38] sm:$0xff] %v5946
      %5971 = vst [vmem:[#allocation2 + $0x40] sm:$0xff] %v5947
      %5972 = vst [vmem:[#allocation2 + $0x48] sm:$0xff] %v5948
      %5973 = vst [vmem:[#allocation2 + $0x50] sm:$0xff] %v5949
      %5974 = vst [vmem:[#allocation2 + $0x58] sm:$0xff] %v5950
      %5975 = vst [vmem:[#allocation2 + $0x60] sm:$0xff] %v5951
      %5976 = vst [vmem:[#allocation2 + $0x68] sm:$0xff] %v5952
      %5977 = vst [vmem:[#allocation2 + $0x70] sm:$0xff] %v5953
      %5978 = vst [vmem:[#allocation2 + $0x78] sm:$0xff] %v5954
      %5979 = vst [vmem:[#allocation2 + $0x80] sm:$0xff] %v5955
      %5980 = vst [vmem:[#allocation2 + $0x88] sm:$0xff] %v5956
      %5981 = vst [vmem:[#allocation2 + $0x90] sm:$0xff] %v5957
      %5982 = vst [vmem:[#allocation2 + $0x98] sm:$0xff] %v5958
      %5983 = vst [vmem:[#allocation2 + $0xa0] sm:$0xff] %v5959
      %5984 = vst [vmem:[#allocation2 + $0xa8] sm:$0xff] %v5960
      %5985 = vst [vmem:[#allocation2 + $0xb0] sm:$0xff] %v5961
      %5986 = vst [vmem:[#allocation2 + $0xb8] sm:$0xff] %v5962
      %v5987 = vld [vmem:[#allocation2] sm:$0xff]
      %v5988 = vld [vmem:[#allocation2 + $0x8] sm:$0xff]
      %v5989 = vld [vmem:[#allocation2 + $0x10] sm:$0xff]
      %v5990 = vld [vmem:[#allocation2 + $0x18] sm:$0xff]
      %v5991 = vld [vmem:[#allocation2 + $0x20] sm:$0xff]
      %v5992 = vld [vmem:[#allocation2 + $0x28] sm:$0xff]
      %v5993 = vld [vmem:[#allocation2 + $0x30] sm:$0xff]
      %v5994 = vld [vmem:[#allocation2 + $0x38] sm:$0xff]
      %v5995 = vld [vmem:[#allocation2 + $0x40] sm:$0xff]
      %v5996 = vld [vmem:[#allocation2 + $0x48] sm:$0xff]
      %v5997 = vld [vmem:[#allocation2 + $0x50] sm:$0xff]
      %v5998 = vld [vmem:[#allocation2 + $0x58] sm:$0xff]
      %v5999 = vld [vmem:[#allocation2 + $0x60] sm:$0xff]
      %v6000 = vld [vmem:[#allocation2 + $0x68] sm:$0xff]
      %v6001 = vld [vmem:[#allocation2 + $0x70] sm:$0xff]
      %v6002 = vld [vmem:[#allocation2 + $0x78] sm:$0xff]
      %v6003 = vld [vmem:[#allocation2 + $0x80] sm:$0xff]
      %v6004 = vld [vmem:[#allocation2 + $0x88] sm:$0xff]
      %v6005 = vld [vmem:[#allocation2 + $0x90] sm:$0xff]
      %v6006 = vld [vmem:[#allocation2 + $0x98] sm:$0xff]
      %v6007 = vld [vmem:[#allocation2 + $0xa0] sm:$0xff]
      %v6008 = vld [vmem:[#allocation2 + $0xa8] sm:$0xff]
      %v6009 = vld [vmem:[#allocation2 + $0xb0] sm:$0xff]
      %v6010 = vld [vmem:[#allocation2 + $0xb8] sm:$0xff]
      %v6011 = vld [vmem:[%s766] sm:$0x3]
      %v6013 = vlaneseq
      %v6014 = vshrl.u32 %v6013, 7
      %v6015 = vsub.s32 0, %v6014
      %v6016 = vrot.slane %v6011, %v6015
      %v6017 = vlaneseq
      %v6018 = vshrl.u32 %v6017, 7
      %v6019 = vsub.s32 1, %v6018
      %v6020 = vrot.slane %v6011, %v6019
      %v6023 = vadd.f32 %v5987, %v6016
      %v6024 = vadd.f32 %v5988, %v6020
      %v6025 = vadd.f32 %v5989, %v6016
      %v6026 = vadd.f32 %v5990, %v6020
      %v6027 = vadd.f32 %v5991, %v6016
      %v6028 = vadd.f32 %v5992, %v6020
      %v6029 = vadd.f32 %v5993, %v6016
      %v6030 = vadd.f32 %v5994, %v6020
      %v6031 = vadd.f32 %v5995, %v6016
      %v6032 = vadd.f32 %v5996, %v6020
      %v6033 = vadd.f32 %v5997, %v6016
      %v6034 = vadd.f32 %v5998, %v6020
      %v6035 = vadd.f32 %v5999, %v6016
      %v6036 = vadd.f32 %v6000, %v6020
      %v6037 = vadd.f32 %v6001, %v6016
      %v6038 = vadd.f32 %v6002, %v6020
      %v6039 = vadd.f32 %v6003, %v6016
      %v6040 = vadd.f32 %v6004, %v6020
      %v6041 = vadd.f32 %v6005, %v6016
      %v6042 = vadd.f32 %v6006, %v6020
      %v6043 = vadd.f32 %v6007, %v6016
      %v6044 = vadd.f32 %v6008, %v6020
      %v6045 = vadd.f32 %v6009, %v6016
      %v6046 = vadd.f32 %v6010, %v6020
      %v6047 = vmax.f32 %v6023, 0.0
      %v6048 = vmax.f32 %v6024, 0.0
      %v6049 = vmax.f32 %v6025, 0.0
      %v6050 = vmax.f32 %v6026, 0.0
      %v6051 = vmax.f32 %v6027, 0.0
      %v6052 = vmax.f32 %v6028, 0.0
      %v6053 = vmax.f32 %v6029, 0.0
      %v6054 = vmax.f32 %v6030, 0.0
      %v6055 = vmax.f32 %v6031, 0.0
      %v6056 = vmax.f32 %v6032, 0.0
      %v6057 = vmax.f32 %v6033, 0.0
      %v6058 = vmax.f32 %v6034, 0.0
      %v6059 = vmax.f32 %v6035, 0.0
      %v6060 = vmax.f32 %v6036, 0.0
      %v6061 = vmax.f32 %v6037, 0.0
      %v6062 = vmax.f32 %v6038, 0.0
      %v6063 = vmax.f32 %v6039, 0.0
      %v6064 = vmax.f32 %v6040, 0.0
      %v6065 = vmax.f32 %v6041, 0.0
      %v6066 = vmax.f32 %v6042, 0.0
      %v6067 = vmax.f32 %v6043, 0.0
      %v6068 = vmax.f32 %v6044, 0.0
      %v6069 = vmax.f32 %v6045, 0.0
      %v6070 = vmax.f32 %v6046, 0.0
      %6071 = vst [vmem:[%s776] sm:$0xff] %v6047
      %6072 = vst [vmem:[%s776 + $0x8] sm:$0xff] %v6048
      %6073 = vst [vmem:[%s776 + $0x10] sm:$0xff] %v6049
      %6074 = vst [vmem:[%s776 + $0x18] sm:$0xff] %v6050
      %6075 = vst [vmem:[%s776 + $0x20] sm:$0xff] %v6051
      %6076 = vst [vmem:[%s776 + $0x28] sm:$0xff] %v6052
      %6077 = vst [vmem:[%s776 + $0x30] sm:$0xff] %v6053
      %6078 = vst [vmem:[%s776 + $0x38] sm:$0xff] %v6054
      %6079 = vst [vmem:[%s776 + $0x40] sm:$0xff] %v6055
      %6080 = vst [vmem:[%s776 + $0x48] sm:$0xff] %v6056
      %6081 = vst [vmem:[%s776 + $0x50] sm:$0xff] %v6057
      %6082 = vst [vmem:[%s776 + $0x58] sm:$0xff] %v6058
      %6083 = vst [vmem:[%s776 + $0x60] sm:$0xff] %v6059
      %6084 = vst [vmem:[%s776 + $0x68] sm:$0xff] %v6060
      %6085 = vst [vmem:[%s776 + $0x70] sm:$0xff] %v6061
      %6086 = vst [vmem:[%s776 + $0x78] sm:$0xff] %v6062
      %6087 = vst [vmem:[%s776 + $0x80] sm:$0xff] %v6063
      %6088 = vst [vmem:[%s776 + $0x88] sm:$0xff] %v6064
      %6089 = vst [vmem:[%s776 + $0x90] sm:$0xff] %v6065
      %6090 = vst [vmem:[%s776 + $0x98] sm:$0xff] %v6066
      %6091 = vst [vmem:[%s776 + $0xa0] sm:$0xff] %v6067
      %6092 = vst [vmem:[%s776 + $0xa8] sm:$0xff] %v6068
      %6093 = vst [vmem:[%s776 + $0xb0] sm:$0xff] %v6069
      %6094 = vst [vmem:[%s776 + $0xb8] sm:$0xff] %v6070
      %s6095 = smul.u32 6, %s29
      %p6096 = scmp.lt.s32.totalorder %s28, 1
      %s6097 = scalar_select %p6096, %s28, 1
      %p6098 = scmp.lt.s32.totalorder %s6095, 17
      %s6099 = scalar_select %p6098, %s6095, 17
      %s6100 = smul.addr %s6099, 4
      %s6101 = smul.addr %s6097, 72
      %s6102 = sadd.s32 %s6100, %s6101
      %s6103 = smul.addr %s6102, 8
      %s6104 = scalar_lea.vmem %s13, %s6103
      // Predicated region
      $region73: #{aspp_forward.1} parent=71 // pred_check
        %p6105 = pneg %p395
      $region74: #{aspp_forward.1} parent=71 // pred_check_branch
        %6107 = sbr.rel (%p6105) target = $region76
      $region75: #{aspp_forward.1} parent=71 // pred_region
        %s6108 = smul.u32 6, %s29
      $region76: #{aspp_forward.1} parent=71 // pred_fallthru
        _
    $region72: #{aspp_forward.1} parent=5 // pred_fallthru
      _
    %p6109 = scmp.le.s32.totalorder 2, %s19
    // Predicated region
    $region77: #{aspp_forward.1} parent=5 // pred_check
      %p6110 = pneg %p6109
    $region78: #{aspp_forward.1} parent=5 // pred_check_branch
      %6112 = sbr.rel (%p6110) target = $region80
    $region79: #{aspp_forward.1} parent=5 // pred_region
      %s6113 = ssub.s32 %s19, 2
      // Predicated region
      $region81: #{aspp_forward.1} parent=79 // pred_check
        %p6114 = pneg %p401
      $region82: #{aspp_forward.1} parent=79 // pred_check_branch
        %6116 = sbr.rel (%p6114) target = $region84
      $region83: #{aspp_forward.1} parent=79 // pred_region
        %s6117 = smul.u32 6, %s31
        %p6118 = scmp.lt.s32.totalorder %s30, 1
        %s6119 = scalar_select %p6118, %s30, 1
        %p6120 = scmp.lt.s32.totalorder %s6117, 17
        %s6121 = scalar_select %p6120, %s6117, 17
        %s6122 = smul.addr %s6121, 4
        %s6123 = smul.addr %s6119, 72
        %s6124 = sadd.s32 %s6122, %s6123
        %s6125 = smul.addr %s6124, 8
        %s6126 = scalar_lea.vmem %s13, %s6125
      $region84: #{aspp_forward.1} parent=79 // pred_fallthru
        _
    $region80: #{aspp_forward.1} parent=5 // pred_fallthru
      _
  $region6: #{aspp_forward.1} parent=0 // loop_footer
    %s23 = sadd.s32 1, %s19
  $region7: #{aspp_forward.1} parent=0 // loop_footer_branch
    %18 = sbr.rel target = $region3
  $region8: #{aspp_forward.1} parent=0 // loop_exit
    _

</llo_original>
